<compile_context>
chip_gen: v6e
topology: v6e:2x2x1
jax: 0.10.0
libtpu: 0.0.40
codegen_flags: <defaults>
</compile_context>

<pallas_src>
import jax
import jax.numpy as jnp
from jax.experimental import pallas as pl
from jax.experimental.pallas import tpu as pltpu


# ----------------------------------------------------------------------------
# Geometry constants (LeNet on a 32x32 input, flat "anchor" layout, grid W=32)
# ----------------------------------------------------------------------------
IN_W = 32
FLAT = IN_W * IN_W              # 1024 flat positions (p = h*32 + w)
X_PAD = 1184                    # >= 1024 + 132 (max conv1 tap offset)
C1_PAD = 1152                   # >= 1024 + 33  (max pool1 read offset)
P1_PAD = 1408                   # >= 1024 + 264 (max conv2 tap offset)
C2_PAD = 1152                   # >= 1024 + 66  (max pool2 read offset)

# conv1 taps: offset = 32*di + dj           (valid output anchors p = 32r + c)
CONV1_OFFS = tuple(IN_W * di + dj for di in range(5) for dj in range(5))
# pool1 reads: offsets {0, 1, 32, 33}       (output anchors q = 64i + 2j)
# conv2 taps on pooled anchors: 64*di + 2*dj (output anchors A = 64r2 + 2c2)
CONV2_OFFS = tuple(2 * IN_W * di + 2 * dj for di in range(5) for dj in range(5))
# pool2 reads: offsets {0, 2, 64, 66}       (output anchors B = 128i3 + 4j3)


# ----------------------------------------------------------------------------
# Fused kernel: one batch sample per grid step, everything in VMEM
# ----------------------------------------------------------------------------
def _lenet_kernel(x_ref, w1_ref, b1_ref, w2_ref, b2_ref, sel_ref,
                  wf1_ref, bf1_ref, wf2_ref, bf2_ref, wf3_ref, bf3_ref,
                  out_ref,
                  p1, c1buf, s2buf, p2, c2buf):
    f32 = jnp.float32
    bf16 = jnp.bfloat16

    # ---------------- conv1: in-kernel im2col (25 lane-shifted slices) -------
    xv = x_ref[...].reshape(1, X_PAD)                     # (1, 1184), zero padded
    for t, off in enumerate(CONV1_OFFS):
        p1[t:t + 1, :] = xv[:, off:off + FLAT]            # patch row (1, 1024)
    c1 = jnp.dot(w1_ref[...], p1[...].astype(bf16),
                 preferred_element_type=f32)              # (6, 1024) lane-dense
    c1 = jnp.maximum(c1 + b1_ref[...], 0.0)               # bias + relu
    c1buf[:, 0:FLAT] = c1
    c1buf[:, FLAT:C1_PAD] = jnp.zeros((6, C1_PAD - FLAT), f32)

    # ---------------- maxpool 2x2 (elementwise max of shifted views) ---------
    s2 = jnp.maximum(
        jnp.maximum(c1buf[:, 0:FLAT], c1buf[:, 1:FLAT + 1]),
        jnp.maximum(c1buf[:, IN_W:FLAT + IN_W],
                    c1buf[:, IN_W + 1:FLAT + IN_W + 1]))  # (6, 1024)
    s2buf[:, 0:FLAT] = s2
    s2buf[:, FLAT:P1_PAD] = jnp.zeros((6, P1_PAD - FLAT), f32)

    # ---------------- conv2: in-kernel im2col (25 taps x 6 channels) ---------
    for t, off in enumerate(CONV2_OFFS):
        p2[6 * t:6 * t + 6, :] = s2buf[:, off:off + FLAT]  # (6, 1024) block
    c2 = jnp.dot(w2_ref[...], p2[...].astype(bf16),
                 preferred_element_type=f32)              # (16, 1024) lane-dense
    c2 = jnp.maximum(c2 + b2_ref[...], 0.0)
    c2buf[:, 0:FLAT] = c2
    c2buf[:, FLAT:C2_PAD] = jnp.zeros((16, C2_PAD - FLAT), f32)

    # ---------------- maxpool 2x2 --------------------------------------------
    s4 = jnp.maximum(
        jnp.maximum(c2buf[:, 0:FLAT], c2buf[:, 2:FLAT + 2]),
        jnp.maximum(c2buf[:, 2 * IN_W:FLAT + 2 * IN_W],
                    c2buf[:, 2 * IN_W + 2:FLAT + 2 * IN_W + 2]))  # (16, 1024)

    # -------- gather the 25 valid pooled positions per channel (0/1 matmul) --
    s4c = jnp.dot(s4.astype(bf16), sel_ref[...],
                  preferred_element_type=f32)             # (16, 25)
    s4c = s4c.astype(bf16)

    # ---------------- fc1 / fc2 / fc3, all in VMEM ---------------------------
    acc = bf1_ref[...]                                    # (1, 120) f32
    for c in range(16):                                   # contract (c, 25)
        acc = acc + jnp.dot(s4c[c:c + 1, :], wf1_ref[c],
                            preferred_element_type=f32)
    f5 = jnp.maximum(acc, 0.0).astype(bf16)               # (1, 120)
    f6 = jnp.maximum(
        jnp.dot(f5, wf2_ref[...], preferred_element_type=f32) + bf2_ref[...],
        0.0).astype(bf16)                                 # (1, 84)
    out = jnp.dot(f6, wf3_ref[...], preferred_element_type=f32) + bf3_ref[...]
    out_ref[...] = out.reshape(1, 1, 10)


# ----------------------------------------------------------------------------
# Weight preparation (done once, outside the kernel)
# ----------------------------------------------------------------------------
def prepare_params(p):
    bf16, f32 = jnp.bfloat16, jnp.float32
    # Selection matrix: pool2 anchor (128*i3 + 4*j3) -> dense index i3*5 + j3
    k = jnp.arange(25)
    anchors = 128 * (k // 5) + 4 * (k % 5)
    sel = jnp.zeros((FLAT, 25), f32).at[anchors, k].set(1.0).astype(bf16)
    return {
        "w1": p["conv1_w"].reshape(6, 25).astype(bf16),                        # (oc, di*5+dj)
        "b1": p["conv1_b"].reshape(6, 1).astype(f32),
        "w2": p["conv2_w"].transpose(0, 2, 3, 1).reshape(16, 150).astype(bf16),  # (oc, (di,dj,ci))
        "b2": p["conv2_b"].reshape(16, 1).astype(f32),
        "sel": sel,
        "wf1": p["fc1_w"].reshape(120, 16, 25).transpose(1, 2, 0).astype(bf16),  # (c, k, out)
        "bf1": p["fc1_b"].reshape(1, 120).astype(f32),
        "wf2": p["fc2_w"].T.astype(bf16),                                      # (120, 84)
        "bf2": p["fc2_b"].reshape(1, 84).astype(f32),
        "wf3": p["fc3_w"].T.astype(bf16),                                      # (84, 10)
        "bf3": p["fc3_b"].reshape(1, 10).astype(f32),
    }


# ----------------------------------------------------------------------------
# Forward pass: single fused pallas_call, grid over batch ("parallel")
# ----------------------------------------------------------------------------
@jax.jit
def net_forward(prepped, x):
    # x: (N, 1, 32, 32) NCHW, 32x32 required by fc1 (16*5*5)
    n = x.shape[0]
    xflat = x.reshape(n, 1, FLAT).astype(jnp.float32)
    xflat = jnp.pad(xflat, ((0, 0), (0, 0), (0, X_PAD - FLAT)))

    def full(a):  # whole-array VMEM-resident block (constant index map)
        return pl.BlockSpec(a.shape, lambda i, _nd=a.ndim: (0,) * _nd)

    w = prepped
    out = pl.pallas_call(
        _lenet_kernel,
        out_shape=jax.ShapeDtypeStruct((n, 1, 10), jnp.float32),
        grid=(n,),
        in_specs=[
            pl.BlockSpec((1, 1, X_PAD), lambda i: (i, 0, 0)),
            full(w["w1"]), full(w["b1"]), full(w["w2"]), full(w["b2"]),
            full(w["sel"]), full(w["wf1"]), full(w["bf1"]),
            full(w["wf2"]), full(w["bf2"]), full(w["wf3"]), full(w["bf3"]),
        ],
        out_specs=pl.BlockSpec((1, 1, 10), lambda i: (i, 0, 0)),
        scratch_shapes=[
            pltpu.VMEM((25, FLAT), jnp.float32),    # conv1 patch matrix
            pltpu.VMEM((6, C1_PAD), jnp.float32),   # conv1 output (padded)
            pltpu.VMEM((6, P1_PAD), jnp.float32),   # pool1 output (padded)
            pltpu.VMEM((150, FLAT), jnp.float32),   # conv2 patch matrix
            pltpu.VMEM((16, C2_PAD), jnp.float32),  # conv2 output (padded)
        ],
        compiler_params=pltpu.CompilerParams(
            dimension_semantics=("parallel",)),
    )(xflat, w["w1"], w["b1"], w["w2"], w["b2"], w["sel"],
      w["wf1"], w["bf1"], w["wf2"], w["bf2"], w["wf3"], w["bf3"])
    return out.reshape(n, 10)


# ----------------------------------------------------------------------------
# Parameter init (PyTorch-style uniform) and pure-JAX reference for checking
# ----------------------------------------------------------------------------
def init_params(key):
    ks = jax.random.split(key, 10)

    def u(k, shape, fan_in):
        bound = 1.0 / jnp.sqrt(fan_in)
        return jax.random.uniform(k, shape, jnp.float32, -bound, bound)

    return {
        "conv1_w": u(ks[0], (6, 1, 5, 5), 1 * 5 * 5),
        "conv1_b": u(ks[1], (6,), 1 * 5 * 5),
        "conv2_w": u(ks[2], (16, 6, 5, 5), 6 * 5 * 5),
        "conv2_b": u(ks[3], (16,), 6 * 5 * 5),
        "fc1_w": u(ks[4], (120, 16 * 5 * 5), 16 * 5 * 5),
        "fc1_b": u(ks[5], (120,), 16 * 5 * 5),
        "fc2_w": u(ks[6], (84, 120), 120),
        "fc2_b": u(ks[7], (84,), 120),
        "fc3_w": u(ks[8], (10, 84), 84),
        "fc3_b": u(ks[9], (10,), 84),
    }


def net_forward_reference(p, x):
    dn = ("NCHW", "OIHW", "NCHW")
    c1 = jax.lax.conv_general_dilated(x, p["conv1_w"], (1, 1), "VALID",
                                      dimension_numbers=dn)
    c1 = jax.nn.relu(c1 + p["conv1_b"].reshape(1, 6, 1, 1))
    s2 = jax.lax.reduce_window(c1, -jnp.inf, jax.lax.max,
                               (1, 1, 2, 2), (1, 1, 2, 2), "VALID")
    c3 = jax.lax.conv_general_dilated(s2, p["conv2_w"], (1, 1), "VALID",
                                      dimension_numbers=dn)
    c3 = jax.nn.relu(c3 + p["conv2_b"].reshape(1, 16, 1, 1))
    s4 = jax.lax.reduce_window(c3, -jnp.inf, jax.lax.max,
                               (1, 1, 2, 2), (1, 1, 2, 2), "VALID")
    s4 = s4.reshape(s4.shape[0], -1)
    f5 = jax.nn.relu(s4 @ p["fc1_w"].T + p["fc1_b"])
    f6 = jax.nn.relu(f5 @ p["fc2_w"].T + p["fc2_b"])
    return f6 @ p["fc3_w"].T + p["fc3_b"]


if __name__ == "__main__":
    key = jax.random.PRNGKey(0)
    pkey, xkey = jax.random.split(key)
    params = init_params(pkey)
    prepped = prepare_params(params)
    x = jax.random.normal(xkey, (2, 1, 32, 32), dtype=jnp.float32)  # NCHW

    out = net_forward(prepped, x)
    jax.block_until_ready(out)
    assert out.shape == (2, 10)

    # Numerical check vs. pure-JAX reference (loose tolerance for bf16 matmuls)
    ref = net_forward_reference(params, x)
    assert jnp.allclose(out, ref, rtol=0.1, atol=0.1), (
        f"max abs err {jnp.max(jnp.abs(out - ref))}")

    print("KERNEL_OK")
</pallas_src>

<mosaic_0001>
module attributes {stable_mosaic.version = 11 : i64} {
  func.func @_lenet_kernel(%arg0: i32, %arg1: memref<1x1x1184xf32, #tpu.memory_space<vmem>>, %arg2: memref<6x25xbf16, #tpu.memory_space<vmem>>, %arg3: memref<6x1xf32, #tpu.memory_space<vmem>>, %arg4: memref<16x150xbf16, #tpu.memory_space<vmem>>, %arg5: memref<16x1xf32, #tpu.memory_space<vmem>>, %arg6: memref<1024x25xbf16, #tpu.memory_space<vmem>>, %arg7: memref<16x25x120xbf16, #tpu.memory_space<vmem>>, %arg8: memref<1x120xf32, #tpu.memory_space<vmem>>, %arg9: memref<120x84xbf16, #tpu.memory_space<vmem>>, %arg10: memref<1x84xf32, #tpu.memory_space<vmem>>, %arg11: memref<84x10xbf16, #tpu.memory_space<vmem>>, %arg12: memref<1x10xf32, #tpu.memory_space<vmem>>, %arg13: memref<1x1x10xf32, #tpu.memory_space<vmem>>, %arg14: memref<25x1024xf32, #tpu.memory_space<vmem>>, %arg15: memref<6x1152xf32, #tpu.memory_space<vmem>>, %arg16: memref<6x1408xf32, #tpu.memory_space<vmem>>, %arg17: memref<150x1024xf32, #tpu.memory_space<vmem>>, %arg18: memref<16x1152xf32, #tpu.memory_space<vmem>>) attributes {dimension_semantics = [#tpu.dimension_semantics<parallel>], iteration_bounds = array<i64: 2>, scalar_prefetch = 0 : i64, scratch_operands = 5 : i64, tpu.core_type = #tpu.core_type<tc>, window_params = [{transform_indices = @transform_0, window_bounds = array<i64: 1, 1, 1184>}, {pipeline_mode = #tpu.pipeline_mode<synchronous>, transform_indices = @transform_1, window_bounds = array<i64: 6, 25>}, {pipeline_mode = #tpu.pipeline_mode<synchronous>, transform_indices = @transform_2, window_bounds = array<i64: 6, 1>}, {pipeline_mode = #tpu.pipeline_mode<synchronous>, transform_indices = @transform_3, window_bounds = array<i64: 16, 150>}, {pipeline_mode = #tpu.pipeline_mode<synchronous>, transform_indices = @transform_4, window_bounds = array<i64: 16, 1>}, {pipeline_mode = #tpu.pipeline_mode<synchronous>, transform_indices = @transform_5, window_bounds = array<i64: 1024, 25>}, {pipeline_mode = #tpu.pipeline_mode<synchronous>, transform_indices = @transform_6, window_bounds = array<i64: 16, 25, 120>}, {pipeline_mode = #tpu.pipeline_mode<synchronous>, transform_indices = @transform_7, window_bounds = array<i64: 1, 120>}, {pipeline_mode = #tpu.pipeline_mode<synchronous>, transform_indices = @transform_8, window_bounds = array<i64: 120, 84>}, {pipeline_mode = #tpu.pipeline_mode<synchronous>, transform_indices = @transform_9, window_bounds = array<i64: 1, 84>}, {pipeline_mode = #tpu.pipeline_mode<synchronous>, transform_indices = @transform_10, window_bounds = array<i64: 84, 10>}, {pipeline_mode = #tpu.pipeline_mode<synchronous>, transform_indices = @transform_11, window_bounds = array<i64: 1, 10>}, {transform_indices = @transform_12, window_bounds = array<i64: 1, 1, 10>}]} {
    %c0 = arith.constant 0 : index
    %c0_0 = arith.constant 0 : index
    %c0_1 = arith.constant 0 : index
    %0 = vector.load %arg1[%c0, %c0_0, %c0_1] : memref<1x1x1184xf32, #tpu.memory_space<vmem>>, vector<1x1x1184xf32>
    %1 = vector.shape_cast %0 : vector<1x1x1184xf32> to vector<1x1184xf32>
    %2 = vector.extract_strided_slice %1 {offsets = [0, 0], sizes = [1, 1024], strides = [1, 1]} : vector<1x1184xf32> to vector<1x1024xf32>
    %c0_2 = arith.constant 0 : index
    %c0_3 = arith.constant 0 : index
    %3 = vector.load %arg14[%c0_2, %c0_3] : memref<25x1024xf32, #tpu.memory_space<vmem>>, vector<1x1024xf32>
    tpu.vector_store %arg14[%c0_2, %c0_3], %2 {strides = array<i32>} : memref<25x1024xf32, #tpu.memory_space<vmem>>, vector<1x1024xf32>,
    %4 = vector.extract_strided_slice %1 {offsets = [0, 1], sizes = [1, 1024], strides = [1, 1]} : vector<1x1184xf32> to vector<1x1024xf32>
    %c1 = arith.constant 1 : index
    %c0_4 = arith.constant 0 : index
    %5 = vector.load %arg14[%c1, %c0_4] : memref<25x1024xf32, #tpu.memory_space<vmem>>, vector<1x1024xf32>
    tpu.vector_store %arg14[%c1, %c0_4], %4 {strides = array<i32>} : memref<25x1024xf32, #tpu.memory_space<vmem>>, vector<1x1024xf32>,
    %6 = vector.extract_strided_slice %1 {offsets = [0, 2], sizes = [1, 1024], strides = [1, 1]} : vector<1x1184xf32> to vector<1x1024xf32>
    %c2 = arith.constant 2 : index
    %c0_5 = arith.constant 0 : index
    %7 = vector.load %arg14[%c2, %c0_5] : memref<25x1024xf32, #tpu.memory_space<vmem>>, vector<1x1024xf32>
    tpu.vector_store %arg14[%c2, %c0_5], %6 {strides = array<i32>} : memref<25x1024xf32, #tpu.memory_space<vmem>>, vector<1x1024xf32>,
    %8 = vector.extract_strided_slice %1 {offsets = [0, 3], sizes = [1, 1024], strides = [1, 1]} : vector<1x1184xf32> to vector<1x1024xf32>
    %c3 = arith.constant 3 : index
    %c0_6 = arith.constant 0 : index
    %9 = vector.load %arg14[%c3, %c0_6] : memref<25x1024xf32, #tpu.memory_space<vmem>>, vector<1x1024xf32>
    tpu.vector_store %arg14[%c3, %c0_6], %8 {strides = array<i32>} : memref<25x1024xf32, #tpu.memory_space<vmem>>, vector<1x1024xf32>,
    %10 = vector.extract_strided_slice %1 {offsets = [0, 4], sizes = [1, 1024], strides = [1, 1]} : vector<1x1184xf32> to vector<1x1024xf32>
    %c4 = arith.constant 4 : index
    %c0_7 = arith.constant 0 : index
    %11 = vector.load %arg14[%c4, %c0_7] : memref<25x1024xf32, #tpu.memory_space<vmem>>, vector<1x1024xf32>
    tpu.vector_store %arg14[%c4, %c0_7], %10 {strides = array<i32>} : memref<25x1024xf32, #tpu.memory_space<vmem>>, vector<1x1024xf32>,
    %12 = vector.extract_strided_slice %1 {offsets = [0, 32], sizes = [1, 1024], strides = [1, 1]} : vector<1x1184xf32> to vector<1x1024xf32>
    %c5 = arith.constant 5 : index
    %c0_8 = arith.constant 0 : index
    %13 = vector.load %arg14[%c5, %c0_8] : memref<25x1024xf32, #tpu.memory_space<vmem>>, vector<1x1024xf32>
    tpu.vector_store %arg14[%c5, %c0_8], %12 {strides = array<i32>} : memref<25x1024xf32, #tpu.memory_space<vmem>>, vector<1x1024xf32>,
    %14 = vector.extract_strided_slice %1 {offsets = [0, 33], sizes = [1, 1024], strides = [1, 1]} : vector<1x1184xf32> to vector<1x1024xf32>
    %c6 = arith.constant 6 : index
    %c0_9 = arith.constant 0 : index
    %15 = vector.load %arg14[%c6, %c0_9] : memref<25x1024xf32, #tpu.memory_space<vmem>>, vector<1x1024xf32>
    tpu.vector_store %arg14[%c6, %c0_9], %14 {strides = array<i32>} : memref<25x1024xf32, #tpu.memory_space<vmem>>, vector<1x1024xf32>,
    %16 = vector.extract_strided_slice %1 {offsets = [0, 34], sizes = [1, 1024], strides = [1, 1]} : vector<1x1184xf32> to vector<1x1024xf32>
    %c7 = arith.constant 7 : index
    %c0_10 = arith.constant 0 : index
    %17 = vector.load %arg14[%c7, %c0_10] : memref<25x1024xf32, #tpu.memory_space<vmem>>, vector<1x1024xf32>
    tpu.vector_store %arg14[%c7, %c0_10], %16 {strides = array<i32>} : memref<25x1024xf32, #tpu.memory_space<vmem>>, vector<1x1024xf32>,
    %18 = vector.extract_strided_slice %1 {offsets = [0, 35], sizes = [1, 1024], strides = [1, 1]} : vector<1x1184xf32> to vector<1x1024xf32>
    %c8 = arith.constant 8 : index
    %c0_11 = arith.constant 0 : index
    %19 = vector.load %arg14[%c8, %c0_11] : memref<25x1024xf32, #tpu.memory_space<vmem>>, vector<1x1024xf32>
    tpu.vector_store %arg14[%c8, %c0_11], %18 {strides = array<i32>} : memref<25x1024xf32, #tpu.memory_space<vmem>>, vector<1x1024xf32>,
    %20 = vector.extract_strided_slice %1 {offsets = [0, 36], sizes = [1, 1024], strides = [1, 1]} : vector<1x1184xf32> to vector<1x1024xf32>
    %c9 = arith.constant 9 : index
    %c0_12 = arith.constant 0 : index
    %21 = vector.load %arg14[%c9, %c0_12] : memref<25x1024xf32, #tpu.memory_space<vmem>>, vector<1x1024xf32>
    tpu.vector_store %arg14[%c9, %c0_12], %20 {strides = array<i32>} : memref<25x1024xf32, #tpu.memory_space<vmem>>, vector<1x1024xf32>,
    %22 = vector.extract_strided_slice %1 {offsets = [0, 64], sizes = [1, 1024], strides = [1, 1]} : vector<1x1184xf32> to vector<1x1024xf32>
    %c10 = arith.constant 10 : index
    %c0_13 = arith.constant 0 : index
    %23 = vector.load %arg14[%c10, %c0_13] : memref<25x1024xf32, #tpu.memory_space<vmem>>, vector<1x1024xf32>
    tpu.vector_store %arg14[%c10, %c0_13], %22 {strides = array<i32>} : memref<25x1024xf32, #tpu.memory_space<vmem>>, vector<1x1024xf32>,
    %24 = vector.extract_strided_slice %1 {offsets = [0, 65], sizes = [1, 1024], strides = [1, 1]} : vector<1x1184xf32> to vector<1x1024xf32>
    %c11 = arith.constant 11 : index
    %c0_14 = arith.constant 0 : index
    %25 = vector.load %arg14[%c11, %c0_14] : memref<25x1024xf32, #tpu.memory_space<vmem>>, vector<1x1024xf32>
    tpu.vector_store %arg14[%c11, %c0_14], %24 {strides = array<i32>} : memref<25x1024xf32, #tpu.memory_space<vmem>>, vector<1x1024xf32>,
    %26 = vector.extract_strided_slice %1 {offsets = [0, 66], sizes = [1, 1024], strides = [1, 1]} : vector<1x1184xf32> to vector<1x1024xf32>
    %c12 = arith.constant 12 : index
    %c0_15 = arith.constant 0 : index
    %27 = vector.load %arg14[%c12, %c0_15] : memref<25x1024xf32, #tpu.memory_space<vmem>>, vector<1x1024xf32>
    tpu.vector_store %arg14[%c12, %c0_15], %26 {strides = array<i32>} : memref<25x1024xf32, #tpu.memory_space<vmem>>, vector<1x1024xf32>,
    %28 = vector.extract_strided_slice %1 {offsets = [0, 67], sizes = [1, 1024], strides = [1, 1]} : vector<1x1184xf32> to vector<1x1024xf32>
    %c13 = arith.constant 13 : index
    %c0_16 = arith.constant 0 : index
    %29 = vector.load %arg14[%c13, %c0_16] : memref<25x1024xf32, #tpu.memory_space<vmem>>, vector<1x1024xf32>
    tpu.vector_store %arg14[%c13, %c0_16], %28 {strides = array<i32>} : memref<25x1024xf32, #tpu.memory_space<vmem>>, vector<1x1024xf32>,
    %30 = vector.extract_strided_slice %1 {offsets = [0, 68], sizes = [1, 1024], strides = [1, 1]} : vector<1x1184xf32> to vector<1x1024xf32>
    %c14 = arith.constant 14 : index
    %c0_17 = arith.constant 0 : index
    %31 = vector.load %arg14[%c14, %c0_17] : memref<25x1024xf32, #tpu.memory_space<vmem>>, vector<1x1024xf32>
    tpu.vector_store %arg14[%c14, %c0_17], %30 {strides = array<i32>} : memref<25x1024xf32, #tpu.memory_space<vmem>>, vector<1x1024xf32>,
    %32 = vector.extract_strided_slice %1 {offsets = [0, 96], sizes = [1, 1024], strides = [1, 1]} : vector<1x1184xf32> to vector<1x1024xf32>
    %c15 = arith.constant 15 : index
    %c0_18 = arith.constant 0 : index
    %33 = vector.load %arg14[%c15, %c0_18] : memref<25x1024xf32, #tpu.memory_space<vmem>>, vector<1x1024xf32>
    tpu.vector_store %arg14[%c15, %c0_18], %32 {strides = array<i32>} : memref<25x1024xf32, #tpu.memory_space<vmem>>, vector<1x1024xf32>,
    %34 = vector.extract_strided_slice %1 {offsets = [0, 97], sizes = [1, 1024], strides = [1, 1]} : vector<1x1184xf32> to vector<1x1024xf32>
    %c16 = arith.constant 16 : index
    %c0_19 = arith.constant 0 : index
    %35 = vector.load %arg14[%c16, %c0_19] : memref<25x1024xf32, #tpu.memory_space<vmem>>, vector<1x1024xf32>
    tpu.vector_store %arg14[%c16, %c0_19], %34 {strides = array<i32>} : memref<25x1024xf32, #tpu.memory_space<vmem>>, vector<1x1024xf32>,
    %36 = vector.extract_strided_slice %1 {offsets = [0, 98], sizes = [1, 1024], strides = [1, 1]} : vector<1x1184xf32> to vector<1x1024xf32>
    %c17 = arith.constant 17 : index
    %c0_20 = arith.constant 0 : index
    %37 = vector.load %arg14[%c17, %c0_20] : memref<25x1024xf32, #tpu.memory_space<vmem>>, vector<1x1024xf32>
    tpu.vector_store %arg14[%c17, %c0_20], %36 {strides = array<i32>} : memref<25x1024xf32, #tpu.memory_space<vmem>>, vector<1x1024xf32>,
    %38 = vector.extract_strided_slice %1 {offsets = [0, 99], sizes = [1, 1024], strides = [1, 1]} : vector<1x1184xf32> to vector<1x1024xf32>
    %c18 = arith.constant 18 : index
    %c0_21 = arith.constant 0 : index
    %39 = vector.load %arg14[%c18, %c0_21] : memref<25x1024xf32, #tpu.memory_space<vmem>>, vector<1x1024xf32>
    tpu.vector_store %arg14[%c18, %c0_21], %38 {strides = array<i32>} : memref<25x1024xf32, #tpu.memory_space<vmem>>, vector<1x1024xf32>,
    %40 = vector.extract_strided_slice %1 {offsets = [0, 100], sizes = [1, 1024], strides = [1, 1]} : vector<1x1184xf32> to vector<1x1024xf32>
    %c19 = arith.constant 19 : index
    %c0_22 = arith.constant 0 : index
    %41 = vector.load %arg14[%c19, %c0_22] : memref<25x1024xf32, #tpu.memory_space<vmem>>, vector<1x1024xf32>
    tpu.vector_store %arg14[%c19, %c0_22], %40 {strides = array<i32>} : memref<25x1024xf32, #tpu.memory_space<vmem>>, vector<1x1024xf32>,
    %42 = vector.extract_strided_slice %1 {offsets = [0, 128], sizes = [1, 1024], strides = [1, 1]} : vector<1x1184xf32> to vector<1x1024xf32>
    %c20 = arith.constant 20 : index
    %c0_23 = arith.constant 0 : index
    %43 = vector.load %arg14[%c20, %c0_23] : memref<25x1024xf32, #tpu.memory_space<vmem>>, vector<1x1024xf32>
    tpu.vector_store %arg14[%c20, %c0_23], %42 {strides = array<i32>} : memref<25x1024xf32, #tpu.memory_space<vmem>>, vector<1x1024xf32>,
    %44 = vector.extract_strided_slice %1 {offsets = [0, 129], sizes = [1, 1024], strides = [1, 1]} : vector<1x1184xf32> to vector<1x1024xf32>
    %c21 = arith.constant 21 : index
    %c0_24 = arith.constant 0 : index
    %45 = vector.load %arg14[%c21, %c0_24] : memref<25x1024xf32, #tpu.memory_space<vmem>>, vector<1x1024xf32>
    tpu.vector_store %arg14[%c21, %c0_24], %44 {strides = array<i32>} : memref<25x1024xf32, #tpu.memory_space<vmem>>, vector<1x1024xf32>,
    %46 = vector.extract_strided_slice %1 {offsets = [0, 130], sizes = [1, 1024], strides = [1, 1]} : vector<1x1184xf32> to vector<1x1024xf32>
    %c22 = arith.constant 22 : index
    %c0_25 = arith.constant 0 : index
    %47 = vector.load %arg14[%c22, %c0_25] : memref<25x1024xf32, #tpu.memory_space<vmem>>, vector<1x1024xf32>
    tpu.vector_store %arg14[%c22, %c0_25], %46 {strides = array<i32>} : memref<25x1024xf32, #tpu.memory_space<vmem>>, vector<1x1024xf32>,
    %48 = vector.extract_strided_slice %1 {offsets = [0, 131], sizes = [1, 1024], strides = [1, 1]} : vector<1x1184xf32> to vector<1x1024xf32>
    %c23 = arith.constant 23 : index
    %c0_26 = arith.constant 0 : index
    %49 = vector.load %arg14[%c23, %c0_26] : memref<25x1024xf32, #tpu.memory_space<vmem>>, vector<1x1024xf32>
    tpu.vector_store %arg14[%c23, %c0_26], %48 {strides = array<i32>} : memref<25x1024xf32, #tpu.memory_space<vmem>>, vector<1x1024xf32>,
    %50 = vector.extract_strided_slice %1 {offsets = [0, 132], sizes = [1, 1024], strides = [1, 1]} : vector<1x1184xf32> to vector<1x1024xf32>
    %c24 = arith.constant 24 : index
    %c0_27 = arith.constant 0 : index
    %51 = vector.load %arg14[%c24, %c0_27] : memref<25x1024xf32, #tpu.memory_space<vmem>>, vector<1x1024xf32>
    tpu.vector_store %arg14[%c24, %c0_27], %50 {strides = array<i32>} : memref<25x1024xf32, #tpu.memory_space<vmem>>, vector<1x1024xf32>,
    %c0_28 = arith.constant 0 : index
    %c0_29 = arith.constant 0 : index
    %52 = vector.load %arg2[%c0_28, %c0_29] : memref<6x25xbf16, #tpu.memory_space<vmem>>, vector<6x25xbf16>
    %c0_30 = arith.constant 0 : index
    %c0_31 = arith.constant 0 : index
    %53 = vector.load %arg14[%c0_30, %c0_31] : memref<25x1024xf32, #tpu.memory_space<vmem>>, vector<25x1024xf32>
    %54 = arith.truncf %53 : vector<25x1024xf32> to vector<25x1024xbf16>
    %cst = arith.constant dense<0.000000e+00> : vector<6x1024xf32>
    %55 = tpu.matmul %52, %54, %cst {dimension_numbers = #tpu.dot_dimension_numbers<[1], [0], [0], [1], [0, 0, 1, 1], [], []>} : vector<6x25xbf16>, vector<25x1024xbf16>, vector<6x1024xf32> -> vector<6x1024xf32>
    %c0_32 = arith.constant 0 : index
    %c0_33 = arith.constant 0 : index
    %56 = vector.load %arg3[%c0_32, %c0_33] : memref<6x1xf32, #tpu.memory_space<vmem>>, vector<6x1xf32>
    %57 = vector.broadcast %56 : vector<6x1xf32> to vector<6x1024xf32>
    %58 = arith.addf %55, %57 : vector<6x1024xf32>
    %cst_34 = arith.constant 0.000000e+00 : f32
    %59 = vector.broadcast %cst_34 : f32 to vector<6x1024xf32>
    %60 = arith.maximumf %58, %59 : vector<6x1024xf32>
    %c0_35 = arith.constant 0 : index
    %c0_36 = arith.constant 0 : index
    %61 = vector.load %arg15[%c0_35, %c0_36] : memref<6x1152xf32, #tpu.memory_space<vmem>>, vector<6x1024xf32>
    tpu.vector_store %arg15[%c0_35, %c0_36], %60 {strides = array<i32>} : memref<6x1152xf32, #tpu.memory_space<vmem>>, vector<6x1024xf32>,
    %cst_37 = arith.constant 0.000000e+00 : f32
    %62 = vector.broadcast %cst_37 : f32 to vector<6x128xf32>
    %c0_38 = arith.constant 0 : index
    %c1024 = arith.constant 1024 : index
    %63 = vector.load %arg15[%c0_38, %c1024] : memref<6x1152xf32, #tpu.memory_space<vmem>>, vector<6x128xf32>
    tpu.vector_store %arg15[%c0_38, %c1024], %62 {strides = array<i32>} : memref<6x1152xf32, #tpu.memory_space<vmem>>, vector<6x128xf32>,
    %c0_39 = arith.constant 0 : index
    %c0_40 = arith.constant 0 : index
    %64 = vector.load %arg15[%c0_39, %c0_40] : memref<6x1152xf32, #tpu.memory_space<vmem>>, vector<6x1024xf32>
    %c0_41 = arith.constant 0 : index
    %c1_42 = arith.constant 1 : index
    %65 = vector.load %arg15[%c0_41, %c1_42] : memref<6x1152xf32, #tpu.memory_space<vmem>>, vector<6x1024xf32>
    %66 = arith.maximumf %64, %65 : vector<6x1024xf32>
    %c0_43 = arith.constant 0 : index
    %c32 = arith.constant 32 : index
    %67 = vector.load %arg15[%c0_43, %c32] : memref<6x1152xf32, #tpu.memory_space<vmem>>, vector<6x1024xf32>
    %c0_44 = arith.constant 0 : index
    %c33 = arith.constant 33 : index
    %68 = vector.load %arg15[%c0_44, %c33] : memref<6x1152xf32, #tpu.memory_space<vmem>>, vector<6x1024xf32>
    %69 = arith.maximumf %67, %68 : vector<6x1024xf32>
    %70 = arith.maximumf %66, %69 : vector<6x1024xf32>
    %c0_45 = arith.constant 0 : index
    %c0_46 = arith.constant 0 : index
    %71 = vector.load %arg16[%c0_45, %c0_46] : memref<6x1408xf32, #tpu.memory_space<vmem>>, vector<6x1024xf32>
    tpu.vector_store %arg16[%c0_45, %c0_46], %70 {strides = array<i32>} : memref<6x1408xf32, #tpu.memory_space<vmem>>, vector<6x1024xf32>,
    %cst_47 = arith.constant 0.000000e+00 : f32
    %72 = vector.broadcast %cst_47 : f32 to vector<6x384xf32>
    %c0_48 = arith.constant 0 : index
    %c1024_49 = arith.constant 1024 : index
    %73 = vector.load %arg16[%c0_48, %c1024_49] : memref<6x1408xf32, #tpu.memory_space<vmem>>, vector<6x384xf32>
    tpu.vector_store %arg16[%c0_48, %c1024_49], %72 {strides = array<i32>} : memref<6x1408xf32, #tpu.memory_space<vmem>>, vector<6x384xf32>,
    %c0_50 = arith.constant 0 : index
    %c0_51 = arith.constant 0 : index
    %74 = vector.load %arg16[%c0_50, %c0_51] : memref<6x1408xf32, #tpu.memory_space<vmem>>, vector<6x1024xf32>
    %c0_52 = arith.constant 0 : index
    %c0_53 = arith.constant 0 : index
    %75 = vector.load %arg17[%c0_52, %c0_53] : memref<150x1024xf32, #tpu.memory_space<vmem>>, vector<6x1024xf32>
    tpu.vector_store %arg17[%c0_52, %c0_53], %74 {strides = array<i32>} : memref<150x1024xf32, #tpu.memory_space<vmem>>, vector<6x1024xf32>,
    %c0_54 = arith.constant 0 : index
    %c2_55 = arith.constant 2 : index
    %76 = vector.load %arg16[%c0_54, %c2_55] : memref<6x1408xf32, #tpu.memory_space<vmem>>, vector<6x1024xf32>
    %c6_56 = arith.constant 6 : index
    %c0_57 = arith.constant 0 : index
    %77 = vector.load %arg17[%c6_56, %c0_57] : memref<150x1024xf32, #tpu.memory_space<vmem>>, vector<6x1024xf32>
    tpu.vector_store %arg17[%c6_56, %c0_57], %76 {strides = array<i32>} : memref<150x1024xf32, #tpu.memory_space<vmem>>, vector<6x1024xf32>,
    %c0_58 = arith.constant 0 : index
    %c4_59 = arith.constant 4 : index
    %78 = vector.load %arg16[%c0_58, %c4_59] : memref<6x1408xf32, #tpu.memory_space<vmem>>, vector<6x1024xf32>
    %c12_60 = arith.constant 12 : index
    %c0_61 = arith.constant 0 : index
    %79 = vector.load %arg17[%c12_60, %c0_61] : memref<150x1024xf32, #tpu.memory_space<vmem>>, vector<6x1024xf32>
    tpu.vector_store %arg17[%c12_60, %c0_61], %78 {strides = array<i32>} : memref<150x1024xf32, #tpu.memory_space<vmem>>, vector<6x1024xf32>,
    %c0_62 = arith.constant 0 : index
    %c6_63 = arith.constant 6 : index
    %80 = vector.load %arg16[%c0_62, %c6_63] : memref<6x1408xf32, #tpu.memory_space<vmem>>, vector<6x1024xf32>
    %c18_64 = arith.constant 18 : index
    %c0_65 = arith.constant 0 : index
    %81 = vector.load %arg17[%c18_64, %c0_65] : memref<150x1024xf32, #tpu.memory_space<vmem>>, vector<6x1024xf32>
    tpu.vector_store %arg17[%c18_64, %c0_65], %80 {strides = array<i32>} : memref<150x1024xf32, #tpu.memory_space<vmem>>, vector<6x1024xf32>,
    %c0_66 = arith.constant 0 : index
    %c8_67 = arith.constant 8 : index
    %82 = vector.load %arg16[%c0_66, %c8_67] : memref<6x1408xf32, #tpu.memory_space<vmem>>, vector<6x1024xf32>
    %c24_68 = arith.constant 24 : index
    %c0_69 = arith.constant 0 : index
    %83 = vector.load %arg17[%c24_68, %c0_69] : memref<150x1024xf32, #tpu.memory_space<vmem>>, vector<6x1024xf32>
    tpu.vector_store %arg17[%c24_68, %c0_69], %82 {strides = array<i32>} : memref<150x1024xf32, #tpu.memory_space<vmem>>, vector<6x1024xf32>,
    %c0_70 = arith.constant 0 : index
    %c64 = arith.constant 64 : index
    %84 = vector.load %arg16[%c0_70, %c64] : memref<6x1408xf32, #tpu.memory_space<vmem>>, vector<6x1024xf32>
    %c30 = arith.constant 30 : index
    %c0_71 = arith.constant 0 : index
    %85 = vector.load %arg17[%c30, %c0_71] : memref<150x1024xf32, #tpu.memory_space<vmem>>, vector<6x1024xf32>
    tpu.vector_store %arg17[%c30, %c0_71], %84 {strides = array<i32>} : memref<150x1024xf32, #tpu.memory_space<vmem>>, vector<6x1024xf32>,
    %c0_72 = arith.constant 0 : index
    %c66 = arith.constant 66 : index
    %86 = vector.load %arg16[%c0_72, %c66] : memref<6x1408xf32, #tpu.memory_space<vmem>>, vector<6x1024xf32>
    %c36 = arith.constant 36 : index
    %c0_73 = arith.constant 0 : index
    %87 = vector.load %arg17[%c36, %c0_73] : memref<150x1024xf32, #tpu.memory_space<vmem>>, vector<6x1024xf32>
    tpu.vector_store %arg17[%c36, %c0_73], %86 {strides = array<i32>} : memref<150x1024xf32, #tpu.memory_space<vmem>>, vector<6x1024xf32>,
    %c0_74 = arith.constant 0 : index
    %c68 = arith.constant 68 : index
    %88 = vector.load %arg16[%c0_74, %c68] : memref<6x1408xf32, #tpu.memory_space<vmem>>, vector<6x1024xf32>
    %c42 = arith.constant 42 : index
    %c0_75 = arith.constant 0 : index
    %89 = vector.load %arg17[%c42, %c0_75] : memref<150x1024xf32, #tpu.memory_space<vmem>>, vector<6x1024xf32>
    tpu.vector_store %arg17[%c42, %c0_75], %88 {strides = array<i32>} : memref<150x1024xf32, #tpu.memory_space<vmem>>, vector<6x1024xf32>,
    %c0_76 = arith.constant 0 : index
    %c70 = arith.constant 70 : index
    %90 = vector.load %arg16[%c0_76, %c70] : memref<6x1408xf32, #tpu.memory_space<vmem>>, vector<6x1024xf32>
    %c48 = arith.constant 48 : index
    %c0_77 = arith.constant 0 : index
    %91 = vector.load %arg17[%c48, %c0_77] : memref<150x1024xf32, #tpu.memory_space<vmem>>, vector<6x1024xf32>
    tpu.vector_store %arg17[%c48, %c0_77], %90 {strides = array<i32>} : memref<150x1024xf32, #tpu.memory_space<vmem>>, vector<6x1024xf32>,
    %c0_78 = arith.constant 0 : index
    %c72 = arith.constant 72 : index
    %92 = vector.load %arg16[%c0_78, %c72] : memref<6x1408xf32, #tpu.memory_space<vmem>>, vector<6x1024xf32>
    %c54 = arith.constant 54 : index
    %c0_79 = arith.constant 0 : index
    %93 = vector.load %arg17[%c54, %c0_79] : memref<150x1024xf32, #tpu.memory_space<vmem>>, vector<6x1024xf32>
    tpu.vector_store %arg17[%c54, %c0_79], %92 {strides = array<i32>} : memref<150x1024xf32, #tpu.memory_space<vmem>>, vector<6x1024xf32>,
    %c0_80 = arith.constant 0 : index
    %c128 = arith.constant 128 : index
    %94 = vector.load %arg16[%c0_80, %c128] : memref<6x1408xf32, #tpu.memory_space<vmem>>, vector<6x1024xf32>
    %c60 = arith.constant 60 : index
    %c0_81 = arith.constant 0 : index
    %95 = vector.load %arg17[%c60, %c0_81] : memref<150x1024xf32, #tpu.memory_space<vmem>>, vector<6x1024xf32>
    tpu.vector_store %arg17[%c60, %c0_81], %94 {strides = array<i32>} : memref<150x1024xf32, #tpu.memory_space<vmem>>, vector<6x1024xf32>,
    %c0_82 = arith.constant 0 : index
    %c130 = arith.constant 130 : index
    %96 = vector.load %arg16[%c0_82, %c130] : memref<6x1408xf32, #tpu.memory_space<vmem>>, vector<6x1024xf32>
    %c66_83 = arith.constant 66 : index
    %c0_84 = arith.constant 0 : index
    %97 = vector.load %arg17[%c66_83, %c0_84] : memref<150x1024xf32, #tpu.memory_space<vmem>>, vector<6x1024xf32>
    tpu.vector_store %arg17[%c66_83, %c0_84], %96 {strides = array<i32>} : memref<150x1024xf32, #tpu.memory_space<vmem>>, vector<6x1024xf32>,
    %c0_85 = arith.constant 0 : index
    %c132 = arith.constant 132 : index
    %98 = vector.load %arg16[%c0_85, %c132] : memref<6x1408xf32, #tpu.memory_space<vmem>>, vector<6x1024xf32>
    %c72_86 = arith.constant 72 : index
    %c0_87 = arith.constant 0 : index
    %99 = vector.load %arg17[%c72_86, %c0_87] : memref<150x1024xf32, #tpu.memory_space<vmem>>, vector<6x1024xf32>
    tpu.vector_store %arg17[%c72_86, %c0_87], %98 {strides = array<i32>} : memref<150x1024xf32, #tpu.memory_space<vmem>>, vector<6x1024xf32>,
    %c0_88 = arith.constant 0 : index
    %c134 = arith.constant 134 : index
    %100 = vector.load %arg16[%c0_88, %c134] : memref<6x1408xf32, #tpu.memory_space<vmem>>, vector<6x1024xf32>
    %c78 = arith.constant 78 : index
    %c0_89 = arith.constant 0 : index
    %101 = vector.load %arg17[%c78, %c0_89] : memref<150x1024xf32, #tpu.memory_space<vmem>>, vector<6x1024xf32>
    tpu.vector_store %arg17[%c78, %c0_89], %100 {strides = array<i32>} : memref<150x1024xf32, #tpu.memory_space<vmem>>, vector<6x1024xf32>,
    %c0_90 = arith.constant 0 : index
    %c136 = arith.constant 136 : index
    %102 = vector.load %arg16[%c0_90, %c136] : memref<6x1408xf32, #tpu.memory_space<vmem>>, vector<6x1024xf32>
    %c84 = arith.constant 84 : index
    %c0_91 = arith.constant 0 : index
    %103 = vector.load %arg17[%c84, %c0_91] : memref<150x1024xf32, #tpu.memory_space<vmem>>, vector<6x1024xf32>
    tpu.vector_store %arg17[%c84, %c0_91], %102 {strides = array<i32>} : memref<150x1024xf32, #tpu.memory_space<vmem>>, vector<6x1024xf32>,
    %c0_92 = arith.constant 0 : index
    %c192 = arith.constant 192 : index
    %104 = vector.load %arg16[%c0_92, %c192] : memref<6x1408xf32, #tpu.memory_space<vmem>>, vector<6x1024xf32>
    %c90 = arith.constant 90 : index
    %c0_93 = arith.constant 0 : index
    %105 = vector.load %arg17[%c90, %c0_93] : memref<150x1024xf32, #tpu.memory_space<vmem>>, vector<6x1024xf32>
    tpu.vector_store %arg17[%c90, %c0_93], %104 {strides = array<i32>} : memref<150x1024xf32, #tpu.memory_space<vmem>>, vector<6x1024xf32>,
    %c0_94 = arith.constant 0 : index
    %c194 = arith.constant 194 : index
    %106 = vector.load %arg16[%c0_94, %c194] : memref<6x1408xf32, #tpu.memory_space<vmem>>, vector<6x1024xf32>
    %c96 = arith.constant 96 : index
    %c0_95 = arith.constant 0 : index
    %107 = vector.load %arg17[%c96, %c0_95] : memref<150x1024xf32, #tpu.memory_space<vmem>>, vector<6x1024xf32>
    tpu.vector_store %arg17[%c96, %c0_95], %106 {strides = array<i32>} : memref<150x1024xf32, #tpu.memory_space<vmem>>, vector<6x1024xf32>,
    %c0_96 = arith.constant 0 : index
    %c196 = arith.constant 196 : index
    %108 = vector.load %arg16[%c0_96, %c196] : memref<6x1408xf32, #tpu.memory_space<vmem>>, vector<6x1024xf32>
    %c102 = arith.constant 102 : index
    %c0_97 = arith.constant 0 : index
    %109 = vector.load %arg17[%c102, %c0_97] : memref<150x1024xf32, #tpu.memory_space<vmem>>, vector<6x1024xf32>
    tpu.vector_store %arg17[%c102, %c0_97], %108 {strides = array<i32>} : memref<150x1024xf32, #tpu.memory_space<vmem>>, vector<6x1024xf32>,
    %c0_98 = arith.constant 0 : index
    %c198 = arith.constant 198 : index
    %110 = vector.load %arg16[%c0_98, %c198] : memref<6x1408xf32, #tpu.memory_space<vmem>>, vector<6x1024xf32>
    %c108 = arith.constant 108 : index
    %c0_99 = arith.constant 0 : index
    %111 = vector.load %arg17[%c108, %c0_99] : memref<150x1024xf32, #tpu.memory_space<vmem>>, vector<6x1024xf32>
    tpu.vector_store %arg17[%c108, %c0_99], %110 {strides = array<i32>} : memref<150x1024xf32, #tpu.memory_space<vmem>>, vector<6x1024xf32>,
    %c0_100 = arith.constant 0 : index
    %c200 = arith.constant 200 : index
    %112 = vector.load %arg16[%c0_100, %c200] : memref<6x1408xf32, #tpu.memory_space<vmem>>, vector<6x1024xf32>
    %c114 = arith.constant 114 : index
    %c0_101 = arith.constant 0 : index
    %113 = vector.load %arg17[%c114, %c0_101] : memref<150x1024xf32, #tpu.memory_space<vmem>>, vector<6x1024xf32>
    tpu.vector_store %arg17[%c114, %c0_101], %112 {strides = array<i32>} : memref<150x1024xf32, #tpu.memory_space<vmem>>, vector<6x1024xf32>,
    %c0_102 = arith.constant 0 : index
    %c256 = arith.constant 256 : index
    %114 = vector.load %arg16[%c0_102, %c256] : memref<6x1408xf32, #tpu.memory_space<vmem>>, vector<6x1024xf32>
    %c120 = arith.constant 120 : index
    %c0_103 = arith.constant 0 : index
    %115 = vector.load %arg17[%c120, %c0_103] : memref<150x1024xf32, #tpu.memory_space<vmem>>, vector<6x1024xf32>
    tpu.vector_store %arg17[%c120, %c0_103], %114 {strides = array<i32>} : memref<150x1024xf32, #tpu.memory_space<vmem>>, vector<6x1024xf32>,
    %c0_104 = arith.constant 0 : index
    %c258 = arith.constant 258 : index
    %116 = vector.load %arg16[%c0_104, %c258] : memref<6x1408xf32, #tpu.memory_space<vmem>>, vector<6x1024xf32>
    %c126 = arith.constant 126 : index
    %c0_105 = arith.constant 0 : index
    %117 = vector.load %arg17[%c126, %c0_105] : memref<150x1024xf32, #tpu.memory_space<vmem>>, vector<6x1024xf32>
    tpu.vector_store %arg17[%c126, %c0_105], %116 {strides = array<i32>} : memref<150x1024xf32, #tpu.memory_space<vmem>>, vector<6x1024xf32>,
    %c0_106 = arith.constant 0 : index
    %c260 = arith.constant 260 : index
    %118 = vector.load %arg16[%c0_106, %c260] : memref<6x1408xf32, #tpu.memory_space<vmem>>, vector<6x1024xf32>
    %c132_107 = arith.constant 132 : index
    %c0_108 = arith.constant 0 : index
    %119 = vector.load %arg17[%c132_107, %c0_108] : memref<150x1024xf32, #tpu.memory_space<vmem>>, vector<6x1024xf32>
    tpu.vector_store %arg17[%c132_107, %c0_108], %118 {strides = array<i32>} : memref<150x1024xf32, #tpu.memory_space<vmem>>, vector<6x1024xf32>,
    %c0_109 = arith.constant 0 : index
    %c262 = arith.constant 262 : index
    %120 = vector.load %arg16[%c0_109, %c262] : memref<6x1408xf32, #tpu.memory_space<vmem>>, vector<6x1024xf32>
    %c138 = arith.constant 138 : index
    %c0_110 = arith.constant 0 : index
    %121 = vector.load %arg17[%c138, %c0_110] : memref<150x1024xf32, #tpu.memory_space<vmem>>, vector<6x1024xf32>
    tpu.vector_store %arg17[%c138, %c0_110], %120 {strides = array<i32>} : memref<150x1024xf32, #tpu.memory_space<vmem>>, vector<6x1024xf32>,
    %c0_111 = arith.constant 0 : index
    %c264 = arith.constant 264 : index
    %122 = vector.load %arg16[%c0_111, %c264] : memref<6x1408xf32, #tpu.memory_space<vmem>>, vector<6x1024xf32>
    %c144 = arith.constant 144 : index
    %c0_112 = arith.constant 0 : index
    %123 = vector.load %arg17[%c144, %c0_112] : memref<150x1024xf32, #tpu.memory_space<vmem>>, vector<6x1024xf32>
    tpu.vector_store %arg17[%c144, %c0_112], %122 {strides = array<i32>} : memref<150x1024xf32, #tpu.memory_space<vmem>>, vector<6x1024xf32>,
    %c0_113 = arith.constant 0 : index
    %c0_114 = arith.constant 0 : index
    %124 = vector.load %arg4[%c0_113, %c0_114] : memref<16x150xbf16, #tpu.memory_space<vmem>>, vector<16x150xbf16>
    %c0_115 = arith.constant 0 : index
    %c0_116 = arith.constant 0 : index
    %125 = vector.load %arg17[%c0_115, %c0_116] : memref<150x1024xf32, #tpu.memory_space<vmem>>, vector<150x1024xf32>
    %126 = arith.truncf %125 : vector<150x1024xf32> to vector<150x1024xbf16>
    %cst_117 = arith.constant dense<0.000000e+00> : vector<16x1024xf32>
    %127 = tpu.matmul %124, %126, %cst_117 {dimension_numbers = #tpu.dot_dimension_numbers<[1], [0], [0], [1], [0, 0, 1, 1], [], []>} : vector<16x150xbf16>, vector<150x1024xbf16>, vector<16x1024xf32> -> vector<16x1024xf32>
    %c0_118 = arith.constant 0 : index
    %c0_119 = arith.constant 0 : index
    %128 = vector.load %arg5[%c0_118, %c0_119] : memref<16x1xf32, #tpu.memory_space<vmem>>, vector<16x1xf32>
    %129 = vector.broadcast %128 : vector<16x1xf32> to vector<16x1024xf32>
    %130 = arith.addf %127, %129 : vector<16x1024xf32>
    %cst_120 = arith.constant 0.000000e+00 : f32
    %131 = vector.broadcast %cst_120 : f32 to vector<16x1024xf32>
    %132 = arith.maximumf %130, %131 : vector<16x1024xf32>
    %c0_121 = arith.constant 0 : index
    %c0_122 = arith.constant 0 : index
    %133 = vector.load %arg18[%c0_121, %c0_122] : memref<16x1152xf32, #tpu.memory_space<vmem>>, vector<16x1024xf32>
    tpu.vector_store %arg18[%c0_121, %c0_122], %132 {strides = array<i32>} : memref<16x1152xf32, #tpu.memory_space<vmem>>, vector<16x1024xf32>,
    %cst_123 = arith.constant 0.000000e+00 : f32
    %134 = vector.broadcast %cst_123 : f32 to vector<16x128xf32>
    %c0_124 = arith.constant 0 : index
    %c1024_125 = arith.constant 1024 : index
    %135 = vector.load %arg18[%c0_124, %c1024_125] : memref<16x1152xf32, #tpu.memory_space<vmem>>, vector<16x128xf32>
    tpu.vector_store %arg18[%c0_124, %c1024_125], %134 {strides = array<i32>} : memref<16x1152xf32, #tpu.memory_space<vmem>>, vector<16x128xf32>,
    %c0_126 = arith.constant 0 : index
    %c0_127 = arith.constant 0 : index
    %136 = vector.load %arg18[%c0_126, %c0_127] : memref<16x1152xf32, #tpu.memory_space<vmem>>, vector<16x1024xf32>
    %c0_128 = arith.constant 0 : index
    %c2_129 = arith.constant 2 : index
    %137 = vector.load %arg18[%c0_128, %c2_129] : memref<16x1152xf32, #tpu.memory_space<vmem>>, vector<16x1024xf32>
    %138 = arith.maximumf %136, %137 : vector<16x1024xf32>
    %c0_130 = arith.constant 0 : index
    %c64_131 = arith.constant 64 : index
    %139 = vector.load %arg18[%c0_130, %c64_131] : memref<16x1152xf32, #tpu.memory_space<vmem>>, vector<16x1024xf32>
    %c0_132 = arith.constant 0 : index
    %c66_133 = arith.constant 66 : index
    %140 = vector.load %arg18[%c0_132, %c66_133] : memref<16x1152xf32, #tpu.memory_space<vmem>>, vector<16x1024xf32>
    %141 = arith.maximumf %139, %140 : vector<16x1024xf32>
    %142 = arith.maximumf %138, %141 : vector<16x1024xf32>
    %143 = arith.truncf %142 : vector<16x1024xf32> to vector<16x1024xbf16>
    %c0_134 = arith.constant 0 : index
    %c0_135 = arith.constant 0 : index
    %144 = vector.load %arg6[%c0_134, %c0_135] : memref<1024x25xbf16, #tpu.memory_space<vmem>>, vector<1024x25xbf16>
    %cst_136 = arith.constant dense<0.000000e+00> : vector<16x25xf32>
    %145 = tpu.matmul %143, %144, %cst_136 {dimension_numbers = #tpu.dot_dimension_numbers<[1], [0], [0], [1], [0, 0, 1, 1], [], []>} : vector<16x1024xbf16>, vector<1024x25xbf16>, vector<16x25xf32> -> vector<16x25xf32>
    %146 = arith.truncf %145 : vector<16x25xf32> to vector<16x25xbf16>
    %c0_137 = arith.constant 0 : index
    %c0_138 = arith.constant 0 : index
    %147 = vector.load %arg8[%c0_137, %c0_138] : memref<1x120xf32, #tpu.memory_space<vmem>>, vector<1x120xf32>
    %148 = vector.extract_strided_slice %146 {offsets = [0, 0], sizes = [1, 25], strides = [1, 1]} : vector<16x25xbf16> to vector<1x25xbf16>
    %c0_139 = arith.constant 0 : index
    %c0_140 = arith.constant 0 : index
    %c0_141 = arith.constant 0 : index
    %149 = vector.load %arg7[%c0_139, %c0_140, %c0_141] : memref<16x25x120xbf16, #tpu.memory_space<vmem>>, vector<1x25x120xbf16>
    %150 = vector.shape_cast %149 : vector<1x25x120xbf16> to vector<25x120xbf16>
    %cst_142 = arith.constant dense<0.000000e+00> : vector<1x120xf32>
    %151 = tpu.matmul %148, %150, %cst_142 {dimension_numbers = #tpu.dot_dimension_numbers<[1], [0], [0], [1], [0, 0, 1, 1], [], []>} : vector<1x25xbf16>, vector<25x120xbf16>, vector<1x120xf32> -> vector<1x120xf32>
    %152 = arith.addf %147, %151 : vector<1x120xf32>
    %153 = vector.extract_strided_slice %146 {offsets = [1, 0], sizes = [1, 25], strides = [1, 1]} : vector<16x25xbf16> to vector<1x25xbf16>
    %c1_143 = arith.constant 1 : index
    %c0_144 = arith.constant 0 : index
    %c0_145 = arith.constant 0 : index
    %154 = vector.load %arg7[%c1_143, %c0_144, %c0_145] : memref<16x25x120xbf16, #tpu.memory_space<vmem>>, vector<1x25x120xbf16>
    %155 = vector.shape_cast %154 : vector<1x25x120xbf16> to vector<25x120xbf16>
    %cst_146 = arith.constant dense<0.000000e+00> : vector<1x120xf32>
    %156 = tpu.matmul %153, %155, %cst_146 {dimension_numbers = #tpu.dot_dimension_numbers<[1], [0], [0], [1], [0, 0, 1, 1], [], []>} : vector<1x25xbf16>, vector<25x120xbf16>, vector<1x120xf32> -> vector<1x120xf32>
    %157 = arith.addf %152, %156 : vector<1x120xf32>
    %158 = vector.extract_strided_slice %146 {offsets = [2, 0], sizes = [1, 25], strides = [1, 1]} : vector<16x25xbf16> to vector<1x25xbf16>
    %c2_147 = arith.constant 2 : index
    %c0_148 = arith.constant 0 : index
    %c0_149 = arith.constant 0 : index
    %159 = vector.load %arg7[%c2_147, %c0_148, %c0_149] : memref<16x25x120xbf16, #tpu.memory_space<vmem>>, vector<1x25x120xbf16>
    %160 = vector.shape_cast %159 : vector<1x25x120xbf16> to vector<25x120xbf16>
    %cst_150 = arith.constant dense<0.000000e+00> : vector<1x120xf32>
    %161 = tpu.matmul %158, %160, %cst_150 {dimension_numbers = #tpu.dot_dimension_numbers<[1], [0], [0], [1], [0, 0, 1, 1], [], []>} : vector<1x25xbf16>, vector<25x120xbf16>, vector<1x120xf32> -> vector<1x120xf32>
    %162 = arith.addf %157, %161 : vector<1x120xf32>
    %163 = vector.extract_strided_slice %146 {offsets = [3, 0], sizes = [1, 25], strides = [1, 1]} : vector<16x25xbf16> to vector<1x25xbf16>
    %c3_151 = arith.constant 3 : index
    %c0_152 = arith.constant 0 : index
    %c0_153 = arith.constant 0 : index
    %164 = vector.load %arg7[%c3_151, %c0_152, %c0_153] : memref<16x25x120xbf16, #tpu.memory_space<vmem>>, vector<1x25x120xbf16>
    %165 = vector.shape_cast %164 : vector<1x25x120xbf16> to vector<25x120xbf16>
    %cst_154 = arith.constant dense<0.000000e+00> : vector<1x120xf32>
    %166 = tpu.matmul %163, %165, %cst_154 {dimension_numbers = #tpu.dot_dimension_numbers<[1], [0], [0], [1], [0, 0, 1, 1], [], []>} : vector<1x25xbf16>, vector<25x120xbf16>, vector<1x120xf32> -> vector<1x120xf32>
    %167 = arith.addf %162, %166 : vector<1x120xf32>
    %168 = vector.extract_strided_slice %146 {offsets = [4, 0], sizes = [1, 25], strides = [1, 1]} : vector<16x25xbf16> to vector<1x25xbf16>
    %c4_155 = arith.constant 4 : index
    %c0_156 = arith.constant 0 : index
    %c0_157 = arith.constant 0 : index
    %169 = vector.load %arg7[%c4_155, %c0_156, %c0_157] : memref<16x25x120xbf16, #tpu.memory_space<vmem>>, vector<1x25x120xbf16>
    %170 = vector.shape_cast %169 : vector<1x25x120xbf16> to vector<25x120xbf16>
    %cst_158 = arith.constant dense<0.000000e+00> : vector<1x120xf32>
    %171 = tpu.matmul %168, %170, %cst_158 {dimension_numbers = #tpu.dot_dimension_numbers<[1], [0], [0], [1], [0, 0, 1, 1], [], []>} : vector<1x25xbf16>, vector<25x120xbf16>, vector<1x120xf32> -> vector<1x120xf32>
    %172 = arith.addf %167, %171 : vector<1x120xf32>
    %173 = vector.extract_strided_slice %146 {offsets = [5, 0], sizes = [1, 25], strides = [1, 1]} : vector<16x25xbf16> to vector<1x25xbf16>
    %c5_159 = arith.constant 5 : index
    %c0_160 = arith.constant 0 : index
    %c0_161 = arith.constant 0 : index
    %174 = vector.load %arg7[%c5_159, %c0_160, %c0_161] : memref<16x25x120xbf16, #tpu.memory_space<vmem>>, vector<1x25x120xbf16>
    %175 = vector.shape_cast %174 : vector<1x25x120xbf16> to vector<25x120xbf16>
    %cst_162 = arith.constant dense<0.000000e+00> : vector<1x120xf32>
    %176 = tpu.matmul %173, %175, %cst_162 {dimension_numbers = #tpu.dot_dimension_numbers<[1], [0], [0], [1], [0, 0, 1, 1], [], []>} : vector<1x25xbf16>, vector<25x120xbf16>, vector<1x120xf32> -> vector<1x120xf32>
    %177 = arith.addf %172, %176 : vector<1x120xf32>
    %178 = vector.extract_strided_slice %146 {offsets = [6, 0], sizes = [1, 25], strides = [1, 1]} : vector<16x25xbf16> to vector<1x25xbf16>
    %c6_163 = arith.constant 6 : index
    %c0_164 = arith.constant 0 : index
    %c0_165 = arith.constant 0 : index
    %179 = vector.load %arg7[%c6_163, %c0_164, %c0_165] : memref<16x25x120xbf16, #tpu.memory_space<vmem>>, vector<1x25x120xbf16>
    %180 = vector.shape_cast %179 : vector<1x25x120xbf16> to vector<25x120xbf16>
    %cst_166 = arith.constant dense<0.000000e+00> : vector<1x120xf32>
    %181 = tpu.matmul %178, %180, %cst_166 {dimension_numbers = #tpu.dot_dimension_numbers<[1], [0], [0], [1], [0, 0, 1, 1], [], []>} : vector<1x25xbf16>, vector<25x120xbf16>, vector<1x120xf32> -> vector<1x120xf32>
    %182 = arith.addf %177, %181 : vector<1x120xf32>
    %183 = vector.extract_strided_slice %146 {offsets = [7, 0], sizes = [1, 25], strides = [1, 1]} : vector<16x25xbf16> to vector<1x25xbf16>
    %c7_167 = arith.constant 7 : index
    %c0_168 = arith.constant 0 : index
    %c0_169 = arith.constant 0 : index
    %184 = vector.load %arg7[%c7_167, %c0_168, %c0_169] : memref<16x25x120xbf16, #tpu.memory_space<vmem>>, vector<1x25x120xbf16>
    %185 = vector.shape_cast %184 : vector<1x25x120xbf16> to vector<25x120xbf16>
    %cst_170 = arith.constant dense<0.000000e+00> : vector<1x120xf32>
    %186 = tpu.matmul %183, %185, %cst_170 {dimension_numbers = #tpu.dot_dimension_numbers<[1], [0], [0], [1], [0, 0, 1, 1], [], []>} : vector<1x25xbf16>, vector<25x120xbf16>, vector<1x120xf32> -> vector<1x120xf32>
    %187 = arith.addf %182, %186 : vector<1x120xf32>
    %188 = vector.extract_strided_slice %146 {offsets = [8, 0], sizes = [1, 25], strides = [1, 1]} : vector<16x25xbf16> to vector<1x25xbf16>
    %c8_171 = arith.constant 8 : index
    %c0_172 = arith.constant 0 : index
    %c0_173 = arith.constant 0 : index
    %189 = vector.load %arg7[%c8_171, %c0_172, %c0_173] : memref<16x25x120xbf16, #tpu.memory_space<vmem>>, vector<1x25x120xbf16>
    %190 = vector.shape_cast %189 : vector<1x25x120xbf16> to vector<25x120xbf16>
    %cst_174 = arith.constant dense<0.000000e+00> : vector<1x120xf32>
    %191 = tpu.matmul %188, %190, %cst_174 {dimension_numbers = #tpu.dot_dimension_numbers<[1], [0], [0], [1], [0, 0, 1, 1], [], []>} : vector<1x25xbf16>, vector<25x120xbf16>, vector<1x120xf32> -> vector<1x120xf32>
    %192 = arith.addf %187, %191 : vector<1x120xf32>
    %193 = vector.extract_strided_slice %146 {offsets = [9, 0], sizes = [1, 25], strides = [1, 1]} : vector<16x25xbf16> to vector<1x25xbf16>
    %c9_175 = arith.constant 9 : index
    %c0_176 = arith.constant 0 : index
    %c0_177 = arith.constant 0 : index
    %194 = vector.load %arg7[%c9_175, %c0_176, %c0_177] : memref<16x25x120xbf16, #tpu.memory_space<vmem>>, vector<1x25x120xbf16>
    %195 = vector.shape_cast %194 : vector<1x25x120xbf16> to vector<25x120xbf16>
    %cst_178 = arith.constant dense<0.000000e+00> : vector<1x120xf32>
    %196 = tpu.matmul %193, %195, %cst_178 {dimension_numbers = #tpu.dot_dimension_numbers<[1], [0], [0], [1], [0, 0, 1, 1], [], []>} : vector<1x25xbf16>, vector<25x120xbf16>, vector<1x120xf32> -> vector<1x120xf32>
    %197 = arith.addf %192, %196 : vector<1x120xf32>
    %198 = vector.extract_strided_slice %146 {offsets = [10, 0], sizes = [1, 25], strides = [1, 1]} : vector<16x25xbf16> to vector<1x25xbf16>
    %c10_179 = arith.constant 10 : index
    %c0_180 = arith.constant 0 : index
    %c0_181 = arith.constant 0 : index
    %199 = vector.load %arg7[%c10_179, %c0_180, %c0_181] : memref<16x25x120xbf16, #tpu.memory_space<vmem>>, vector<1x25x120xbf16>
    %200 = vector.shape_cast %199 : vector<1x25x120xbf16> to vector<25x120xbf16>
    %cst_182 = arith.constant dense<0.000000e+00> : vector<1x120xf32>
    %201 = tpu.matmul %198, %200, %cst_182 {dimension_numbers = #tpu.dot_dimension_numbers<[1], [0], [0], [1], [0, 0, 1, 1], [], []>} : vector<1x25xbf16>, vector<25x120xbf16>, vector<1x120xf32> -> vector<1x120xf32>
    %202 = arith.addf %197, %201 : vector<1x120xf32>
    %203 = vector.extract_strided_slice %146 {offsets = [11, 0], sizes = [1, 25], strides = [1, 1]} : vector<16x25xbf16> to vector<1x25xbf16>
    %c11_183 = arith.constant 11 : index
    %c0_184 = arith.constant 0 : index
    %c0_185 = arith.constant 0 : index
    %204 = vector.load %arg7[%c11_183, %c0_184, %c0_185] : memref<16x25x120xbf16, #tpu.memory_space<vmem>>, vector<1x25x120xbf16>
    %205 = vector.shape_cast %204 : vector<1x25x120xbf16> to vector<25x120xbf16>
    %cst_186 = arith.constant dense<0.000000e+00> : vector<1x120xf32>
    %206 = tpu.matmul %203, %205, %cst_186 {dimension_numbers = #tpu.dot_dimension_numbers<[1], [0], [0], [1], [0, 0, 1, 1], [], []>} : vector<1x25xbf16>, vector<25x120xbf16>, vector<1x120xf32> -> vector<1x120xf32>
    %207 = arith.addf %202, %206 : vector<1x120xf32>
    %208 = vector.extract_strided_slice %146 {offsets = [12, 0], sizes = [1, 25], strides = [1, 1]} : vector<16x25xbf16> to vector<1x25xbf16>
    %c12_187 = arith.constant 12 : index
    %c0_188 = arith.constant 0 : index
    %c0_189 = arith.constant 0 : index
    %209 = vector.load %arg7[%c12_187, %c0_188, %c0_189] : memref<16x25x120xbf16, #tpu.memory_space<vmem>>, vector<1x25x120xbf16>
    %210 = vector.shape_cast %209 : vector<1x25x120xbf16> to vector<25x120xbf16>
    %cst_190 = arith.constant dense<0.000000e+00> : vector<1x120xf32>
    %211 = tpu.matmul %208, %210, %cst_190 {dimension_numbers = #tpu.dot_dimension_numbers<[1], [0], [0], [1], [0, 0, 1, 1], [], []>} : vector<1x25xbf16>, vector<25x120xbf16>, vector<1x120xf32> -> vector<1x120xf32>
    %212 = arith.addf %207, %211 : vector<1x120xf32>
    %213 = vector.extract_strided_slice %146 {offsets = [13, 0], sizes = [1, 25], strides = [1, 1]} : vector<16x25xbf16> to vector<1x25xbf16>
    %c13_191 = arith.constant 13 : index
    %c0_192 = arith.constant 0 : index
    %c0_193 = arith.constant 0 : index
    %214 = vector.load %arg7[%c13_191, %c0_192, %c0_193] : memref<16x25x120xbf16, #tpu.memory_space<vmem>>, vector<1x25x120xbf16>
    %215 = vector.shape_cast %214 : vector<1x25x120xbf16> to vector<25x120xbf16>
    %cst_194 = arith.constant dense<0.000000e+00> : vector<1x120xf32>
    %216 = tpu.matmul %213, %215, %cst_194 {dimension_numbers = #tpu.dot_dimension_numbers<[1], [0], [0], [1], [0, 0, 1, 1], [], []>} : vector<1x25xbf16>, vector<25x120xbf16>, vector<1x120xf32> -> vector<1x120xf32>
    %217 = arith.addf %212, %216 : vector<1x120xf32>
    %218 = vector.extract_strided_slice %146 {offsets = [14, 0], sizes = [1, 25], strides = [1, 1]} : vector<16x25xbf16> to vector<1x25xbf16>
    %c14_195 = arith.constant 14 : index
    %c0_196 = arith.constant 0 : index
    %c0_197 = arith.constant 0 : index
    %219 = vector.load %arg7[%c14_195, %c0_196, %c0_197] : memref<16x25x120xbf16, #tpu.memory_space<vmem>>, vector<1x25x120xbf16>
    %220 = vector.shape_cast %219 : vector<1x25x120xbf16> to vector<25x120xbf16>
    %cst_198 = arith.constant dense<0.000000e+00> : vector<1x120xf32>
    %221 = tpu.matmul %218, %220, %cst_198 {dimension_numbers = #tpu.dot_dimension_numbers<[1], [0], [0], [1], [0, 0, 1, 1], [], []>} : vector<1x25xbf16>, vector<25x120xbf16>, vector<1x120xf32> -> vector<1x120xf32>
    %222 = arith.addf %217, %221 : vector<1x120xf32>
    %223 = vector.extract_strided_slice %146 {offsets = [15, 0], sizes = [1, 25], strides = [1, 1]} : vector<16x25xbf16> to vector<1x25xbf16>
    %c15_199 = arith.constant 15 : index
    %c0_200 = arith.constant 0 : index
    %c0_201 = arith.constant 0 : index
    %224 = vector.load %arg7[%c15_199, %c0_200, %c0_201] : memref<16x25x120xbf16, #tpu.memory_space<vmem>>, vector<1x25x120xbf16>
    %225 = vector.shape_cast %224 : vector<1x25x120xbf16> to vector<25x120xbf16>
    %cst_202 = arith.constant dense<0.000000e+00> : vector<1x120xf32>
    %226 = tpu.matmul %223, %225, %cst_202 {dimension_numbers = #tpu.dot_dimension_numbers<[1], [0], [0], [1], [0, 0, 1, 1], [], []>} : vector<1x25xbf16>, vector<25x120xbf16>, vector<1x120xf32> -> vector<1x120xf32>
    %227 = arith.addf %222, %226 : vector<1x120xf32>
    %cst_203 = arith.constant 0.000000e+00 : f32
    %228 = vector.broadcast %cst_203 : f32 to vector<1x120xf32>
    %229 = arith.maximumf %227, %228 : vector<1x120xf32>
    %230 = arith.truncf %229 : vector<1x120xf32> to vector<1x120xbf16>
    %c0_204 = arith.constant 0 : index
    %c0_205 = arith.constant 0 : index
    %231 = vector.load %arg9[%c0_204, %c0_205] : memref<120x84xbf16, #tpu.memory_space<vmem>>, vector<120x84xbf16>
    %cst_206 = arith.constant dense<0.000000e+00> : vector<1x84xf32>
    %232 = tpu.matmul %230, %231, %cst_206 {dimension_numbers = #tpu.dot_dimension_numbers<[1], [0], [0], [1], [0, 0, 1, 1], [], []>} : vector<1x120xbf16>, vector<120x84xbf16>, vector<1x84xf32> -> vector<1x84xf32>
    %c0_207 = arith.constant 0 : index
    %c0_208 = arith.constant 0 : index
    %233 = vector.load %arg10[%c0_207, %c0_208] : memref<1x84xf32, #tpu.memory_space<vmem>>, vector<1x84xf32>
    %234 = arith.addf %232, %233 : vector<1x84xf32>
    %cst_209 = arith.constant 0.000000e+00 : f32
    %235 = vector.broadcast %cst_209 : f32 to vector<1x84xf32>
    %236 = arith.maximumf %234, %235 : vector<1x84xf32>
    %237 = arith.truncf %236 : vector<1x84xf32> to vector<1x84xbf16>
    %c0_210 = arith.constant 0 : index
    %c0_211 = arith.constant 0 : index
    %238 = vector.load %arg11[%c0_210, %c0_211] : memref<84x10xbf16, #tpu.memory_space<vmem>>, vector<84x10xbf16>
    %cst_212 = arith.constant dense<0.000000e+00> : vector<1x10xf32>
    %239 = tpu.matmul %237, %238, %cst_212 {dimension_numbers = #tpu.dot_dimension_numbers<[1], [0], [0], [1], [0, 0, 1, 1], [], []>} : vector<1x84xbf16>, vector<84x10xbf16>, vector<1x10xf32> -> vector<1x10xf32>
    %c0_213 = arith.constant 0 : index
    %c0_214 = arith.constant 0 : index
    %240 = vector.load %arg12[%c0_213, %c0_214] : memref<1x10xf32, #tpu.memory_space<vmem>>, vector<1x10xf32>
    %241 = arith.addf %239, %240 : vector<1x10xf32>
    %242 = vector.shape_cast %241 : vector<1x10xf32> to vector<1x1x10xf32>
    %c0_215 = arith.constant 0 : index
    %c0_216 = arith.constant 0 : index
    %c0_217 = arith.constant 0 : index
    %243 = vector.load %arg13[%c0_215, %c0_216, %c0_217] : memref<1x1x10xf32, #tpu.memory_space<vmem>>, vector<1x1x10xf32>
    tpu.vector_store %arg13[%c0_215, %c0_216, %c0_217], %242 {strides = array<i32>} : memref<1x1x10xf32, #tpu.memory_space<vmem>>, vector<1x1x10xf32>,
    return
  }
  func.func @transform_0(%arg0: i32) -> (i32, i32, i32) {
    %c0_i32 = arith.constant 0 : i32
    %c0_i32_0 = arith.constant 0 : i32
    %c0_i32_1 = arith.constant 0 : i32
    return %arg0, %c0_i32, %c0_i32_0 : i32, i32, i32
  }
  func.func @transform_1(%arg0: i32) -> (i32, i32) {
    %c0_i32 = arith.constant 0 : i32
    %c0_i32_0 = arith.constant 0 : i32
    %c0_i32_1 = arith.constant 0 : i32
    return %c0_i32, %c0_i32_0 : i32, i32
  }
  func.func @transform_2(%arg0: i32) -> (i32, i32) {
    %c0_i32 = arith.constant 0 : i32
    %c0_i32_0 = arith.constant 0 : i32
    %c0_i32_1 = arith.constant 0 : i32
    return %c0_i32, %c0_i32_0 : i32, i32
  }
  func.func @transform_3(%arg0: i32) -> (i32, i32) {
    %c0_i32 = arith.constant 0 : i32
    %c0_i32_0 = arith.constant 0 : i32
    %c0_i32_1 = arith.constant 0 : i32
    return %c0_i32, %c0_i32_0 : i32, i32
  }
  func.func @transform_4(%arg0: i32) -> (i32, i32) {
    %c0_i32 = arith.constant 0 : i32
    %c0_i32_0 = arith.constant 0 : i32
    %c0_i32_1 = arith.constant 0 : i32
    return %c0_i32, %c0_i32_0 : i32, i32
  }
  func.func @transform_5(%arg0: i32) -> (i32, i32) {
    %c0_i32 = arith.constant 0 : i32
    %c0_i32_0 = arith.constant 0 : i32
    %c0_i32_1 = arith.constant 0 : i32
    return %c0_i32, %c0_i32_0 : i32, i32
  }
  func.func @transform_6(%arg0: i32) -> (i32, i32, i32) {
    %c0_i32 = arith.constant 0 : i32
    %c0_i32_0 = arith.constant 0 : i32
    %c0_i32_1 = arith.constant 0 : i32
    %c0_i32_2 = arith.constant 0 : i32
    return %c0_i32, %c0_i32_0, %c0_i32_1 : i32, i32, i32
  }
  func.func @transform_7(%arg0: i32) -> (i32, i32) {
    %c0_i32 = arith.constant 0 : i32
    %c0_i32_0 = arith.constant 0 : i32
    %c0_i32_1 = arith.constant 0 : i32
    return %c0_i32, %c0_i32_0 : i32, i32
  }
  func.func @transform_8(%arg0: i32) -> (i32, i32) {
    %c0_i32 = arith.constant 0 : i32
    %c0_i32_0 = arith.constant 0 : i32
    %c0_i32_1 = arith.constant 0 : i32
    return %c0_i32, %c0_i32_0 : i32, i32
  }
  func.func @transform_9(%arg0: i32) -> (i32, i32) {
    %c0_i32 = arith.constant 0 : i32
    %c0_i32_0 = arith.constant 0 : i32
    %c0_i32_1 = arith.constant 0 : i32
    return %c0_i32, %c0_i32_0 : i32, i32
  }
  func.func @transform_10(%arg0: i32) -> (i32, i32) {
    %c0_i32 = arith.constant 0 : i32
    %c0_i32_0 = arith.constant 0 : i32
    %c0_i32_1 = arith.constant 0 : i32
    return %c0_i32, %c0_i32_0 : i32, i32
  }
  func.func @transform_11(%arg0: i32) -> (i32, i32) {
    %c0_i32 = arith.constant 0 : i32
    %c0_i32_0 = arith.constant 0 : i32
    %c0_i32_1 = arith.constant 0 : i32
    return %c0_i32, %c0_i32_0 : i32, i32
  }
  func.func @transform_12(%arg0: i32) -> (i32, i32, i32) {
    %c0_i32 = arith.constant 0 : i32
    %c0_i32_0 = arith.constant 0 : i32
    %c0_i32_1 = arith.constant 0 : i32
    return %arg0, %c0_i32, %c0_i32_0 : i32, i32, i32
  }
}

</mosaic_0001>

<llo_original>
// kernel: net_forward.1
$region0: #{net_forward.1}
  #allocation0 [shape = 'u32[]', space=smem, size = 0x4, offset = 0x4, fixed_abs, tag = 'smem constant byte address 0x4 - core index']
  #allocation1 [shape = 'u32[144,128]{1,0:T(1,128)}', space=vmem, size = 0x12000, scoped, tag = 'internal scratch']
  #allocation2 [shape = 'f32[25,1024]{1,0:T(8,128)}', space=vmem, size = 0x20000, scoped, tag = 'scratch operand']
  #allocation3 [shape = 'f32[6,1152]{1,0:T(8,128)}', space=vmem, size = 0x9000, scoped, tag = 'scratch operand']
  #allocation4 [shape = 'f32[6,1408]{1,0:T(8,128)}', space=vmem, size = 0xb000, scoped, tag = 'scratch operand']
  #allocation5 [shape = 'f32[150,1024]{1,0:T(8,128)}', space=vmem, size = 0x98000, scoped, tag = 'scratch operand']
  #allocation6 [shape = 'f32[16,1152]{1,0:T(8,128)}', space=vmem, size = 0x12000, scoped, tag = 'scratch operand']
  %s0 = inlined_call_operand.vmem [shape: f32[2,1,1184], index: 0, kind: input, shape index: {}]
  %s1 = inlined_call_operand.vmem [shape: bf16[6,25], index: 1, kind: input, shape index: {}]
  %s2 = inlined_call_operand.vmem [shape: f32[6,1], index: 2, kind: input, shape index: {}]
  %s3 = inlined_call_operand.vmem [shape: bf16[16,150], index: 3, kind: input, shape index: {}]
  %s4 = inlined_call_operand.vmem [shape: f32[16,1], index: 4, kind: input, shape index: {}]
  %s5 = inlined_call_operand.vmem [shape: bf16[1024,25], index: 5, kind: input, shape index: {}]
  %s6 = inlined_call_operand.vmem [shape: bf16[16,25,120], index: 6, kind: input, shape index: {}]
  %s7 = inlined_call_operand.vmem [shape: f32[1,120], index: 7, kind: input, shape index: {}]
  %s8 = inlined_call_operand.vmem [shape: bf16[120,84], index: 8, kind: input, shape index: {}]
  %s9 = inlined_call_operand.vmem [shape: f32[1,84], index: 9, kind: input, shape index: {}]
  %s10 = inlined_call_operand.vmem [shape: bf16[84,10], index: 10, kind: input, shape index: {}]
  %s11 = inlined_call_operand.vmem [shape: f32[1,10], index: 11, kind: input, shape index: {}]
  %s12 = inlined_call_operand.hbm [shape: f32[2,1,10], index: 12, kind: output, shape index: {}]
  %s13 = sld [smem:[#allocation0]]
  $region81: #{net_forward.1} parent=0
    _
  %s15 = ssub.s32 1, %s13
  %s16 = scalar_select 0, %s15, %s13
  $region1: #{net_forward.1} parent=0
    #allocation7 [shape = 'u8[1024]{0}', space=vmem, size = 0x400, scoped, tag = 'output window, operand 0']
    #allocation8 [shape = 's32[2]{0}', space=sflag, size = 0x8, scoped, tag = 'scoped memory for net_forward.1']
    %17 = vsyncpa [#allocation8], 0
    %s18 = scalar_lea.sflag [#allocation8], 1
    %19 = vsyncpa %s18, 0
    loop: start=0, step=1, limit=4
    $region2: #{net_forward.1} parent=1 // loop_pre_header
      _
    $region3: #{net_forward.1} parent=1 // loop_header
      %s21 = sphi 0, %s25
      %p22 = scmp.ge.s32.totalorder %s21, 4
      %s31 = sphi 0, %s33
      %s34 = sphi 0, %s31
      %s35 = sphi 0, %s34
      %s51 = sphi 0, %s35
      %s55 = sphi 0, %s55
      %s57 = sphi 0, %s55
      %s58 = sphi 0, %s57
      %s72 = sphi 0, %s58
      %s76 = sphi 0, %s76
      %s78 = sphi 0, %s76
      %s79 = sphi 0, %s78
      %s93 = sphi 0, %s79
      %s97 = sphi 0, %s97
      %s99 = sphi 0, %s97
      %s100 = sphi 0, %s99
      %s114 = sphi 0, %s100
      %s118 = sphi 0, %s118
      %s120 = sphi 0, %s118
      %s121 = sphi 0, %s120
      %s135 = sphi 0, %s121
      %s139 = sphi 0, %s139
      %s141 = sphi 0, %s139
      %s142 = sphi 0, %s141
      %s156 = sphi 0, %s142
      %s160 = sphi 0, %s160
      %s162 = sphi 0, %s160
      %s163 = sphi 0, %s162
      %s177 = sphi 0, %s163
      %s181 = sphi 0, %s181
      %s183 = sphi 0, %s181
      %s184 = sphi 0, %s183
      %s198 = sphi 0, %s184
      %s202 = sphi 0, %s202
      %s204 = sphi 0, %s202
      %s205 = sphi 0, %s204
      %s219 = sphi 0, %s205
      %s223 = sphi 0, %s223
      %s225 = sphi 0, %s223
      %s226 = sphi 0, %s225
      %s240 = sphi 0, %s226
      %s244 = sphi 0, %s244
      %s246 = sphi 0, %s244
      %s247 = sphi 0, %s246
      %s261 = sphi 0, %s247
      %s265 = sphi 0, %s265
      %s267 = sphi 0, %s265
      %s268 = sphi 0, %s267
      %s282 = sphi 0, %s268
      %s288 = sphi 0, %s290
      %s291 = sphi 0, %s288
      %s292 = sphi 0, %s291
      %s308 = sphi 0, %s292
    $region4: #{net_forward.1} parent=1 // loop_header_branch
      %24 = sbr.rel (%p22) target = $region8
    $region5: #{net_forward.1} parent=1 // loop_body
      %s26 = ssub.s32 %s21, 1
      %s27 = ssub.s32 %s21, 2
      %s28 = sadd.s32 %s21, 1
      %s29 = ssub.s32 %s21, %s28
      %p30 = scmp.eq.s32.totalorder %s29, 0
      %s32 = sadd.s32 %s31, 1
      %s33 = scalar_select %p30, %s31, %s32
      %p36 = pneg %p30
      %p37 = scmp.eq.s32.totalorder %s21, 1
      %p38 = por %p36, %p37
      %p39 = scmp.ne.s32.totalorder %s31, %s34
      %p40 = scmp.eq.s32.totalorder %s21, 0
      %p41 = por %p39, %p40
      %p42 = scmp.ne.s32.totalorder %s31, %s34
      %p43 = scmp.eq.s32.totalorder %s26, 1
      %p44 = por %p42, %p43
      %p45 = scmp.ne.s32.totalorder %s34, %s35
      %p46 = scmp.eq.s32.totalorder %s26, 0
      %p47 = por %p45, %p46
      %p48 = scmp.ne.s32.totalorder %s34, %s35
      %p49 = scmp.eq.s32.totalorder %s27, 1
      %p50 = por %p48, %p49
      %p52 = scmp.ne.s32.totalorder %s35, %s51
      %p53 = scmp.eq.s32.totalorder %s27, 0
      %p54 = por %p52, %p53
      %s56 = sadd.s32 %s55, 1
      %p59 = scmp.eq.s32.totalorder %s21, 1
      %p60 = scmp.ne.s32.totalorder %s55, %s57
      %p61 = scmp.eq.s32.totalorder %s21, 0
      %p62 = por %p60, %p61
      %p63 = scmp.ne.s32.totalorder %s55, %s57
      %p64 = scmp.eq.s32.totalorder %s26, 1
      %p65 = por %p63, %p64
      %p66 = scmp.ne.s32.totalorder %s57, %s58
      %p67 = scmp.eq.s32.totalorder %s26, 0
      %p68 = por %p66, %p67
      %p69 = scmp.ne.s32.totalorder %s57, %s58
      %p70 = scmp.eq.s32.totalorder %s27, 1
      %p71 = por %p69, %p70
      %p73 = scmp.ne.s32.totalorder %s58, %s72
      %p74 = scmp.eq.s32.totalorder %s27, 0
      %p75 = por %p73, %p74
      %s77 = sadd.s32 %s76, 1
      %p80 = scmp.eq.s32.totalorder %s21, 1
      %p81 = scmp.ne.s32.totalorder %s76, %s78
      %p82 = scmp.eq.s32.totalorder %s21, 0
      %p83 = por %p81, %p82
      %p84 = scmp.ne.s32.totalorder %s76, %s78
      %p85 = scmp.eq.s32.totalorder %s26, 1
      %p86 = por %p84, %p85
      %p87 = scmp.ne.s32.totalorder %s78, %s79
      %p88 = scmp.eq.s32.totalorder %s26, 0
      %p89 = por %p87, %p88
      %p90 = scmp.ne.s32.totalorder %s78, %s79
      %p91 = scmp.eq.s32.totalorder %s27, 1
      %p92 = por %p90, %p91
      %p94 = scmp.ne.s32.totalorder %s79, %s93
      %p95 = scmp.eq.s32.totalorder %s27, 0
      %p96 = por %p94, %p95
      %s98 = sadd.s32 %s97, 1
      %p101 = scmp.eq.s32.totalorder %s21, 1
      %p102 = scmp.ne.s32.totalorder %s97, %s99
      %p103 = scmp.eq.s32.totalorder %s21, 0
      %p104 = por %p102, %p103
      %p105 = scmp.ne.s32.totalorder %s97, %s99
      %p106 = scmp.eq.s32.totalorder %s26, 1
      %p107 = por %p105, %p106
      %p108 = scmp.ne.s32.totalorder %s99, %s100
      %p109 = scmp.eq.s32.totalorder %s26, 0
      %p110 = por %p108, %p109
      %p111 = scmp.ne.s32.totalorder %s99, %s100
      %p112 = scmp.eq.s32.totalorder %s27, 1
      %p113 = por %p111, %p112
      %p115 = scmp.ne.s32.totalorder %s100, %s114
      %p116 = scmp.eq.s32.totalorder %s27, 0
      %p117 = por %p115, %p116
      %s119 = sadd.s32 %s118, 1
      %p122 = scmp.eq.s32.totalorder %s21, 1
      %p123 = scmp.ne.s32.totalorder %s118, %s120
      %p124 = scmp.eq.s32.totalorder %s21, 0
      %p125 = por %p123, %p124
      %p126 = scmp.ne.s32.totalorder %s118, %s120
      %p127 = scmp.eq.s32.totalorder %s26, 1
      %p128 = por %p126, %p127
      %p129 = scmp.ne.s32.totalorder %s120, %s121
      %p130 = scmp.eq.s32.totalorder %s26, 0
      %p131 = por %p129, %p130
      %p132 = scmp.ne.s32.totalorder %s120, %s121
      %p133 = scmp.eq.s32.totalorder %s27, 1
      %p134 = por %p132, %p133
      %p136 = scmp.ne.s32.totalorder %s121, %s135
      %p137 = scmp.eq.s32.totalorder %s27, 0
      %p138 = por %p136, %p137
      %s140 = sadd.s32 %s139, 1
      %p143 = scmp.eq.s32.totalorder %s21, 1
      %p144 = scmp.ne.s32.totalorder %s139, %s141
      %p145 = scmp.eq.s32.totalorder %s21, 0
      %p146 = por %p144, %p145
      %p147 = scmp.ne.s32.totalorder %s139, %s141
      %p148 = scmp.eq.s32.totalorder %s26, 1
      %p149 = por %p147, %p148
      %p150 = scmp.ne.s32.totalorder %s141, %s142
      %p151 = scmp.eq.s32.totalorder %s26, 0
      %p152 = por %p150, %p151
      %p153 = scmp.ne.s32.totalorder %s141, %s142
      %p154 = scmp.eq.s32.totalorder %s27, 1
      %p155 = por %p153, %p154
      %p157 = scmp.ne.s32.totalorder %s142, %s156
      %p158 = scmp.eq.s32.totalorder %s27, 0
      %p159 = por %p157, %p158
      %s161 = sadd.s32 %s160, 1
      %p164 = scmp.eq.s32.totalorder %s21, 1
      %p165 = scmp.ne.s32.totalorder %s160, %s162
      %p166 = scmp.eq.s32.totalorder %s21, 0
      %p167 = por %p165, %p166
      %p168 = scmp.ne.s32.totalorder %s160, %s162
      %p169 = scmp.eq.s32.totalorder %s26, 1
      %p170 = por %p168, %p169
      %p171 = scmp.ne.s32.totalorder %s162, %s163
      %p172 = scmp.eq.s32.totalorder %s26, 0
      %p173 = por %p171, %p172
      %p174 = scmp.ne.s32.totalorder %s162, %s163
      %p175 = scmp.eq.s32.totalorder %s27, 1
      %p176 = por %p174, %p175
      %p178 = scmp.ne.s32.totalorder %s163, %s177
      %p179 = scmp.eq.s32.totalorder %s27, 0
      %p180 = por %p178, %p179
      %s182 = sadd.s32 %s181, 1
      %p185 = scmp.eq.s32.totalorder %s21, 1
      %p186 = scmp.ne.s32.totalorder %s181, %s183
      %p187 = scmp.eq.s32.totalorder %s21, 0
      %p188 = por %p186, %p187
      %p189 = scmp.ne.s32.totalorder %s181, %s183
      %p190 = scmp.eq.s32.totalorder %s26, 1
      %p191 = por %p189, %p190
      %p192 = scmp.ne.s32.totalorder %s183, %s184
      %p193 = scmp.eq.s32.totalorder %s26, 0
      %p194 = por %p192, %p193
      %p195 = scmp.ne.s32.totalorder %s183, %s184
      %p196 = scmp.eq.s32.totalorder %s27, 1
      %p197 = por %p195, %p196
      %p199 = scmp.ne.s32.totalorder %s184, %s198
      %p200 = scmp.eq.s32.totalorder %s27, 0
      %p201 = por %p199, %p200
      %s203 = sadd.s32 %s202, 1
      %p206 = scmp.eq.s32.totalorder %s21, 1
      %p207 = scmp.ne.s32.totalorder %s202, %s204
      %p208 = scmp.eq.s32.totalorder %s21, 0
      %p209 = por %p207, %p208
      %p210 = scmp.ne.s32.totalorder %s202, %s204
      %p211 = scmp.eq.s32.totalorder %s26, 1
      %p212 = por %p210, %p211
      %p213 = scmp.ne.s32.totalorder %s204, %s205
      %p214 = scmp.eq.s32.totalorder %s26, 0
      %p215 = por %p213, %p214
      %p216 = scmp.ne.s32.totalorder %s204, %s205
      %p217 = scmp.eq.s32.totalorder %s27, 1
      %p218 = por %p216, %p217
      %p220 = scmp.ne.s32.totalorder %s205, %s219
      %p221 = scmp.eq.s32.totalorder %s27, 0
      %p222 = por %p220, %p221
      %s224 = sadd.s32 %s223, 1
      %p227 = scmp.eq.s32.totalorder %s21, 1
      %p228 = scmp.ne.s32.totalorder %s223, %s225
      %p229 = scmp.eq.s32.totalorder %s21, 0
      %p230 = por %p228, %p229
      %p231 = scmp.ne.s32.totalorder %s223, %s225
      %p232 = scmp.eq.s32.totalorder %s26, 1
      %p233 = por %p231, %p232
      %p234 = scmp.ne.s32.totalorder %s225, %s226
      %p235 = scmp.eq.s32.totalorder %s26, 0
      %p236 = por %p234, %p235
      %p237 = scmp.ne.s32.totalorder %s225, %s226
      %p238 = scmp.eq.s32.totalorder %s27, 1
      %p239 = por %p237, %p238
      %p241 = scmp.ne.s32.totalorder %s226, %s240
      %p242 = scmp.eq.s32.totalorder %s27, 0
      %p243 = por %p241, %p242
      %s245 = sadd.s32 %s244, 1
      %p248 = scmp.eq.s32.totalorder %s21, 1
      %p249 = scmp.ne.s32.totalorder %s244, %s246
      %p250 = scmp.eq.s32.totalorder %s21, 0
      %p251 = por %p249, %p250
      %p252 = scmp.ne.s32.totalorder %s244, %s246
      %p253 = scmp.eq.s32.totalorder %s26, 1
      %p254 = por %p252, %p253
      %p255 = scmp.ne.s32.totalorder %s246, %s247
      %p256 = scmp.eq.s32.totalorder %s26, 0
      %p257 = por %p255, %p256
      %p258 = scmp.ne.s32.totalorder %s246, %s247
      %p259 = scmp.eq.s32.totalorder %s27, 1
      %p260 = por %p258, %p259
      %p262 = scmp.ne.s32.totalorder %s247, %s261
      %p263 = scmp.eq.s32.totalorder %s27, 0
      %p264 = por %p262, %p263
      %s266 = sadd.s32 %s265, 1
      %p269 = scmp.eq.s32.totalorder %s21, 1
      %p270 = scmp.ne.s32.totalorder %s265, %s267
      %p271 = scmp.eq.s32.totalorder %s21, 0
      %p272 = por %p270, %p271
      %p273 = scmp.ne.s32.totalorder %s265, %s267
      %p274 = scmp.eq.s32.totalorder %s26, 1
      %p275 = por %p273, %p274
      %p276 = scmp.ne.s32.totalorder %s267, %s268
      %p277 = scmp.eq.s32.totalorder %s26, 0
      %p278 = por %p276, %p277
      %p279 = scmp.ne.s32.totalorder %s267, %s268
      %p280 = scmp.eq.s32.totalorder %s27, 1
      %p281 = por %p279, %p280
      %p283 = scmp.ne.s32.totalorder %s268, %s282
      %p284 = scmp.eq.s32.totalorder %s27, 0
      %p285 = por %p283, %p284
      %s286 = ssub.s32 %s21, %s28
      %p287 = scmp.eq.s32.totalorder %s286, 0
      %s289 = sadd.s32 %s288, 1
      %s290 = scalar_select %p287, %s288, %s289
      %p293 = pneg %p287
      %p294 = scmp.eq.s32.totalorder %s21, 1
      %p295 = por %p293, %p294
      %p296 = scmp.ne.s32.totalorder %s288, %s291
      %p297 = scmp.eq.s32.totalorder %s21, 0
      %p298 = por %p296, %p297
      %p299 = scmp.ne.s32.totalorder %s288, %s291
      %p300 = scmp.eq.s32.totalorder %s26, 1
      %p301 = por %p299, %p300
      %p302 = scmp.ne.s32.totalorder %s291, %s292
      %p303 = scmp.eq.s32.totalorder %s26, 0
      %p304 = por %p302, %p303
      %p305 = scmp.ne.s32.totalorder %s291, %s292
      %p306 = scmp.eq.s32.totalorder %s27, 1
      %p307 = por %p305, %p306
      %p309 = scmp.ne.s32.totalorder %s292, %s308
      %p310 = scmp.eq.s32.totalorder %s27, 0
      %p311 = por %p309, %p310
      %p312 = scmp.le.s32.totalorder 1, %s21
      %p313 = scmp.lt.s32.totalorder %s21, 3
      %p314 = pnand %p312, %p313
      %p315 = pneg %p314
      // Predicated region
      $region9: #{net_forward.1} parent=5 // pred_check
        _
      $region10: #{net_forward.1} parent=5 // pred_check_branch
        %317 = sbr.rel (%p314) target = $region12
      $region11: #{net_forward.1} parent=5 // pred_region
        %s318 = ssub.s32 %s21, 1
        // Predicated region
        $region13: #{net_forward.1} parent=11 // pred_check
          %p319 = pneg %p68
        $region14: #{net_forward.1} parent=11 // pred_check_branch
          %321 = sbr.rel (%p319) target = $region16
        $region15: #{net_forward.1} parent=11 // pred_region
          _
        $region16: #{net_forward.1} parent=11 // pred_fallthru
          _
        // Predicated region
        $region17: #{net_forward.1} parent=11 // pred_check
          %p322 = pneg %p89
        $region18: #{net_forward.1} parent=11 // pred_check_branch
          %324 = sbr.rel (%p322) target = $region20
        $region19: #{net_forward.1} parent=11 // pred_region
          _
        $region20: #{net_forward.1} parent=11 // pred_fallthru
          _
        // Predicated region
        $region21: #{net_forward.1} parent=11 // pred_check
          %p325 = pneg %p110
        $region22: #{net_forward.1} parent=11 // pred_check_branch
          %327 = sbr.rel (%p325) target = $region24
        $region23: #{net_forward.1} parent=11 // pred_region
          _
        $region24: #{net_forward.1} parent=11 // pred_fallthru
          _
        // Predicated region
        $region25: #{net_forward.1} parent=11 // pred_check
          %p328 = pneg %p131
        $region26: #{net_forward.1} parent=11 // pred_check_branch
          %330 = sbr.rel (%p328) target = $region28
        $region27: #{net_forward.1} parent=11 // pred_region
          _
        $region28: #{net_forward.1} parent=11 // pred_fallthru
          _
        // Predicated region
        $region29: #{net_forward.1} parent=11 // pred_check
          %p331 = pneg %p152
        $region30: #{net_forward.1} parent=11 // pred_check_branch
          %333 = sbr.rel (%p331) target = $region32
        $region31: #{net_forward.1} parent=11 // pred_region
          _
        $region32: #{net_forward.1} parent=11 // pred_fallthru
          _
        // Predicated region
        $region33: #{net_forward.1} parent=11 // pred_check
          %p334 = pneg %p173
        $region34: #{net_forward.1} parent=11 // pred_check_branch
          %336 = sbr.rel (%p334) target = $region36
        $region35: #{net_forward.1} parent=11 // pred_region
          _
        $region36: #{net_forward.1} parent=11 // pred_fallthru
          _
        // Predicated region
        $region37: #{net_forward.1} parent=11 // pred_check
          %p337 = pneg %p194
        $region38: #{net_forward.1} parent=11 // pred_check_branch
          %339 = sbr.rel (%p337) target = $region40
        $region39: #{net_forward.1} parent=11 // pred_region
          _
        $region40: #{net_forward.1} parent=11 // pred_fallthru
          _
        // Predicated region
        $region41: #{net_forward.1} parent=11 // pred_check
          %p340 = pneg %p215
        $region42: #{net_forward.1} parent=11 // pred_check_branch
          %342 = sbr.rel (%p340) target = $region44
        $region43: #{net_forward.1} parent=11 // pred_region
          _
        $region44: #{net_forward.1} parent=11 // pred_fallthru
          _
        // Predicated region
        $region45: #{net_forward.1} parent=11 // pred_check
          %p343 = pneg %p236
        $region46: #{net_forward.1} parent=11 // pred_check_branch
          %345 = sbr.rel (%p343) target = $region48
        $region47: #{net_forward.1} parent=11 // pred_region
          _
        $region48: #{net_forward.1} parent=11 // pred_fallthru
          _
        // Predicated region
        $region49: #{net_forward.1} parent=11 // pred_check
          %p346 = pneg %p257
        $region50: #{net_forward.1} parent=11 // pred_check_branch
          %348 = sbr.rel (%p346) target = $region52
        $region51: #{net_forward.1} parent=11 // pred_region
          _
        $region52: #{net_forward.1} parent=11 // pred_fallthru
          _
        // Predicated region
        $region53: #{net_forward.1} parent=11 // pred_check
          %p349 = pneg %p278
        $region54: #{net_forward.1} parent=11 // pred_check_branch
          %351 = sbr.rel (%p349) target = $region56
        $region55: #{net_forward.1} parent=11 // pred_region
          _
        $region56: #{net_forward.1} parent=11 // pred_fallthru
          _
      $region12: #{net_forward.1} parent=5 // pred_fallthru
        _
      %p352 = scmp.lt.s32.totalorder %s21, 2
      // Predicated region
      $region57: #{net_forward.1} parent=5 // pred_check
        %p353 = pneg %p352
      $region58: #{net_forward.1} parent=5 // pred_check_branch
        %355 = sbr.rel (%p353) target = $region60
      $region59: #{net_forward.1} parent=5 // pred_region
        // Predicated region
        $region61: #{net_forward.1} parent=59 // pred_check
          %p356 = pneg %p41
        $region62: #{net_forward.1} parent=59 // pred_check_branch
          %358 = sbr.rel (%p356) target = $region64
        $region63: #{net_forward.1} parent=59 // pred_region
          %p359 = scmp.lt.s32.totalorder %s21, 1
          %s360 = scalar_select %p359, %s21, 1
          %s361 = smul.addr %s360, 10
          %s362 = scalar_lea.vmem %s0, %s361
        $region64: #{net_forward.1} parent=59 // pred_fallthru
          _
      $region60: #{net_forward.1} parent=5 // pred_fallthru
        _
      %p363 = scmp.le.s32.totalorder 1, %s21
      %p364 = scmp.lt.s32.totalorder %s21, 3
      %p365 = pnand %p363, %p364
      %p366 = pneg %p365
      // Predicated region
      $region65: #{net_forward.1} parent=5 // pred_check
        _
      $region66: #{net_forward.1} parent=5 // pred_check_branch
        %368 = sbr.rel (%p365) target = $region68
      $region67: #{net_forward.1} parent=5 // pred_region
        %s369 = ssub.s32 %s21, 1
        %p370 = scmp.lt.s32.totalorder %s26, 1
        %s371 = scalar_select %p370, %s26, 1
        %s372 = smul.addr %s371, 10
        %s373 = scalar_lea.vmem %s0, %s372
        %p374 = pneg %p47
        %p375 = pneg %p44
        %p376 = pneg %p68
        %p377 = pneg %p65
        %p378 = pneg %p89
        %p379 = pneg %p86
        %p380 = pneg %p110
        %p381 = pneg %p107
        %p382 = pneg %p131
        %p383 = pneg %p128
        %p384 = pneg %p152
        %p385 = pneg %p149
        %p386 = pneg %p173
        %p387 = pneg %p170
        %p388 = pneg %p194
        %p389 = pneg %p191
        %p390 = pneg %p215
        %p391 = pneg %p212
        %p392 = pneg %p236
        %p393 = pneg %p233
        %p394 = pneg %p257
        %p395 = pneg %p254
        %p396 = pneg %p278
        %p397 = pneg %p275
        %p398 = pneg %p304
        %p399 = pneg %p301
        %s400 = sand.u32 %s291, 1
        %s401 = scalar_lea.sflag [#allocation8], %s400
        %s402 = sand.u32 %s291, 1
        %s403 = scalar_lea.vmem [#allocation7], %s402
        %p404 = scmp.lt.s32.totalorder %s26, 1
        %s405 = scalar_select %p404, %s26, 1
        %s406 = smul.addr %s405, 10
        %s407 = scalar_lea.vmem %s0, %s406
        %v409 = vld [vmem:[%s407] sm:$0xff]
        %v410 = vld [vmem:[%s407 + $0x8] sm:$0x3]
        %411 = vst [vmem:[#allocation2] ss:$8 sm:$0xf] %v409
        %412 = vst [vmem:[#allocation2] ss:$8 sm:$0xf0] %v409
        %415 = vrot.lane.b32.xlu0 %v409, 127
        %v416 = vpop.permute.xlu0 %415
        %417 = vrot.lane.b32.xlu0 %v410, 127
        %v418 = vpop.permute.xlu0 %417
        %v419 = vrot.slane %v416, 1
        %v420 = vrot.slane %v418, 1
        %vm421 = vcmask 1046528
        %v422 = vsel %vm421, %v419, %v420
        %vm423 = vcmask 1039360
        %v424 = vsel %vm423, %v416, %v422
        %s426 = scalar_lea.vmem [#allocation2], 1
        %427 = vst [vmem:[%s426] ss:$8 sm:$0xf] %v424
        %428 = vst [vmem:[%s426] ss:$8 sm:$0xf0] %v424
        %429 = vrot.lane.b32.xlu0 %v409, 126
        %v430 = vpop.permute.xlu0 %429
        %431 = vrot.lane.b32.xlu0 %v410, 126
        %v432 = vpop.permute.xlu0 %431
        %v433 = vrot.slane %v430, 1
        %v434 = vrot.slane %v432, 1
        %v435 = vsel %vm421, %v433, %v434
        %vm436 = vcmask 1031168
        %v437 = vsel %vm436, %v430, %v435
        %s439 = scalar_lea.vmem [#allocation2], 2
        %440 = vst [vmem:[%s439] ss:$8 sm:$0xf] %v437
        %441 = vst [vmem:[%s439] ss:$8 sm:$0xf0] %v437
        %442 = vrot.lane.b32.xlu0 %v409, 125
        %v443 = vpop.permute.xlu0 %442
        %444 = vrot.lane.b32.xlu0 %v410, 125
        %v445 = vpop.permute.xlu0 %444
        %v446 = vrot.slane %v443, 1
        %v447 = vrot.slane %v445, 1
        %v448 = vsel %vm421, %v446, %v447
        %vm449 = vcmask 1022976
        %v450 = vsel %vm449, %v443, %v448
        %s452 = scalar_lea.vmem [#allocation2], 3
        %453 = vst [vmem:[%s452] ss:$8 sm:$0xf] %v450
        %454 = vst [vmem:[%s452] ss:$8 sm:$0xf0] %v450
        %455 = vrot.lane.b32.xlu0 %v409, 124
        %v456 = vpop.permute.xlu0 %455
        %457 = vrot.lane.b32.xlu0 %v410, 124
        %v458 = vpop.permute.xlu0 %457
        %v459 = vrot.slane %v456, 1
        %v460 = vrot.slane %v458, 1
        %v461 = vsel %vm421, %v459, %v460
        %vm462 = vcmask 1014784
        %v463 = vsel %vm462, %v456, %v461
        %s465 = scalar_lea.vmem [#allocation2], 4
        %466 = vst [vmem:[%s465] ss:$8 sm:$0xf] %v463
        %467 = vst [vmem:[%s465] ss:$8 sm:$0xf0] %v463
        %468 = vrot.lane.b32.xlu0 %v409, 96
        %v469 = vpop.permute.xlu0 %468
        %470 = vrot.lane.b32.xlu0 %v410, 96
        %v471 = vpop.permute.xlu0 %470
        %v472 = vrot.slane %v469, 1
        %v473 = vrot.slane %v471, 1
        %v474 = vsel %vm421, %v472, %v473
        %vm475 = vcmask 785408
        %v476 = vsel %vm475, %v469, %v474
        %s478 = scalar_lea.vmem [#allocation2], 5
        %479 = vst [vmem:[%s478] ss:$8 sm:$0xf] %v476
        %480 = vst [vmem:[%s478] ss:$8 sm:$0xf0] %v476
        %481 = vrot.lane.b32.xlu0 %v409, 95
        %v482 = vpop.permute.xlu0 %481
        %483 = vrot.lane.b32.xlu0 %v410, 95
        %v484 = vpop.permute.xlu0 %483
        %v485 = vrot.slane %v482, 1
        %v486 = vrot.slane %v484, 1
        %v487 = vsel %vm421, %v485, %v486
        %vm488 = vcmask 777216
        %v489 = vsel %vm488, %v482, %v487
        %s491 = scalar_lea.vmem [#allocation2], 6
        %492 = vst [vmem:[%s491] ss:$8 sm:$0xf] %v489
        %493 = vst [vmem:[%s491] ss:$8 sm:$0xf0] %v489
        %494 = vrot.lane.b32.xlu0 %v409, 94
        %v495 = vpop.permute.xlu0 %494
        %496 = vrot.lane.b32.xlu0 %v410, 94
        %v497 = vpop.permute.xlu0 %496
        %v498 = vrot.slane %v495, 1
        %v499 = vrot.slane %v497, 1
        %v500 = vsel %vm421, %v498, %v499
        %vm501 = vcmask 769024
        %v502 = vsel %vm501, %v495, %v500
        %s504 = scalar_lea.vmem [#allocation2], 7
        %505 = vst [vmem:[%s504] ss:$8 sm:$0xf] %v502
        %506 = vst [vmem:[%s504] ss:$8 sm:$0xf0] %v502
        %507 = vrot.lane.b32.xlu0 %v409, 93
        %v508 = vpop.permute.xlu0 %507
        %509 = vrot.lane.b32.xlu0 %v410, 93
        %v510 = vpop.permute.xlu0 %509
        %v511 = vrot.slane %v508, 1
        %v512 = vrot.slane %v510, 1
        %v513 = vsel %vm421, %v511, %v512
        %vm514 = vcmask 760832
        %v515 = vsel %vm514, %v508, %v513
        %s517 = scalar_lea.vmem [#allocation2], 64
        %518 = vst [vmem:[%s517] ss:$8 sm:$0xf] %v515
        %519 = vst [vmem:[%s517] ss:$8 sm:$0xf0] %v515
        %520 = vrot.lane.b32.xlu0 %v409, 92
        %v521 = vpop.permute.xlu0 %520
        %522 = vrot.lane.b32.xlu0 %v410, 92
        %v523 = vpop.permute.xlu0 %522
        %v524 = vrot.slane %v521, 1
        %v525 = vrot.slane %v523, 1
        %v526 = vsel %vm421, %v524, %v525
        %vm527 = vcmask 752640
        %v528 = vsel %vm527, %v521, %v526
        %s530 = scalar_lea.vmem [#allocation2], 65
        %531 = vst [vmem:[%s530] ss:$8 sm:$0xf] %v528
        %532 = vst [vmem:[%s530] ss:$8 sm:$0xf0] %v528
        %533 = vrot.lane.b32.xlu0 %v409, 64
        %v534 = vpop.permute.xlu0 %533
        %535 = vrot.lane.b32.xlu0 %v410, 64
        %v536 = vpop.permute.xlu0 %535
        %v537 = vrot.slane %v534, 1
        %v538 = vrot.slane %v536, 1
        %v539 = vsel %vm421, %v537, %v538
        %vm540 = vcmask 523264
        %v541 = vsel %vm540, %v534, %v539
        %s543 = scalar_lea.vmem [#allocation2], 66
        %544 = vst [vmem:[%s543] ss:$8 sm:$0xf] %v541
        %545 = vst [vmem:[%s543] ss:$8 sm:$0xf0] %v541
        %546 = vrot.lane.b32.xlu0 %v409, 63
        %v547 = vpop.permute.xlu0 %546
        %548 = vrot.lane.b32.xlu0 %v410, 63
        %v549 = vpop.permute.xlu0 %548
        %v550 = vrot.slane %v547, 1
        %v551 = vrot.slane %v549, 1
        %v552 = vsel %vm421, %v550, %v551
        %vm553 = vcmask 515072
        %v554 = vsel %vm553, %v547, %v552
        %s556 = scalar_lea.vmem [#allocation2], 67
        %557 = vst [vmem:[%s556] ss:$8 sm:$0xf] %v554
        %558 = vst [vmem:[%s556] ss:$8 sm:$0xf0] %v554
        %559 = vrot.lane.b32.xlu0 %v409, 62
        %v560 = vpop.permute.xlu0 %559
        %561 = vrot.lane.b32.xlu0 %v410, 62
        %v562 = vpop.permute.xlu0 %561
        %v563 = vrot.slane %v560, 1
        %v564 = vrot.slane %v562, 1
        %v565 = vsel %vm421, %v563, %v564
        %vm566 = vcmask 506880
        %v567 = vsel %vm566, %v560, %v565
        %s569 = scalar_lea.vmem [#allocation2], 68
        %570 = vst [vmem:[%s569] ss:$8 sm:$0xf] %v567
        %571 = vst [vmem:[%s569] ss:$8 sm:$0xf0] %v567
        %572 = vrot.lane.b32.xlu0 %v409, 61
        %v573 = vpop.permute.xlu0 %572
        %574 = vrot.lane.b32.xlu0 %v410, 61
        %v575 = vpop.permute.xlu0 %574
        %v576 = vrot.slane %v573, 1
        %v577 = vrot.slane %v575, 1
        %v578 = vsel %vm421, %v576, %v577
        %vm579 = vcmask 498688
        %v580 = vsel %vm579, %v573, %v578
        %s582 = scalar_lea.vmem [#allocation2], 69
        %583 = vst [vmem:[%s582] ss:$8 sm:$0xf] %v580
        %584 = vst [vmem:[%s582] ss:$8 sm:$0xf0] %v580
        %585 = vrot.lane.b32.xlu0 %v409, 60
        %v586 = vpop.permute.xlu0 %585
        %587 = vrot.lane.b32.xlu0 %v410, 60
        %v588 = vpop.permute.xlu0 %587
        %v589 = vrot.slane %v586, 1
        %v590 = vrot.slane %v588, 1
        %v591 = vsel %vm421, %v589, %v590
        %vm592 = vcmask 490496
        %v593 = vsel %vm592, %v586, %v591
        %s595 = scalar_lea.vmem [#allocation2], 70
        %596 = vst [vmem:[%s595] ss:$8 sm:$0xf] %v593
        %597 = vst [vmem:[%s595] ss:$8 sm:$0xf0] %v593
        %598 = vrot.lane.b32.xlu0 %v409, 32
        %v599 = vpop.permute.xlu0 %598
        %600 = vrot.lane.b32.xlu0 %v410, 32
        %v601 = vpop.permute.xlu0 %600
        %v602 = vrot.slane %v599, 1
        %v603 = vrot.slane %v601, 1
        %v604 = vsel %vm421, %v602, %v603
        %vm605 = vcmask 261120
        %v606 = vsel %vm605, %v599, %v604
        %s608 = scalar_lea.vmem [#allocation2], 71
        %609 = vst [vmem:[%s608] ss:$8 sm:$0xf] %v606
        %610 = vst [vmem:[%s608] ss:$8 sm:$0xf0] %v606
        %611 = vrot.lane.b32.xlu0 %v409, 31
        %v612 = vpop.permute.xlu0 %611
        %613 = vrot.lane.b32.xlu0 %v410, 31
        %v614 = vpop.permute.xlu0 %613
        %v615 = vrot.slane %v612, 1
        %v616 = vrot.slane %v614, 1
        %v617 = vsel %vm421, %v615, %v616
        %vm618 = vcmask 252928
        %v619 = vsel %vm618, %v612, %v617
        %s621 = scalar_lea.vmem [#allocation2], 128
        %622 = vst [vmem:[%s621] ss:$8 sm:$0xf] %v619
        %623 = vst [vmem:[%s621] ss:$8 sm:$0xf0] %v619
        %624 = vrot.lane.b32.xlu0 %v409, 30
        %v625 = vpop.permute.xlu0 %624
        %626 = vrot.lane.b32.xlu0 %v410, 30
        %v627 = vpop.permute.xlu0 %626
        %v628 = vrot.slane %v625, 1
        %v629 = vrot.slane %v627, 1
        %v630 = vsel %vm421, %v628, %v629
        %vm631 = vcmask 244736
        %v632 = vsel %vm631, %v625, %v630
        %s634 = scalar_lea.vmem [#allocation2], 129
        %635 = vst [vmem:[%s634] ss:$8 sm:$0xf] %v632
        %636 = vst [vmem:[%s634] ss:$8 sm:$0xf0] %v632
        %637 = vrot.lane.b32.xlu0 %v409, 29
        %v638 = vpop.permute.xlu0 %637
        %639 = vrot.lane.b32.xlu0 %v410, 29
        %v640 = vpop.permute.xlu0 %639
        %v641 = vrot.slane %v638, 1
        %v642 = vrot.slane %v640, 1
        %v643 = vsel %vm421, %v641, %v642
        %vm644 = vcmask 236544
        %v645 = vsel %vm644, %v638, %v643
        %s647 = scalar_lea.vmem [#allocation2], 130
        %648 = vst [vmem:[%s647] ss:$8 sm:$0xf] %v645
        %649 = vst [vmem:[%s647] ss:$8 sm:$0xf0] %v645
        %650 = vrot.lane.b32.xlu0 %v409, 28
        %v651 = vpop.permute.xlu0 %650
        %652 = vrot.lane.b32.xlu0 %v410, 28
        %v653 = vpop.permute.xlu0 %652
        %v654 = vrot.slane %v651, 1
        %v655 = vrot.slane %v653, 1
        %v656 = vsel %vm421, %v654, %v655
        %vm657 = vcmask 228352
        %v658 = vsel %vm657, %v651, %v656
        %s660 = scalar_lea.vmem [#allocation2], 131
        %661 = vst [vmem:[%s660] ss:$8 sm:$0xf] %v658
        %662 = vst [vmem:[%s660] ss:$8 sm:$0xf0] %v658
        %v663 = vrot.slane %v409, 1
        %v664 = vrot.slane %v410, 1
        %v665 = vsel %vm421, %v663, %v664
        %s667 = scalar_lea.vmem [#allocation2], 132
        %668 = vst [vmem:[%s667] ss:$8 sm:$0xf] %v665
        %669 = vst [vmem:[%s667] ss:$8 sm:$0xf0] %v665
        %v670 = vrot.slane %v416, 2
        %v671 = vrot.slane %v418, 2
        %vm672 = vcmask 1045504
        %v673 = vsel %vm672, %v670, %v671
        %v674 = vsel %vm423, %v422, %v673
        %s676 = scalar_lea.vmem [#allocation2], 133
        %677 = vst [vmem:[%s676] ss:$8 sm:$0xf] %v674
        %678 = vst [vmem:[%s676] ss:$8 sm:$0xf0] %v674
        %v679 = vrot.slane %v430, 2
        %v680 = vrot.slane %v432, 2
        %v681 = vsel %vm672, %v679, %v680
        %v682 = vsel %vm436, %v435, %v681
        %s684 = scalar_lea.vmem [#allocation2], 134
        %685 = vst [vmem:[%s684] ss:$8 sm:$0xf] %v682
        %686 = vst [vmem:[%s684] ss:$8 sm:$0xf0] %v682
        %v687 = vrot.slane %v443, 2
        %v688 = vrot.slane %v445, 2
        %v689 = vsel %vm672, %v687, %v688
        %v690 = vsel %vm449, %v448, %v689
        %s692 = scalar_lea.vmem [#allocation2], 135
        %693 = vst [vmem:[%s692] ss:$8 sm:$0xf] %v690
        %694 = vst [vmem:[%s692] ss:$8 sm:$0xf0] %v690
        %v695 = vrot.slane %v456, 2
        %v696 = vrot.slane %v458, 2
        %v697 = vsel %vm672, %v695, %v696
        %v698 = vsel %vm462, %v461, %v697
        %s700 = scalar_lea.vmem [#allocation2], 192
        %701 = vst [vmem:[%s700] ss:$8 sm:$0xf] %v698
        %702 = vst [vmem:[%s700] ss:$8 sm:$0xf0] %v698
        %v703 = vld [vmem:[%s1] sm:$0x7]
        %v704 = vld [vmem:[#allocation2] sm:$0xff]
        %v705 = vld [vmem:[#allocation2 + $0x8] sm:$0xff]
        %v706 = vld [vmem:[#allocation2 + $0x10] sm:$0xff]
        %v707 = vld [vmem:[#allocation2 + $0x18] sm:$0xff]
        %v708 = vld [vmem:[#allocation2 + $0x20] sm:$0xff]
        %v709 = vld [vmem:[#allocation2 + $0x28] sm:$0xff]
        %v710 = vld [vmem:[#allocation2 + $0x30] sm:$0xff]
        %v711 = vld [vmem:[#allocation2 + $0x38] sm:$0xff]
        %v712 = vld [vmem:[#allocation2 + $0x40] sm:$0xff]
        %v713 = vld [vmem:[#allocation2 + $0x48] sm:$0xff]
        %v714 = vld [vmem:[#allocation2 + $0x50] sm:$0xff]
        %v715 = vld [vmem:[#allocation2 + $0x58] sm:$0xff]
        %v716 = vld [vmem:[#allocation2 + $0x60] sm:$0xff]
        %v717 = vld [vmem:[#allocation2 + $0x68] sm:$0xff]
        %v718 = vld [vmem:[#allocation2 + $0x70] sm:$0xff]
        %v719 = vld [vmem:[#allocation2 + $0x78] sm:$0xff]
        %v720 = vld [vmem:[#allocation2 + $0x80] sm:$0xff]
        %v721 = vld [vmem:[#allocation2 + $0x88] sm:$0xff]
        %v722 = vld [vmem:[#allocation2 + $0x90] sm:$0xff]
        %v723 = vld [vmem:[#allocation2 + $0x98] sm:$0xff]
        %v724 = vld [vmem:[#allocation2 + $0xa0] sm:$0xff]
        %v725 = vld [vmem:[#allocation2 + $0xa8] sm:$0xff]
        %v726 = vld [vmem:[#allocation2 + $0xb0] sm:$0xff]
        %v727 = vld [vmem:[#allocation2 + $0xb8] sm:$0xff]
        %v728 = vld [vmem:[#allocation2 + $0xc0] sm:$0x1]
        %v729 = vld [vmem:[#allocation2 + $0xc8] sm:$0x1]
        %v730 = vld [vmem:[#allocation2 + $0xd0] sm:$0x1]
        %v731 = vld [vmem:[#allocation2 + $0xd8] sm:$0x1]
        %v732 = vld [vmem:[#allocation2 + $0xe0] sm:$0x1]
        %v733 = vld [vmem:[#allocation2 + $0xe8] sm:$0x1]
        %v734 = vld [vmem:[#allocation2 + $0xf0] sm:$0x1]
        %v735 = vld [vmem:[#allocation2 + $0xf8] sm:$0x1]
        %v736 = vpack.c.bf16 %v712, %v704
        %v737 = vpack.c.bf16 %v713, %v705
        %v738 = vpack.c.bf16 %v714, %v706
        %v739 = vpack.c.bf16 %v715, %v707
        %v740 = vpack.c.bf16 %v716, %v708
        %v741 = vpack.c.bf16 %v717, %v709
        %v742 = vpack.c.bf16 %v718, %v710
        %v743 = vpack.c.bf16 %v719, %v711
        %v744 = vpack.c.bf16 %v728, %v720
        %v745 = vpack.c.bf16 %v729, %v721
        %v746 = vpack.c.bf16 %v730, %v722
        %v747 = vpack.c.bf16 %v731, %v723
        %v748 = vpack.c.bf16 %v732, %v724
        %v749 = vpack.c.bf16 %v733, %v725
        %v750 = vpack.c.bf16 %v734, %v726
        %v751 = vpack.c.bf16 %v735, %v727
        %v752 = vld [vmem:[%s2] sm:$0x3f]
        %754 = vset.pattern.permute.xlu0 0
        %755 = vperm.xlu0 %754, %v752
        %v756 = vpop.permute.xlu0 %755
        %vm758 = vcmask 203776
        %v760 = vsel %vm758, %v703, 0
        %vm762 = vcmask 1043456
        %vm763 = vcmask 1044480
        %v764 = vsel %vm762, 4294967295, 65535
        %v765 = vsel %vm763, %v764, 0
        %v767 = vand.u32 %v744, %v765
        %v770 = vand.u32 %v745, %v765
        %v773 = vand.u32 %v746, %v765
        %v776 = vand.u32 %v747, %v765
        %v779 = vand.u32 %v748, %v765
        %v782 = vand.u32 %v749, %v765
        %v785 = vand.u32 %v750, %v765
        %v788 = vand.u32 %v751, %v765
        %790 = vmatprep.subr.bf16.mxu0 0
        %791 = vmatpush1.bf16.msra.mxu0 0
        %792 = vmatprep.subr.bf16.mxu0 0
        %793 = vmatpush1.bf16.msra.mxu0 0
        %794 = vmatprep.subr.bf16.mxu0 0
        %795 = vmatpush1.bf16.msra.mxu0 0
        %796 = vmatprep.subr.bf16.mxu0 0
        %797 = vmatpush1.bf16.msra.mxu0 0
        %798 = vmatprep.subr.bf16.mxu0 0
        %799 = vmatpush1.bf16.msra.mxu0 0
        %800 = vmatprep.subr.bf16.mxu0 0
        %801 = vmatpush1.bf16.msra.mxu0 0
        %802 = vmatprep.subr.bf16.mxu0 %v770
        %803 = vmatpush1.bf16.msra.mxu0 %v767
        %804 = vmatprep.subr.bf16.mxu0 %v737
        %805 = vmatpush1.bf16.msra.mxu0 %v736
        %806 = vmatprep.subr.bf16.mxu0 0
        %807 = vmatpush2.bf16.msra.mxu0 0
        %808 = vmatprep.subr.bf16.mxu0 0
        %809 = vmatpush2.bf16.msra.mxu0 0
        %810 = vmatprep.subr.bf16.mxu0 0
        %811 = vmatpush2.bf16.msra.mxu0 0
        %812 = vmatprep.subr.bf16.mxu0 0
        %813 = vmatpush2.bf16.msra.mxu0 0
        %814 = vmatprep.subr.bf16.mxu0 0
        %815 = vmatpush2.bf16.msra.mxu0 0
        %816 = vmatprep.subr.bf16.mxu0 0
        %817 = vmatpush2.bf16.msra.mxu0 0
        %818 = vmatprep.subr.bf16.mxu0 0
        %819 = vmatpush2.bf16.msra.mxu0 0
        %820 = vmatprep.subr.bf16.mxu0 0
        %821 = vmatpush2.bf16.msra.mxu0 0
        %822 = vmatprep.mubr.bf16.mxu0 0
        %823 = vmatmul.mubr.bf16.gmra.mxu0 %v760
        %v824 = vpop.f32.mrf.mxu0
        %v825 = vadd.f32 %v756, %v824
        %v826 = vpop.f32.mrf.mxu0
        %v827 = vadd.f32 %v756, %v826
        %v828 = vpop.f32.mrf.mxu0
        %v829 = vpop.f32.mrf.mxu0
        %830 = vdwg.mxu0
        %831 = vmatprep.subr.bf16.mxu0 0
        %832 = vmatpush1.bf16.msra.mxu0 0
        %833 = vmatprep.subr.bf16.mxu0 0
        %834 = vmatpush1.bf16.msra.mxu0 0
        %835 = vmatprep.subr.bf16.mxu0 0
        %836 = vmatpush1.bf16.msra.mxu0 0
        %837 = vmatprep.subr.bf16.mxu0 0
        %838 = vmatpush1.bf16.msra.mxu0 0
        %839 = vmatprep.subr.bf16.mxu0 0
        %840 = vmatpush1.bf16.msra.mxu0 0
        %841 = vmatprep.subr.bf16.mxu0 0
        %842 = vmatpush1.bf16.msra.mxu0 0
        %843 = vmatprep.subr.bf16.mxu0 %v776
        %844 = vmatpush1.bf16.msra.mxu0 %v773
        %845 = vmatprep.subr.bf16.mxu0 %v739
        %846 = vmatpush1.bf16.msra.mxu0 %v738
        %847 = vmatprep.subr.bf16.mxu0 0
        %848 = vmatpush2.bf16.msra.mxu0 0
        %849 = vmatprep.subr.bf16.mxu0 0
        %850 = vmatpush2.bf16.msra.mxu0 0
        %851 = vmatprep.subr.bf16.mxu0 0
        %852 = vmatpush2.bf16.msra.mxu0 0
        %853 = vmatprep.subr.bf16.mxu0 0
        %854 = vmatpush2.bf16.msra.mxu0 0
        %855 = vmatprep.subr.bf16.mxu0 0
        %856 = vmatpush2.bf16.msra.mxu0 0
        %857 = vmatprep.subr.bf16.mxu0 0
        %858 = vmatpush2.bf16.msra.mxu0 0
        %859 = vmatprep.subr.bf16.mxu0 0
        %860 = vmatpush2.bf16.msra.mxu0 0
        %861 = vmatprep.subr.bf16.mxu0 0
        %862 = vmatpush2.bf16.msra.mxu0 0
        %863 = vmatprep.mubr.bf16.mxu0 0
        %864 = vmatmul.mubr.bf16.gmra.mxu0 %v760
        %v865 = vpop.f32.mrf.mxu0
        %v866 = vadd.f32 %v756, %v865
        %v867 = vpop.f32.mrf.mxu0
        %v868 = vadd.f32 %v756, %v867
        %v869 = vpop.f32.mrf.mxu0
        %v870 = vpop.f32.mrf.mxu0
        %871 = vdwg.mxu0
        %872 = vmatprep.subr.bf16.mxu0 0
        %873 = vmatpush1.bf16.msra.mxu0 0
        %874 = vmatprep.subr.bf16.mxu0 0
        %875 = vmatpush1.bf16.msra.mxu0 0
        %876 = vmatprep.subr.bf16.mxu0 0
        %877 = vmatpush1.bf16.msra.mxu0 0
        %878 = vmatprep.subr.bf16.mxu0 0
        %879 = vmatpush1.bf16.msra.mxu0 0
        %880 = vmatprep.subr.bf16.mxu0 0
        %881 = vmatpush1.bf16.msra.mxu0 0
        %882 = vmatprep.subr.bf16.mxu0 0
        %883 = vmatpush1.bf16.msra.mxu0 0
        %884 = vmatprep.subr.bf16.mxu0 %v782
        %885 = vmatpush1.bf16.msra.mxu0 %v779
        %886 = vmatprep.subr.bf16.mxu0 %v741
        %887 = vmatpush1.bf16.msra.mxu0 %v740
        %888 = vmatprep.subr.bf16.mxu0 0
        %889 = vmatpush2.bf16.msra.mxu0 0
        %890 = vmatprep.subr.bf16.mxu0 0
        %891 = vmatpush2.bf16.msra.mxu0 0
        %892 = vmatprep.subr.bf16.mxu0 0
        %893 = vmatpush2.bf16.msra.mxu0 0
        %894 = vmatprep.subr.bf16.mxu0 0
        %895 = vmatpush2.bf16.msra.mxu0 0
        %896 = vmatprep.subr.bf16.mxu0 0
        %897 = vmatpush2.bf16.msra.mxu0 0
        %898 = vmatprep.subr.bf16.mxu0 0
        %899 = vmatpush2.bf16.msra.mxu0 0
        %900 = vmatprep.subr.bf16.mxu0 0
        %901 = vmatpush2.bf16.msra.mxu0 0
        %902 = vmatprep.subr.bf16.mxu0 0
        %903 = vmatpush2.bf16.msra.mxu0 0
        %904 = vmatprep.mubr.bf16.mxu0 0
        %905 = vmatmul.mubr.bf16.gmra.mxu0 %v760
        %v906 = vpop.f32.mrf.mxu0
        %v907 = vadd.f32 %v756, %v906
        %v908 = vpop.f32.mrf.mxu0
        %v909 = vadd.f32 %v756, %v908
        %v910 = vpop.f32.mrf.mxu0
        %v911 = vpop.f32.mrf.mxu0
        %912 = vdwg.mxu0
        %913 = vmatprep.subr.bf16.mxu0 0
        %914 = vmatpush1.bf16.msra.mxu0 0
        %915 = vmatprep.subr.bf16.mxu0 0
        %916 = vmatpush1.bf16.msra.mxu0 0
        %917 = vmatprep.subr.bf16.mxu0 0
        %918 = vmatpush1.bf16.msra.mxu0 0
        %919 = vmatprep.subr.bf16.mxu0 0
        %920 = vmatpush1.bf16.msra.mxu0 0
        %921 = vmatprep.subr.bf16.mxu0 0
        %922 = vmatpush1.bf16.msra.mxu0 0
        %923 = vmatprep.subr.bf16.mxu0 0
        %924 = vmatpush1.bf16.msra.mxu0 0
        %925 = vmatprep.subr.bf16.mxu0 %v788
        %926 = vmatpush1.bf16.msra.mxu0 %v785
        %927 = vmatprep.subr.bf16.mxu0 %v743
        %928 = vmatpush1.bf16.msra.mxu0 %v742
        %929 = vmatprep.subr.bf16.mxu0 0
        %930 = vmatpush2.bf16.msra.mxu0 0
        %931 = vmatprep.subr.bf16.mxu0 0
        %932 = vmatpush2.bf16.msra.mxu0 0
        %933 = vmatprep.subr.bf16.mxu0 0
        %934 = vmatpush2.bf16.msra.mxu0 0
        %935 = vmatprep.subr.bf16.mxu0 0
        %936 = vmatpush2.bf16.msra.mxu0 0
        %937 = vmatprep.subr.bf16.mxu0 0
        %938 = vmatpush2.bf16.msra.mxu0 0
        %939 = vmatprep.subr.bf16.mxu0 0
        %940 = vmatpush2.bf16.msra.mxu0 0
        %941 = vmatprep.subr.bf16.mxu0 0
        %942 = vmatpush2.bf16.msra.mxu0 0
        %943 = vmatprep.subr.bf16.mxu0 0
        %944 = vmatpush2.bf16.msra.mxu0 0
        %945 = vmatprep.mubr.bf16.mxu0 0
        %946 = vmatmul.mubr.bf16.gmra.mxu0 %v760
        %v947 = vpop.f32.mrf.mxu0
        %v948 = vadd.f32 %v756, %v947
        %v949 = vpop.f32.mrf.mxu0
        %v950 = vadd.f32 %v756, %v949
        %v951 = vpop.f32.mrf.mxu0
        %v952 = vpop.f32.mrf.mxu0
        %953 = vdwg.mxu0
        %v954 = vmax.f32 %v825, 0.0
        %v955 = vmax.f32 %v827, 0.0
        %v956 = vmax.f32 %v866, 0.0
        %v957 = vmax.f32 %v868, 0.0
        %v958 = vmax.f32 %v907, 0.0
        %v959 = vmax.f32 %v909, 0.0
        %v960 = vmax.f32 %v948, 0.0
        %v961 = vmax.f32 %v950, 0.0
        %962 = vst [vmem:[#allocation3] sm:$0x3f] %v954
        %963 = vst [vmem:[#allocation3 + $0x8] sm:$0x3f] %v955
        %964 = vst [vmem:[#allocation3 + $0x10] sm:$0x3f] %v956
        %965 = vst [vmem:[#allocation3 + $0x18] sm:$0x3f] %v957
        %966 = vst [vmem:[#allocation3 + $0x20] sm:$0x3f] %v958
        %967 = vst [vmem:[#allocation3 + $0x28] sm:$0x3f] %v959
        %968 = vst [vmem:[#allocation3 + $0x30] sm:$0x3f] %v960
        %969 = vst [vmem:[#allocation3 + $0x38] sm:$0x3f] %v961
        %970 = vst [vmem:[#allocation3 + $0x40] sm:$0x3f] 0.0
        %v971 = vld [vmem:[#allocation3] sm:$0x3f]
        %v972 = vld [vmem:[#allocation3 + $0x8] sm:$0x3f]
        %v973 = vld [vmem:[#allocation3 + $0x10] sm:$0x3f]
        %v974 = vld [vmem:[#allocation3 + $0x18] sm:$0x3f]
        %v975 = vld [vmem:[#allocation3 + $0x20] sm:$0x3f]
        %v976 = vld [vmem:[#allocation3 + $0x28] sm:$0x3f]
        %v977 = vld [vmem:[#allocation3 + $0x30] sm:$0x3f]
        %v978 = vld [vmem:[#allocation3 + $0x38] sm:$0x3f]
        %v979 = vld [vmem:[#allocation3 + $0x40] sm:$0x3f]
        %989 = vrot.lane.b32.xlu0 %v971, 127
        %v990 = vpop.permute.xlu0 %989
        %991 = vrot.lane.b32.xlu0 %v972, 127
        %v992 = vpop.permute.xlu0 %991
        %993 = vrot.lane.b32.xlu0 %v973, 127
        %v994 = vpop.permute.xlu0 %993
        %995 = vrot.lane.b32.xlu0 %v974, 127
        %v996 = vpop.permute.xlu0 %995
        %997 = vrot.lane.b32.xlu0 %v975, 127
        %v998 = vpop.permute.xlu0 %997
        %999 = vrot.lane.b32.xlu0 %v976, 127
        %v1000 = vpop.permute.xlu0 %999
        %1001 = vrot.lane.b32.xlu0 %v977, 127
        %v1002 = vpop.permute.xlu0 %1001
        %1003 = vrot.lane.b32.xlu0 %v978, 127
        %v1004 = vpop.permute.xlu0 %1003
        %1005 = vrot.lane.b32.xlu0 %v979, 127
        %v1006 = vpop.permute.xlu0 %1005
        %v1007 = vsel %vm423, %v990, %v992
        %v1008 = vsel %vm423, %v992, %v994
        %v1009 = vsel %vm423, %v994, %v996
        %v1010 = vsel %vm423, %v996, %v998
        %v1011 = vsel %vm423, %v998, %v1000
        %v1012 = vsel %vm423, %v1000, %v1002
        %v1013 = vsel %vm423, %v1002, %v1004
        %v1014 = vsel %vm423, %v1004, %v1006
        %v1023 = vmax.f32 %v971, %v1007
        %v1024 = vmax.f32 %v972, %v1008
        %v1025 = vmax.f32 %v973, %v1009
        %v1026 = vmax.f32 %v974, %v1010
        %v1027 = vmax.f32 %v975, %v1011
        %v1028 = vmax.f32 %v976, %v1012
        %v1029 = vmax.f32 %v977, %v1013
        %v1030 = vmax.f32 %v978, %v1014
        %v1032 = vmax.f32 %v979, %v1006
        %1042 = vrot.lane.b32.xlu0 %v1023, 96
        %v1043 = vpop.permute.xlu0 %1042
        %1044 = vrot.lane.b32.xlu0 %v1024, 96
        %v1045 = vpop.permute.xlu0 %1044
        %1046 = vrot.lane.b32.xlu0 %v1025, 96
        %v1047 = vpop.permute.xlu0 %1046
        %1048 = vrot.lane.b32.xlu0 %v1026, 96
        %v1049 = vpop.permute.xlu0 %1048
        %1050 = vrot.lane.b32.xlu0 %v1027, 96
        %v1051 = vpop.permute.xlu0 %1050
        %1052 = vrot.lane.b32.xlu0 %v1028, 96
        %v1053 = vpop.permute.xlu0 %1052
        %1054 = vrot.lane.b32.xlu0 %v1029, 96
        %v1055 = vpop.permute.xlu0 %1054
        %1056 = vrot.lane.b32.xlu0 %v1030, 96
        %v1057 = vpop.permute.xlu0 %1056
        %1058 = vrot.lane.b32.xlu0 %v1032, 96
        %v1059 = vpop.permute.xlu0 %1058
        %v1060 = vsel %vm475, %v1043, %v1045
        %v1061 = vsel %vm475, %v1045, %v1047
        %v1062 = vsel %vm475, %v1047, %v1049
        %v1063 = vsel %vm475, %v1049, %v1051
        %v1064 = vsel %vm475, %v1051, %v1053
        %v1065 = vsel %vm475, %v1053, %v1055
        %v1066 = vsel %vm475, %v1055, %v1057
        %v1067 = vsel %vm475, %v1057, %v1059
        %v1076 = vmax.f32 %v1023, %v1060
        %v1077 = vmax.f32 %v1024, %v1061
        %v1078 = vmax.f32 %v1025, %v1062
        %v1079 = vmax.f32 %v1026, %v1063
        %v1080 = vmax.f32 %v1027, %v1064
        %v1081 = vmax.f32 %v1028, %v1065
        %v1082 = vmax.f32 %v1029, %v1066
        %v1083 = vmax.f32 %v1030, %v1067
        %1084 = vst [vmem:[#allocation4] sm:$0x3f] %v1076
        %1085 = vst [vmem:[#allocation4 + $0x8] sm:$0x3f] %v1077
        %1086 = vst [vmem:[#allocation4 + $0x10] sm:$0x3f] %v1078
        %1087 = vst [vmem:[#allocation4 + $0x18] sm:$0x3f] %v1079
        %1088 = vst [vmem:[#allocation4 + $0x20] sm:$0x3f] %v1080
        %1089 = vst [vmem:[#allocation4 + $0x28] sm:$0x3f] %v1081
        %1090 = vst [vmem:[#allocation4 + $0x30] sm:$0x3f] %v1082
        %1091 = vst [vmem:[#allocation4 + $0x38] sm:$0x3f] %v1083
        %1092 = vst [vmem:[#allocation4 + $0x40] sm:$0x3f] 0.0
        %1093 = vst [vmem:[#allocation4 + $0x48] sm:$0x3f] 0.0
        %1094 = vst [vmem:[#allocation4 + $0x50] sm:$0x3f] 0.0
        %v1095 = vld [vmem:[#allocation4] sm:$0x3f]
        %v1096 = vld [vmem:[#allocation4 + $0x8] sm:$0x3f]
        %v1097 = vld [vmem:[#allocation4 + $0x10] sm:$0x3f]
        %v1098 = vld [vmem:[#allocation4 + $0x18] sm:$0x3f]
        %v1099 = vld [vmem:[#allocation4 + $0x20] sm:$0x3f]
        %v1100 = vld [vmem:[#allocation4 + $0x28] sm:$0x3f]
        %v1101 = vld [vmem:[#allocation4 + $0x30] sm:$0x3f]
        %v1102 = vld [vmem:[#allocation4 + $0x38] sm:$0x3f]
        %1103 = vst [vmem:[#allocation5] sm:$0x3f] %v1095
        %1104 = vst [vmem:[#allocation5 + $0x8] sm:$0x3f] %v1096
        %1105 = vst [vmem:[#allocation5 + $0x10] sm:$0x3f] %v1097
        %1106 = vst [vmem:[#allocation5 + $0x18] sm:$0x3f] %v1098
        %1107 = vst [vmem:[#allocation5 + $0x20] sm:$0x3f] %v1099
        %1108 = vst [vmem:[#allocation5 + $0x28] sm:$0x3f] %v1100
        %1109 = vst [vmem:[#allocation5 + $0x30] sm:$0x3f] %v1101
        %1110 = vst [vmem:[#allocation5 + $0x38] sm:$0x3f] %v1102
        %v1111 = vld [vmem:[#allocation4] sm:$0x3f]
        %v1112 = vld [vmem:[#allocation4 + $0x8] sm:$0x3f]
        %v1113 = vld [vmem:[#allocation4 + $0x10] sm:$0x3f]
        %v1114 = vld [vmem:[#allocation4 + $0x18] sm:$0x3f]
        %v1115 = vld [vmem:[#allocation4 + $0x20] sm:$0x3f]
        %v1116 = vld [vmem:[#allocation4 + $0x28] sm:$0x3f]
        %v1117 = vld [vmem:[#allocation4 + $0x30] sm:$0x3f]
        %v1118 = vld [vmem:[#allocation4 + $0x38] sm:$0x3f]
        %v1119 = vld [vmem:[#allocation4 + $0x40] sm:$0x3f]
        %v1129 = vrot.slane %v1111, 2
        %v1130 = vrot.slane %v1112, 2
        %v1131 = vrot.slane %v1113, 2
        %v1132 = vrot.slane %v1114, 2
        %v1133 = vrot.slane %v1115, 2
        %v1134 = vrot.slane %v1116, 2
        %v1135 = vrot.slane %v1117, 2
        %v1136 = vrot.slane %v1118, 2
        %v1137 = vrot.slane %v1119, 2
        %1138 = vrot.lane.b32.xlu0 %v1129, 126
        %v1139 = vpop.permute.xlu0 %1138
        %1140 = vrot.lane.b32.xlu0 %v1130, 126
        %v1141 = vpop.permute.xlu0 %1140
        %1142 = vrot.lane.b32.xlu0 %v1131, 126
        %v1143 = vpop.permute.xlu0 %1142
        %1144 = vrot.lane.b32.xlu0 %v1132, 126
        %v1145 = vpop.permute.xlu0 %1144
        %1146 = vrot.lane.b32.xlu0 %v1133, 126
        %v1147 = vpop.permute.xlu0 %1146
        %1148 = vrot.lane.b32.xlu0 %v1134, 126
        %v1149 = vpop.permute.xlu0 %1148
        %1150 = vrot.lane.b32.xlu0 %v1135, 126
        %v1151 = vpop.permute.xlu0 %1150
        %1152 = vrot.lane.b32.xlu0 %v1136, 126
        %v1153 = vpop.permute.xlu0 %1152
        %1154 = vrot.lane.b32.xlu0 %v1137, 126
        %v1155 = vpop.permute.xlu0 %1154
        %v1156 = vsel %vm436, %v1139, %v1141
        %v1157 = vsel %vm436, %v1141, %v1143
        %v1158 = vsel %vm436, %v1143, %v1145
        %v1159 = vsel %vm436, %v1145, %v1147
        %v1160 = vsel %vm436, %v1147, %v1149
        %v1161 = vsel %vm436, %v1149, %v1151
        %v1162 = vsel %vm436, %v1151, %v1153
        %v1163 = vsel %vm436, %v1153, %v1155
        %1172 = vst [vmem:[#allocation5] sm:$0xc0] %v1156
        %1173 = vst [vmem:[#allocation5 + $0x8] sm:$0xc0] %v1157
        %1174 = vst [vmem:[#allocation5 + $0x10] sm:$0xc0] %v1158
        %1175 = vst [vmem:[#allocation5 + $0x18] sm:$0xc0] %v1159
        %1176 = vst [vmem:[#allocation5 + $0x20] sm:$0xc0] %v1160
        %1177 = vst [vmem:[#allocation5 + $0x28] sm:$0xc0] %v1161
        %1178 = vst [vmem:[#allocation5 + $0x30] sm:$0xc0] %v1162
        %1179 = vst [vmem:[#allocation5 + $0x38] sm:$0xc0] %v1163
        %1180 = vst [vmem:[#allocation5 + $0x40] sm:$0xf] %v1156
        %1181 = vst [vmem:[#allocation5 + $0x48] sm:$0xf] %v1157
        %1182 = vst [vmem:[#allocation5 + $0x50] sm:$0xf] %v1158
        %1183 = vst [vmem:[#allocation5 + $0x58] sm:$0xf] %v1159
        %1184 = vst [vmem:[#allocation5 + $0x60] sm:$0xf] %v1160
        %1185 = vst [vmem:[#allocation5 + $0x68] sm:$0xf] %v1161
        %1186 = vst [vmem:[#allocation5 + $0x70] sm:$0xf] %v1162
        %1187 = vst [vmem:[#allocation5 + $0x78] sm:$0xf] %v1163
        %v1188 = vld [vmem:[#allocation4] sm:$0x3f]
        %v1189 = vld [vmem:[#allocation4 + $0x8] sm:$0x3f]
        %v1190 = vld [vmem:[#allocation4 + $0x10] sm:$0x3f]
        %v1191 = vld [vmem:[#allocation4 + $0x18] sm:$0x3f]
        %v1192 = vld [vmem:[#allocation4 + $0x20] sm:$0x3f]
        %v1193 = vld [vmem:[#allocation4 + $0x28] sm:$0x3f]
        %v1194 = vld [vmem:[#allocation4 + $0x30] sm:$0x3f]
        %v1195 = vld [vmem:[#allocation4 + $0x38] sm:$0x3f]
        %v1196 = vld [vmem:[#allocation4 + $0x40] sm:$0x3f]
        %v1206 = vrot.slane %v1188, 4
        %v1207 = vrot.slane %v1189, 4
        %v1208 = vrot.slane %v1190, 4
        %v1209 = vrot.slane %v1191, 4
        %v1210 = vrot.slane %v1192, 4
        %v1211 = vrot.slane %v1193, 4
        %v1212 = vrot.slane %v1194, 4
        %v1213 = vrot.slane %v1195, 4
        %v1214 = vrot.slane %v1196, 4
        %1215 = vrot.lane.b32.xlu0 %v1206, 124
        %v1216 = vpop.permute.xlu0 %1215
        %1217 = vrot.lane.b32.xlu0 %v1207, 124
        %v1218 = vpop.permute.xlu0 %1217
        %1219 = vrot.lane.b32.xlu0 %v1208, 124
        %v1220 = vpop.permute.xlu0 %1219
        %1221 = vrot.lane.b32.xlu0 %v1209, 124
        %v1222 = vpop.permute.xlu0 %1221
        %1223 = vrot.lane.b32.xlu0 %v1210, 124
        %v1224 = vpop.permute.xlu0 %1223
        %1225 = vrot.lane.b32.xlu0 %v1211, 124
        %v1226 = vpop.permute.xlu0 %1225
        %1227 = vrot.lane.b32.xlu0 %v1212, 124
        %v1228 = vpop.permute.xlu0 %1227
        %1229 = vrot.lane.b32.xlu0 %v1213, 124
        %v1230 = vpop.permute.xlu0 %1229
        %1231 = vrot.lane.b32.xlu0 %v1214, 124
        %v1232 = vpop.permute.xlu0 %1231
        %v1233 = vsel %vm462, %v1216, %v1218
        %v1234 = vsel %vm462, %v1218, %v1220
        %v1235 = vsel %vm462, %v1220, %v1222
        %v1236 = vsel %vm462, %v1222, %v1224
        %v1237 = vsel %vm462, %v1224, %v1226
        %v1238 = vsel %vm462, %v1226, %v1228
        %v1239 = vsel %vm462, %v1228, %v1230
        %v1240 = vsel %vm462, %v1230, %v1232
        %1249 = vst [vmem:[#allocation5 + $0x40] sm:$0xf0] %v1233
        %1250 = vst [vmem:[#allocation5 + $0x48] sm:$0xf0] %v1234
        %1251 = vst [vmem:[#allocation5 + $0x50] sm:$0xf0] %v1235
        %1252 = vst [vmem:[#allocation5 + $0x58] sm:$0xf0] %v1236
        %1253 = vst [vmem:[#allocation5 + $0x60] sm:$0xf0] %v1237
        %1254 = vst [vmem:[#allocation5 + $0x68] sm:$0xf0] %v1238
        %1255 = vst [vmem:[#allocation5 + $0x70] sm:$0xf0] %v1239
        %1256 = vst [vmem:[#allocation5 + $0x78] sm:$0xf0] %v1240
        %1257 = vst [vmem:[#allocation5 + $0x80] sm:$0x3] %v1233
        %1258 = vst [vmem:[#allocation5 + $0x88] sm:$0x3] %v1234
        %1259 = vst [vmem:[#allocation5 + $0x90] sm:$0x3] %v1235
        %1260 = vst [vmem:[#allocation5 + $0x98] sm:$0x3] %v1236
        %1261 = vst [vmem:[#allocation5 + $0xa0] sm:$0x3] %v1237
        %1262 = vst [vmem:[#allocation5 + $0xa8] sm:$0x3] %v1238
        %1263 = vst [vmem:[#allocation5 + $0xb0] sm:$0x3] %v1239
        %1264 = vst [vmem:[#allocation5 + $0xb8] sm:$0x3] %v1240
        %v1265 = vld [vmem:[#allocation4] sm:$0x3f]
        %v1266 = vld [vmem:[#allocation4 + $0x8] sm:$0x3f]
        %v1267 = vld [vmem:[#allocation4 + $0x10] sm:$0x3f]
        %v1268 = vld [vmem:[#allocation4 + $0x18] sm:$0x3f]
        %v1269 = vld [vmem:[#allocation4 + $0x20] sm:$0x3f]
        %v1270 = vld [vmem:[#allocation4 + $0x28] sm:$0x3f]
        %v1271 = vld [vmem:[#allocation4 + $0x30] sm:$0x3f]
        %v1272 = vld [vmem:[#allocation4 + $0x38] sm:$0x3f]
        %v1273 = vld [vmem:[#allocation4 + $0x40] sm:$0x3f]
        %v1283 = vrot.slane %v1265, 6
        %v1284 = vrot.slane %v1266, 6
        %v1285 = vrot.slane %v1267, 6
        %v1286 = vrot.slane %v1268, 6
        %v1287 = vrot.slane %v1269, 6
        %v1288 = vrot.slane %v1270, 6
        %v1289 = vrot.slane %v1271, 6
        %v1290 = vrot.slane %v1272, 6
        %v1291 = vrot.slane %v1273, 6
        %1292 = vrot.lane.b32.xlu0 %v1283, 122
        %v1293 = vpop.permute.xlu0 %1292
        %1294 = vrot.lane.b32.xlu0 %v1284, 122
        %v1295 = vpop.permute.xlu0 %1294
        %1296 = vrot.lane.b32.xlu0 %v1285, 122
        %v1297 = vpop.permute.xlu0 %1296
        %1298 = vrot.lane.b32.xlu0 %v1286, 122
        %v1299 = vpop.permute.xlu0 %1298
        %1300 = vrot.lane.b32.xlu0 %v1287, 122
        %v1301 = vpop.permute.xlu0 %1300
        %1302 = vrot.lane.b32.xlu0 %v1288, 122
        %v1303 = vpop.permute.xlu0 %1302
        %1304 = vrot.lane.b32.xlu0 %v1289, 122
        %v1305 = vpop.permute.xlu0 %1304
        %1306 = vrot.lane.b32.xlu0 %v1290, 122
        %v1307 = vpop.permute.xlu0 %1306
        %1308 = vrot.lane.b32.xlu0 %v1291, 122
        %v1309 = vpop.permute.xlu0 %1308
        %vm1310 = vcmask 998400
        %v1311 = vsel %vm1310, %v1293, %v1295
        %v1312 = vsel %vm1310, %v1295, %v1297
        %v1313 = vsel %vm1310, %v1297, %v1299
        %v1314 = vsel %vm1310, %v1299, %v1301
        %v1315 = vsel %vm1310, %v1301, %v1303
        %v1316 = vsel %vm1310, %v1303, %v1305
        %v1317 = vsel %vm1310, %v1305, %v1307
        %v1318 = vsel %vm1310, %v1307, %v1309
        %1327 = vst [vmem:[#allocation5 + $0x80] sm:$0xfc] %v1311
        %1328 = vst [vmem:[#allocation5 + $0x88] sm:$0xfc] %v1312
        %1329 = vst [vmem:[#allocation5 + $0x90] sm:$0xfc] %v1313
        %1330 = vst [vmem:[#allocation5 + $0x98] sm:$0xfc] %v1314
        %1331 = vst [vmem:[#allocation5 + $0xa0] sm:$0xfc] %v1315
        %1332 = vst [vmem:[#allocation5 + $0xa8] sm:$0xfc] %v1316
        %1333 = vst [vmem:[#allocation5 + $0xb0] sm:$0xfc] %v1317
        %1334 = vst [vmem:[#allocation5 + $0xb8] sm:$0xfc] %v1318
        %v1335 = vld [vmem:[#allocation4] sm:$0x3f]
        %v1336 = vld [vmem:[#allocation4 + $0x8] sm:$0x3f]
        %v1337 = vld [vmem:[#allocation4 + $0x10] sm:$0x3f]
        %v1338 = vld [vmem:[#allocation4 + $0x18] sm:$0x3f]
        %v1339 = vld [vmem:[#allocation4 + $0x20] sm:$0x3f]
        %v1340 = vld [vmem:[#allocation4 + $0x28] sm:$0x3f]
        %v1341 = vld [vmem:[#allocation4 + $0x30] sm:$0x3f]
        %v1342 = vld [vmem:[#allocation4 + $0x38] sm:$0x3f]
        %v1343 = vld [vmem:[#allocation4 + $0x40] sm:$0x3f]
        %1353 = vrot.lane.b32.xlu0 %v1335, 120
        %v1354 = vpop.permute.xlu0 %1353
        %1355 = vrot.lane.b32.xlu0 %v1336, 120
        %v1356 = vpop.permute.xlu0 %1355
        %1357 = vrot.lane.b32.xlu0 %v1337, 120
        %v1358 = vpop.permute.xlu0 %1357
        %1359 = vrot.lane.b32.xlu0 %v1338, 120
        %v1360 = vpop.permute.xlu0 %1359
        %1361 = vrot.lane.b32.xlu0 %v1339, 120
        %v1362 = vpop.permute.xlu0 %1361
        %1363 = vrot.lane.b32.xlu0 %v1340, 120
        %v1364 = vpop.permute.xlu0 %1363
        %1365 = vrot.lane.b32.xlu0 %v1341, 120
        %v1366 = vpop.permute.xlu0 %1365
        %1367 = vrot.lane.b32.xlu0 %v1342, 120
        %v1368 = vpop.permute.xlu0 %1367
        %1369 = vrot.lane.b32.xlu0 %v1343, 120
        %v1370 = vpop.permute.xlu0 %1369
        %vm1371 = vcmask 982016
        %v1372 = vsel %vm1371, %v1354, %v1356
        %v1373 = vsel %vm1371, %v1356, %v1358
        %v1374 = vsel %vm1371, %v1358, %v1360
        %v1375 = vsel %vm1371, %v1360, %v1362
        %v1376 = vsel %vm1371, %v1362, %v1364
        %v1377 = vsel %vm1371, %v1364, %v1366
        %v1378 = vsel %vm1371, %v1366, %v1368
        %v1379 = vsel %vm1371, %v1368, %v1370
        %1388 = vst [vmem:[#allocation5 + $0xc0] sm:$0x3f] %v1372
        %1389 = vst [vmem:[#allocation5 + $0xc8] sm:$0x3f] %v1373
        %1390 = vst [vmem:[#allocation5 + $0xd0] sm:$0x3f] %v1374
        %1391 = vst [vmem:[#allocation5 + $0xd8] sm:$0x3f] %v1375
        %1392 = vst [vmem:[#allocation5 + $0xe0] sm:$0x3f] %v1376
        %1393 = vst [vmem:[#allocation5 + $0xe8] sm:$0x3f] %v1377
        %1394 = vst [vmem:[#allocation5 + $0xf0] sm:$0x3f] %v1378
        %1395 = vst [vmem:[#allocation5 + $0xf8] sm:$0x3f] %v1379
        %v1396 = vld [vmem:[#allocation4] sm:$0x3f]
        %v1397 = vld [vmem:[#allocation4 + $0x8] sm:$0x3f]
        %v1398 = vld [vmem:[#allocation4 + $0x10] sm:$0x3f]
        %v1399 = vld [vmem:[#allocation4 + $0x18] sm:$0x3f]
        %v1400 = vld [vmem:[#allocation4 + $0x20] sm:$0x3f]
        %v1401 = vld [vmem:[#allocation4 + $0x28] sm:$0x3f]
        %v1402 = vld [vmem:[#allocation4 + $0x30] sm:$0x3f]
        %v1403 = vld [vmem:[#allocation4 + $0x38] sm:$0x3f]
        %v1404 = vld [vmem:[#allocation4 + $0x40] sm:$0x3f]
        %v1414 = vrot.slane %v1396, 2
        %v1415 = vrot.slane %v1397, 2
        %v1416 = vrot.slane %v1398, 2
        %v1417 = vrot.slane %v1399, 2
        %v1418 = vrot.slane %v1400, 2
        %v1419 = vrot.slane %v1401, 2
        %v1420 = vrot.slane %v1402, 2
        %v1421 = vrot.slane %v1403, 2
        %v1422 = vrot.slane %v1404, 2
        %1423 = vrot.lane.b32.xlu0 %v1414, 64
        %v1424 = vpop.permute.xlu0 %1423
        %1425 = vrot.lane.b32.xlu0 %v1415, 64
        %v1426 = vpop.permute.xlu0 %1425
        %1427 = vrot.lane.b32.xlu0 %v1416, 64
        %v1428 = vpop.permute.xlu0 %1427
        %1429 = vrot.lane.b32.xlu0 %v1417, 64
        %v1430 = vpop.permute.xlu0 %1429
        %1431 = vrot.lane.b32.xlu0 %v1418, 64
        %v1432 = vpop.permute.xlu0 %1431
        %1433 = vrot.lane.b32.xlu0 %v1419, 64
        %v1434 = vpop.permute.xlu0 %1433
        %1435 = vrot.lane.b32.xlu0 %v1420, 64
        %v1436 = vpop.permute.xlu0 %1435
        %1437 = vrot.lane.b32.xlu0 %v1421, 64
        %v1438 = vpop.permute.xlu0 %1437
        %1439 = vrot.lane.b32.xlu0 %v1422, 64
        %v1440 = vpop.permute.xlu0 %1439
        %v1441 = vsel %vm540, %v1424, %v1426
        %v1442 = vsel %vm540, %v1426, %v1428
        %v1443 = vsel %vm540, %v1428, %v1430
        %v1444 = vsel %vm540, %v1430, %v1432
        %v1445 = vsel %vm540, %v1432, %v1434
        %v1446 = vsel %vm540, %v1434, %v1436
        %v1447 = vsel %vm540, %v1436, %v1438
        %v1448 = vsel %vm540, %v1438, %v1440
        %1457 = vst [vmem:[#allocation5 + $0xc0] sm:$0xc0] %v1441
        %1458 = vst [vmem:[#allocation5 + $0xc8] sm:$0xc0] %v1442
        %1459 = vst [vmem:[#allocation5 + $0xd0] sm:$0xc0] %v1443
        %1460 = vst [vmem:[#allocation5 + $0xd8] sm:$0xc0] %v1444
        %1461 = vst [vmem:[#allocation5 + $0xe0] sm:$0xc0] %v1445
        %1462 = vst [vmem:[#allocation5 + $0xe8] sm:$0xc0] %v1446
        %1463 = vst [vmem:[#allocation5 + $0xf0] sm:$0xc0] %v1447
        %1464 = vst [vmem:[#allocation5 + $0xf8] sm:$0xc0] %v1448
        %1465 = vst [vmem:[#allocation5 + $0x100] sm:$0xf] %v1441
        %1466 = vst [vmem:[#allocation5 + $0x108] sm:$0xf] %v1442
        %1467 = vst [vmem:[#allocation5 + $0x110] sm:$0xf] %v1443
        %1468 = vst [vmem:[#allocation5 + $0x118] sm:$0xf] %v1444
        %1469 = vst [vmem:[#allocation5 + $0x120] sm:$0xf] %v1445
        %1470 = vst [vmem:[#allocation5 + $0x128] sm:$0xf] %v1446
        %1471 = vst [vmem:[#allocation5 + $0x130] sm:$0xf] %v1447
        %1472 = vst [vmem:[#allocation5 + $0x138] sm:$0xf] %v1448
        %v1473 = vld [vmem:[#allocation4] sm:$0x3f]
        %v1474 = vld [vmem:[#allocation4 + $0x8] sm:$0x3f]
        %v1475 = vld [vmem:[#allocation4 + $0x10] sm:$0x3f]
        %v1476 = vld [vmem:[#allocation4 + $0x18] sm:$0x3f]
        %v1477 = vld [vmem:[#allocation4 + $0x20] sm:$0x3f]
        %v1478 = vld [vmem:[#allocation4 + $0x28] sm:$0x3f]
        %v1479 = vld [vmem:[#allocation4 + $0x30] sm:$0x3f]
        %v1480 = vld [vmem:[#allocation4 + $0x38] sm:$0x3f]
        %v1481 = vld [vmem:[#allocation4 + $0x40] sm:$0x3f]
        %v1491 = vrot.slane %v1473, 4
        %v1492 = vrot.slane %v1474, 4
        %v1493 = vrot.slane %v1475, 4
        %v1494 = vrot.slane %v1476, 4
        %v1495 = vrot.slane %v1477, 4
        %v1496 = vrot.slane %v1478, 4
        %v1497 = vrot.slane %v1479, 4
        %v1498 = vrot.slane %v1480, 4
        %v1499 = vrot.slane %v1481, 4
        %1500 = vrot.lane.b32.xlu0 %v1491, 62
        %v1501 = vpop.permute.xlu0 %1500
        %1502 = vrot.lane.b32.xlu0 %v1492, 62
        %v1503 = vpop.permute.xlu0 %1502
        %1504 = vrot.lane.b32.xlu0 %v1493, 62
        %v1505 = vpop.permute.xlu0 %1504
        %1506 = vrot.lane.b32.xlu0 %v1494, 62
        %v1507 = vpop.permute.xlu0 %1506
        %1508 = vrot.lane.b32.xlu0 %v1495, 62
        %v1509 = vpop.permute.xlu0 %1508
        %1510 = vrot.lane.b32.xlu0 %v1496, 62
        %v1511 = vpop.permute.xlu0 %1510
        %1512 = vrot.lane.b32.xlu0 %v1497, 62
        %v1513 = vpop.permute.xlu0 %1512
        %1514 = vrot.lane.b32.xlu0 %v1498, 62
        %v1515 = vpop.permute.xlu0 %1514
        %1516 = vrot.lane.b32.xlu0 %v1499, 62
        %v1517 = vpop.permute.xlu0 %1516
        %v1518 = vsel %vm566, %v1501, %v1503
        %v1519 = vsel %vm566, %v1503, %v1505
        %v1520 = vsel %vm566, %v1505, %v1507
        %v1521 = vsel %vm566, %v1507, %v1509
        %v1522 = vsel %vm566, %v1509, %v1511
        %v1523 = vsel %vm566, %v1511, %v1513
        %v1524 = vsel %vm566, %v1513, %v1515
        %v1525 = vsel %vm566, %v1515, %v1517
        %1534 = vst [vmem:[#allocation5 + $0x100] sm:$0xf0] %v1518
        %1535 = vst [vmem:[#allocation5 + $0x108] sm:$0xf0] %v1519
        %1536 = vst [vmem:[#allocation5 + $0x110] sm:$0xf0] %v1520
        %1537 = vst [vmem:[#allocation5 + $0x118] sm:$0xf0] %v1521
        %1538 = vst [vmem:[#allocation5 + $0x120] sm:$0xf0] %v1522
        %1539 = vst [vmem:[#allocation5 + $0x128] sm:$0xf0] %v1523
        %1540 = vst [vmem:[#allocation5 + $0x130] sm:$0xf0] %v1524
        %1541 = vst [vmem:[#allocation5 + $0x138] sm:$0xf0] %v1525
        %1542 = vst [vmem:[#allocation5 + $0x140] sm:$0x3] %v1518
        %1543 = vst [vmem:[#allocation5 + $0x148] sm:$0x3] %v1519
        %1544 = vst [vmem:[#allocation5 + $0x150] sm:$0x3] %v1520
        %1545 = vst [vmem:[#allocation5 + $0x158] sm:$0x3] %v1521
        %1546 = vst [vmem:[#allocation5 + $0x160] sm:$0x3] %v1522
        %1547 = vst [vmem:[#allocation5 + $0x168] sm:$0x3] %v1523
        %1548 = vst [vmem:[#allocation5 + $0x170] sm:$0x3] %v1524
        %1549 = vst [vmem:[#allocation5 + $0x178] sm:$0x3] %v1525
        %v1550 = vld [vmem:[#allocation4] sm:$0x3f]
        %v1551 = vld [vmem:[#allocation4 + $0x8] sm:$0x3f]
        %v1552 = vld [vmem:[#allocation4 + $0x10] sm:$0x3f]
        %v1553 = vld [vmem:[#allocation4 + $0x18] sm:$0x3f]
        %v1554 = vld [vmem:[#allocation4 + $0x20] sm:$0x3f]
        %v1555 = vld [vmem:[#allocation4 + $0x28] sm:$0x3f]
        %v1556 = vld [vmem:[#allocation4 + $0x30] sm:$0x3f]
        %v1557 = vld [vmem:[#allocation4 + $0x38] sm:$0x3f]
        %v1558 = vld [vmem:[#allocation4 + $0x40] sm:$0x3f]
        %v1568 = vrot.slane %v1550, 6
        %v1569 = vrot.slane %v1551, 6
        %v1570 = vrot.slane %v1552, 6
        %v1571 = vrot.slane %v1553, 6
        %v1572 = vrot.slane %v1554, 6
        %v1573 = vrot.slane %v1555, 6
        %v1574 = vrot.slane %v1556, 6
        %v1575 = vrot.slane %v1557, 6
        %v1576 = vrot.slane %v1558, 6
        %1577 = vrot.lane.b32.xlu0 %v1568, 60
        %v1578 = vpop.permute.xlu0 %1577
        %1579 = vrot.lane.b32.xlu0 %v1569, 60
        %v1580 = vpop.permute.xlu0 %1579
        %1581 = vrot.lane.b32.xlu0 %v1570, 60
        %v1582 = vpop.permute.xlu0 %1581
        %1583 = vrot.lane.b32.xlu0 %v1571, 60
        %v1584 = vpop.permute.xlu0 %1583
        %1585 = vrot.lane.b32.xlu0 %v1572, 60
        %v1586 = vpop.permute.xlu0 %1585
        %1587 = vrot.lane.b32.xlu0 %v1573, 60
        %v1588 = vpop.permute.xlu0 %1587
        %1589 = vrot.lane.b32.xlu0 %v1574, 60
        %v1590 = vpop.permute.xlu0 %1589
        %1591 = vrot.lane.b32.xlu0 %v1575, 60
        %v1592 = vpop.permute.xlu0 %1591
        %1593 = vrot.lane.b32.xlu0 %v1576, 60
        %v1594 = vpop.permute.xlu0 %1593
        %v1595 = vsel %vm592, %v1578, %v1580
        %v1596 = vsel %vm592, %v1580, %v1582
        %v1597 = vsel %vm592, %v1582, %v1584
        %v1598 = vsel %vm592, %v1584, %v1586
        %v1599 = vsel %vm592, %v1586, %v1588
        %v1600 = vsel %vm592, %v1588, %v1590
        %v1601 = vsel %vm592, %v1590, %v1592
        %v1602 = vsel %vm592, %v1592, %v1594
        %1611 = vst [vmem:[#allocation5 + $0x140] sm:$0xfc] %v1595
        %1612 = vst [vmem:[#allocation5 + $0x148] sm:$0xfc] %v1596
        %1613 = vst [vmem:[#allocation5 + $0x150] sm:$0xfc] %v1597
        %1614 = vst [vmem:[#allocation5 + $0x158] sm:$0xfc] %v1598
        %1615 = vst [vmem:[#allocation5 + $0x160] sm:$0xfc] %v1599
        %1616 = vst [vmem:[#allocation5 + $0x168] sm:$0xfc] %v1600
        %1617 = vst [vmem:[#allocation5 + $0x170] sm:$0xfc] %v1601
        %1618 = vst [vmem:[#allocation5 + $0x178] sm:$0xfc] %v1602
        %v1619 = vld [vmem:[#allocation4] sm:$0x3f]
        %v1620 = vld [vmem:[#allocation4 + $0x8] sm:$0x3f]
        %v1621 = vld [vmem:[#allocation4 + $0x10] sm:$0x3f]
        %v1622 = vld [vmem:[#allocation4 + $0x18] sm:$0x3f]
        %v1623 = vld [vmem:[#allocation4 + $0x20] sm:$0x3f]
        %v1624 = vld [vmem:[#allocation4 + $0x28] sm:$0x3f]
        %v1625 = vld [vmem:[#allocation4 + $0x30] sm:$0x3f]
        %v1626 = vld [vmem:[#allocation4 + $0x38] sm:$0x3f]
        %v1627 = vld [vmem:[#allocation4 + $0x40] sm:$0x3f]
        %1637 = vrot.lane.b32.xlu0 %v1619, 58
        %v1638 = vpop.permute.xlu0 %1637
        %1639 = vrot.lane.b32.xlu0 %v1620, 58
        %v1640 = vpop.permute.xlu0 %1639
        %1641 = vrot.lane.b32.xlu0 %v1621, 58
        %v1642 = vpop.permute.xlu0 %1641
        %1643 = vrot.lane.b32.xlu0 %v1622, 58
        %v1644 = vpop.permute.xlu0 %1643
        %1645 = vrot.lane.b32.xlu0 %v1623, 58
        %v1646 = vpop.permute.xlu0 %1645
        %1647 = vrot.lane.b32.xlu0 %v1624, 58
        %v1648 = vpop.permute.xlu0 %1647
        %1649 = vrot.lane.b32.xlu0 %v1625, 58
        %v1650 = vpop.permute.xlu0 %1649
        %1651 = vrot.lane.b32.xlu0 %v1626, 58
        %v1652 = vpop.permute.xlu0 %1651
        %1653 = vrot.lane.b32.xlu0 %v1627, 58
        %v1654 = vpop.permute.xlu0 %1653
        %vm1655 = vcmask 474112
        %v1656 = vsel %vm1655, %v1638, %v1640
        %v1657 = vsel %vm1655, %v1640, %v1642
        %v1658 = vsel %vm1655, %v1642, %v1644
        %v1659 = vsel %vm1655, %v1644, %v1646
        %v1660 = vsel %vm1655, %v1646, %v1648
        %v1661 = vsel %vm1655, %v1648, %v1650
        %v1662 = vsel %vm1655, %v1650, %v1652
        %v1663 = vsel %vm1655, %v1652, %v1654
        %1672 = vst [vmem:[#allocation5 + $0x180] sm:$0x3f] %v1656
        %1673 = vst [vmem:[#allocation5 + $0x188] sm:$0x3f] %v1657
        %1674 = vst [vmem:[#allocation5 + $0x190] sm:$0x3f] %v1658
        %1675 = vst [vmem:[#allocation5 + $0x198] sm:$0x3f] %v1659
        %1676 = vst [vmem:[#allocation5 + $0x1a0] sm:$0x3f] %v1660
        %1677 = vst [vmem:[#allocation5 + $0x1a8] sm:$0x3f] %v1661
        %1678 = vst [vmem:[#allocation5 + $0x1b0] sm:$0x3f] %v1662
        %1679 = vst [vmem:[#allocation5 + $0x1b8] sm:$0x3f] %v1663
        %v1680 = vld [vmem:[#allocation4] sm:$0x3f]
        %v1681 = vld [vmem:[#allocation4 + $0x8] sm:$0x3f]
        %v1682 = vld [vmem:[#allocation4 + $0x10] sm:$0x3f]
        %v1683 = vld [vmem:[#allocation4 + $0x18] sm:$0x3f]
        %v1684 = vld [vmem:[#allocation4 + $0x20] sm:$0x3f]
        %v1685 = vld [vmem:[#allocation4 + $0x28] sm:$0x3f]
        %v1686 = vld [vmem:[#allocation4 + $0x30] sm:$0x3f]
        %v1687 = vld [vmem:[#allocation4 + $0x38] sm:$0x3f]
        %v1688 = vld [vmem:[#allocation4 + $0x40] sm:$0x3f]
        %v1698 = vrot.slane %v1680, 2
        %v1699 = vrot.slane %v1681, 2
        %v1700 = vrot.slane %v1682, 2
        %v1701 = vrot.slane %v1683, 2
        %v1702 = vrot.slane %v1684, 2
        %v1703 = vrot.slane %v1685, 2
        %v1704 = vrot.slane %v1686, 2
        %v1705 = vrot.slane %v1687, 2
        %v1706 = vrot.slane %v1688, 2
        %1707 = vrot.lane.b32.xlu0 %v1698, 56
        %v1708 = vpop.permute.xlu0 %1707
        %1709 = vrot.lane.b32.xlu0 %v1699, 56
        %v1710 = vpop.permute.xlu0 %1709
        %1711 = vrot.lane.b32.xlu0 %v1700, 56
        %v1712 = vpop.permute.xlu0 %1711
        %1713 = vrot.lane.b32.xlu0 %v1701, 56
        %v1714 = vpop.permute.xlu0 %1713
        %1715 = vrot.lane.b32.xlu0 %v1702, 56
        %v1716 = vpop.permute.xlu0 %1715
        %1717 = vrot.lane.b32.xlu0 %v1703, 56
        %v1718 = vpop.permute.xlu0 %1717
        %1719 = vrot.lane.b32.xlu0 %v1704, 56
        %v1720 = vpop.permute.xlu0 %1719
        %1721 = vrot.lane.b32.xlu0 %v1705, 56
        %v1722 = vpop.permute.xlu0 %1721
        %1723 = vrot.lane.b32.xlu0 %v1706, 56
        %v1724 = vpop.permute.xlu0 %1723
        %vm1725 = vcmask 457728
        %v1726 = vsel %vm1725, %v1708, %v1710
        %v1727 = vsel %vm1725, %v1710, %v1712
        %v1728 = vsel %vm1725, %v1712, %v1714
        %v1729 = vsel %vm1725, %v1714, %v1716
        %v1730 = vsel %vm1725, %v1716, %v1718
        %v1731 = vsel %vm1725, %v1718, %v1720
        %v1732 = vsel %vm1725, %v1720, %v1722
        %v1733 = vsel %vm1725, %v1722, %v1724
        %1742 = vst [vmem:[#allocation5 + $0x180] sm:$0xc0] %v1726
        %1743 = vst [vmem:[#allocation5 + $0x188] sm:$0xc0] %v1727
        %1744 = vst [vmem:[#allocation5 + $0x190] sm:$0xc0] %v1728
        %1745 = vst [vmem:[#allocation5 + $0x198] sm:$0xc0] %v1729
        %1746 = vst [vmem:[#allocation5 + $0x1a0] sm:$0xc0] %v1730
        %1747 = vst [vmem:[#allocation5 + $0x1a8] sm:$0xc0] %v1731
        %1748 = vst [vmem:[#allocation5 + $0x1b0] sm:$0xc0] %v1732
        %1749 = vst [vmem:[#allocation5 + $0x1b8] sm:$0xc0] %v1733
        %1750 = vst [vmem:[#allocation5 + $0x1c0] sm:$0xf] %v1726
        %1751 = vst [vmem:[#allocation5 + $0x1c8] sm:$0xf] %v1727
        %1752 = vst [vmem:[#allocation5 + $0x1d0] sm:$0xf] %v1728
        %1753 = vst [vmem:[#allocation5 + $0x1d8] sm:$0xf] %v1729
        %1754 = vst [vmem:[#allocation5 + $0x1e0] sm:$0xf] %v1730
        %1755 = vst [vmem:[#allocation5 + $0x1e8] sm:$0xf] %v1731
        %1756 = vst [vmem:[#allocation5 + $0x1f0] sm:$0xf] %v1732
        %1757 = vst [vmem:[#allocation5 + $0x1f8] sm:$0xf] %v1733
        %v1758 = vld [vmem:[#allocation4 + $0x8] sm:$0x3f]
        %v1759 = vld [vmem:[#allocation4 + $0x10] sm:$0x3f]
        %v1760 = vld [vmem:[#allocation4 + $0x18] sm:$0x3f]
        %v1761 = vld [vmem:[#allocation4 + $0x20] sm:$0x3f]
        %v1762 = vld [vmem:[#allocation4 + $0x28] sm:$0x3f]
        %v1763 = vld [vmem:[#allocation4 + $0x30] sm:$0x3f]
        %v1764 = vld [vmem:[#allocation4 + $0x38] sm:$0x3f]
        %v1765 = vld [vmem:[#allocation4 + $0x40] sm:$0x3f]
        %v1774 = vrot.slane %v1758, 4
        %v1775 = vrot.slane %v1759, 4
        %v1776 = vrot.slane %v1760, 4
        %v1777 = vrot.slane %v1761, 4
        %v1778 = vrot.slane %v1762, 4
        %v1779 = vrot.slane %v1763, 4
        %v1780 = vrot.slane %v1764, 4
        %v1781 = vrot.slane %v1765, 4
        %1790 = vst [vmem:[#allocation5 + $0x1c0] sm:$0xf0] %v1774
        %1791 = vst [vmem:[#allocation5 + $0x1c8] sm:$0xf0] %v1775
        %1792 = vst [vmem:[#allocation5 + $0x1d0] sm:$0xf0] %v1776
        %1793 = vst [vmem:[#allocation5 + $0x1d8] sm:$0xf0] %v1777
        %1794 = vst [vmem:[#allocation5 + $0x1e0] sm:$0xf0] %v1778
        %1795 = vst [vmem:[#allocation5 + $0x1e8] sm:$0xf0] %v1779
        %1796 = vst [vmem:[#allocation5 + $0x1f0] sm:$0xf0] %v1780
        %1797 = vst [vmem:[#allocation5 + $0x1f8] sm:$0xf0] %v1781
        %1798 = vst [vmem:[#allocation5 + $0x200] sm:$0x3] %v1774
        %1799 = vst [vmem:[#allocation5 + $0x208] sm:$0x3] %v1775
        %1800 = vst [vmem:[#allocation5 + $0x210] sm:$0x3] %v1776
        %1801 = vst [vmem:[#allocation5 + $0x218] sm:$0x3] %v1777
        %1802 = vst [vmem:[#allocation5 + $0x220] sm:$0x3] %v1778
        %1803 = vst [vmem:[#allocation5 + $0x228] sm:$0x3] %v1779
        %1804 = vst [vmem:[#allocation5 + $0x230] sm:$0x3] %v1780
        %1805 = vst [vmem:[#allocation5 + $0x238] sm:$0x3] %v1781
        %v1806 = vld [vmem:[#allocation4 + $0x8] sm:$0x3f]
        %v1807 = vld [vmem:[#allocation4 + $0x10] sm:$0x3f]
        %v1808 = vld [vmem:[#allocation4 + $0x18] sm:$0x3f]
        %v1809 = vld [vmem:[#allocation4 + $0x20] sm:$0x3f]
        %v1810 = vld [vmem:[#allocation4 + $0x28] sm:$0x3f]
        %v1811 = vld [vmem:[#allocation4 + $0x30] sm:$0x3f]
        %v1812 = vld [vmem:[#allocation4 + $0x38] sm:$0x3f]
        %v1813 = vld [vmem:[#allocation4 + $0x40] sm:$0x3f]
        %v1814 = vld [vmem:[#allocation4 + $0x48] sm:$0x3f]
        %v1824 = vrot.slane %v1806, 6
        %v1825 = vrot.slane %v1807, 6
        %v1826 = vrot.slane %v1808, 6
        %v1827 = vrot.slane %v1809, 6
        %v1828 = vrot.slane %v1810, 6
        %v1829 = vrot.slane %v1811, 6
        %v1830 = vrot.slane %v1812, 6
        %v1831 = vrot.slane %v1813, 6
        %v1832 = vrot.slane %v1814, 6
        %1833 = vrot.lane.b32.xlu0 %v1824, 126
        %v1834 = vpop.permute.xlu0 %1833
        %1835 = vrot.lane.b32.xlu0 %v1825, 126
        %v1836 = vpop.permute.xlu0 %1835
        %1837 = vrot.lane.b32.xlu0 %v1826, 126
        %v1838 = vpop.permute.xlu0 %1837
        %1839 = vrot.lane.b32.xlu0 %v1827, 126
        %v1840 = vpop.permute.xlu0 %1839
        %1841 = vrot.lane.b32.xlu0 %v1828, 126
        %v1842 = vpop.permute.xlu0 %1841
        %1843 = vrot.lane.b32.xlu0 %v1829, 126
        %v1844 = vpop.permute.xlu0 %1843
        %1845 = vrot.lane.b32.xlu0 %v1830, 126
        %v1846 = vpop.permute.xlu0 %1845
        %1847 = vrot.lane.b32.xlu0 %v1831, 126
        %v1848 = vpop.permute.xlu0 %1847
        %1849 = vrot.lane.b32.xlu0 %v1832, 126
        %v1850 = vpop.permute.xlu0 %1849
        %v1851 = vsel %vm436, %v1834, %v1836
        %v1852 = vsel %vm436, %v1836, %v1838
        %v1853 = vsel %vm436, %v1838, %v1840
        %v1854 = vsel %vm436, %v1840, %v1842
        %v1855 = vsel %vm436, %v1842, %v1844
        %v1856 = vsel %vm436, %v1844, %v1846
        %v1857 = vsel %vm436, %v1846, %v1848
        %v1858 = vsel %vm436, %v1848, %v1850
        %1867 = vst [vmem:[#allocation5 + $0x200] sm:$0xfc] %v1851
        %1868 = vst [vmem:[#allocation5 + $0x208] sm:$0xfc] %v1852
        %1869 = vst [vmem:[#allocation5 + $0x210] sm:$0xfc] %v1853
        %1870 = vst [vmem:[#allocation5 + $0x218] sm:$0xfc] %v1854
        %1871 = vst [vmem:[#allocation5 + $0x220] sm:$0xfc] %v1855
        %1872 = vst [vmem:[#allocation5 + $0x228] sm:$0xfc] %v1856
        %1873 = vst [vmem:[#allocation5 + $0x230] sm:$0xfc] %v1857
        %1874 = vst [vmem:[#allocation5 + $0x238] sm:$0xfc] %v1858
        %v1875 = vld [vmem:[#allocation4 + $0x8] sm:$0x3f]
        %v1876 = vld [vmem:[#allocation4 + $0x10] sm:$0x3f]
        %v1877 = vld [vmem:[#allocation4 + $0x18] sm:$0x3f]
        %v1878 = vld [vmem:[#allocation4 + $0x20] sm:$0x3f]
        %v1879 = vld [vmem:[#allocation4 + $0x28] sm:$0x3f]
        %v1880 = vld [vmem:[#allocation4 + $0x30] sm:$0x3f]
        %v1881 = vld [vmem:[#allocation4 + $0x38] sm:$0x3f]
        %v1882 = vld [vmem:[#allocation4 + $0x40] sm:$0x3f]
        %v1883 = vld [vmem:[#allocation4 + $0x48] sm:$0x3f]
        %1893 = vrot.lane.b32.xlu0 %v1875, 124
        %v1894 = vpop.permute.xlu0 %1893
        %1895 = vrot.lane.b32.xlu0 %v1876, 124
        %v1896 = vpop.permute.xlu0 %1895
        %1897 = vrot.lane.b32.xlu0 %v1877, 124
        %v1898 = vpop.permute.xlu0 %1897
        %1899 = vrot.lane.b32.xlu0 %v1878, 124
        %v1900 = vpop.permute.xlu0 %1899
        %1901 = vrot.lane.b32.xlu0 %v1879, 124
        %v1902 = vpop.permute.xlu0 %1901
        %1903 = vrot.lane.b32.xlu0 %v1880, 124
        %v1904 = vpop.permute.xlu0 %1903
        %1905 = vrot.lane.b32.xlu0 %v1881, 124
        %v1906 = vpop.permute.xlu0 %1905
        %1907 = vrot.lane.b32.xlu0 %v1882, 124
        %v1908 = vpop.permute.xlu0 %1907
        %1909 = vrot.lane.b32.xlu0 %v1883, 124
        %v1910 = vpop.permute.xlu0 %1909
        %v1911 = vsel %vm462, %v1894, %v1896
        %v1912 = vsel %vm462, %v1896, %v1898
        %v1913 = vsel %vm462, %v1898, %v1900
        %v1914 = vsel %vm462, %v1900, %v1902
        %v1915 = vsel %vm462, %v1902, %v1904
        %v1916 = vsel %vm462, %v1904, %v1906
        %v1917 = vsel %vm462, %v1906, %v1908
        %v1918 = vsel %vm462, %v1908, %v1910
        %1927 = vst [vmem:[#allocation5 + $0x240] sm:$0x3f] %v1911
        %1928 = vst [vmem:[#allocation5 + $0x248] sm:$0x3f] %v1912
        %1929 = vst [vmem:[#allocation5 + $0x250] sm:$0x3f] %v1913
        %1930 = vst [vmem:[#allocation5 + $0x258] sm:$0x3f] %v1914
        %1931 = vst [vmem:[#allocation5 + $0x260] sm:$0x3f] %v1915
        %1932 = vst [vmem:[#allocation5 + $0x268] sm:$0x3f] %v1916
        %1933 = vst [vmem:[#allocation5 + $0x270] sm:$0x3f] %v1917
        %1934 = vst [vmem:[#allocation5 + $0x278] sm:$0x3f] %v1918
        %v1935 = vld [vmem:[#allocation4 + $0x8] sm:$0x3f]
        %v1936 = vld [vmem:[#allocation4 + $0x10] sm:$0x3f]
        %v1937 = vld [vmem:[#allocation4 + $0x18] sm:$0x3f]
        %v1938 = vld [vmem:[#allocation4 + $0x20] sm:$0x3f]
        %v1939 = vld [vmem:[#allocation4 + $0x28] sm:$0x3f]
        %v1940 = vld [vmem:[#allocation4 + $0x30] sm:$0x3f]
        %v1941 = vld [vmem:[#allocation4 + $0x38] sm:$0x3f]
        %v1942 = vld [vmem:[#allocation4 + $0x40] sm:$0x3f]
        %v1943 = vld [vmem:[#allocation4 + $0x48] sm:$0x3f]
        %v1953 = vrot.slane %v1935, 2
        %v1954 = vrot.slane %v1936, 2
        %v1955 = vrot.slane %v1937, 2
        %v1956 = vrot.slane %v1938, 2
        %v1957 = vrot.slane %v1939, 2
        %v1958 = vrot.slane %v1940, 2
        %v1959 = vrot.slane %v1941, 2
        %v1960 = vrot.slane %v1942, 2
        %v1961 = vrot.slane %v1943, 2
        %1962 = vrot.lane.b32.xlu0 %v1953, 122
        %v1963 = vpop.permute.xlu0 %1962
        %1964 = vrot.lane.b32.xlu0 %v1954, 122
        %v1965 = vpop.permute.xlu0 %1964
        %1966 = vrot.lane.b32.xlu0 %v1955, 122
        %v1967 = vpop.permute.xlu0 %1966
        %1968 = vrot.lane.b32.xlu0 %v1956, 122
        %v1969 = vpop.permute.xlu0 %1968
        %1970 = vrot.lane.b32.xlu0 %v1957, 122
        %v1971 = vpop.permute.xlu0 %1970
        %1972 = vrot.lane.b32.xlu0 %v1958, 122
        %v1973 = vpop.permute.xlu0 %1972
        %1974 = vrot.lane.b32.xlu0 %v1959, 122
        %v1975 = vpop.permute.xlu0 %1974
        %1976 = vrot.lane.b32.xlu0 %v1960, 122
        %v1977 = vpop.permute.xlu0 %1976
        %1978 = vrot.lane.b32.xlu0 %v1961, 122
        %v1979 = vpop.permute.xlu0 %1978
        %v1980 = vsel %vm1310, %v1963, %v1965
        %v1981 = vsel %vm1310, %v1965, %v1967
        %v1982 = vsel %vm1310, %v1967, %v1969
        %v1983 = vsel %vm1310, %v1969, %v1971
        %v1984 = vsel %vm1310, %v1971, %v1973
        %v1985 = vsel %vm1310, %v1973, %v1975
        %v1986 = vsel %vm1310, %v1975, %v1977
        %v1987 = vsel %vm1310, %v1977, %v1979
        %1996 = vst [vmem:[#allocation5 + $0x240] sm:$0xc0] %v1980
        %1997 = vst [vmem:[#allocation5 + $0x248] sm:$0xc0] %v1981
        %1998 = vst [vmem:[#allocation5 + $0x250] sm:$0xc0] %v1982
        %1999 = vst [vmem:[#allocation5 + $0x258] sm:$0xc0] %v1983
        %2000 = vst [vmem:[#allocation5 + $0x260] sm:$0xc0] %v1984
        %2001 = vst [vmem:[#allocation5 + $0x268] sm:$0xc0] %v1985
        %2002 = vst [vmem:[#allocation5 + $0x270] sm:$0xc0] %v1986
        %2003 = vst [vmem:[#allocation5 + $0x278] sm:$0xc0] %v1987
        %2004 = vst [vmem:[#allocation5 + $0x280] sm:$0xf] %v1980
        %2005 = vst [vmem:[#allocation5 + $0x288] sm:$0xf] %v1981
        %2006 = vst [vmem:[#allocation5 + $0x290] sm:$0xf] %v1982
        %2007 = vst [vmem:[#allocation5 + $0x298] sm:$0xf] %v1983
        %2008 = vst [vmem:[#allocation5 + $0x2a0] sm:$0xf] %v1984
        %2009 = vst [vmem:[#allocation5 + $0x2a8] sm:$0xf] %v1985
        %2010 = vst [vmem:[#allocation5 + $0x2b0] sm:$0xf] %v1986
        %2011 = vst [vmem:[#allocation5 + $0x2b8] sm:$0xf] %v1987
        %v2012 = vld [vmem:[#allocation4 + $0x8] sm:$0x3f]
        %v2013 = vld [vmem:[#allocation4 + $0x10] sm:$0x3f]
        %v2014 = vld [vmem:[#allocation4 + $0x18] sm:$0x3f]
        %v2015 = vld [vmem:[#allocation4 + $0x20] sm:$0x3f]
        %v2016 = vld [vmem:[#allocation4 + $0x28] sm:$0x3f]
        %v2017 = vld [vmem:[#allocation4 + $0x30] sm:$0x3f]
        %v2018 = vld [vmem:[#allocation4 + $0x38] sm:$0x3f]
        %v2019 = vld [vmem:[#allocation4 + $0x40] sm:$0x3f]
        %v2020 = vld [vmem:[#allocation4 + $0x48] sm:$0x3f]
        %v2030 = vrot.slane %v2012, 4
        %v2031 = vrot.slane %v2013, 4
        %v2032 = vrot.slane %v2014, 4
        %v2033 = vrot.slane %v2015, 4
        %v2034 = vrot.slane %v2016, 4
        %v2035 = vrot.slane %v2017, 4
        %v2036 = vrot.slane %v2018, 4
        %v2037 = vrot.slane %v2019, 4
        %v2038 = vrot.slane %v2020, 4
        %2039 = vrot.lane.b32.xlu0 %v2030, 120
        %v2040 = vpop.permute.xlu0 %2039
        %2041 = vrot.lane.b32.xlu0 %v2031, 120
        %v2042 = vpop.permute.xlu0 %2041
        %2043 = vrot.lane.b32.xlu0 %v2032, 120
        %v2044 = vpop.permute.xlu0 %2043
        %2045 = vrot.lane.b32.xlu0 %v2033, 120
        %v2046 = vpop.permute.xlu0 %2045
        %2047 = vrot.lane.b32.xlu0 %v2034, 120
        %v2048 = vpop.permute.xlu0 %2047
        %2049 = vrot.lane.b32.xlu0 %v2035, 120
        %v2050 = vpop.permute.xlu0 %2049
        %2051 = vrot.lane.b32.xlu0 %v2036, 120
        %v2052 = vpop.permute.xlu0 %2051
        %2053 = vrot.lane.b32.xlu0 %v2037, 120
        %v2054 = vpop.permute.xlu0 %2053
        %2055 = vrot.lane.b32.xlu0 %v2038, 120
        %v2056 = vpop.permute.xlu0 %2055
        %v2057 = vsel %vm1371, %v2040, %v2042
        %v2058 = vsel %vm1371, %v2042, %v2044
        %v2059 = vsel %vm1371, %v2044, %v2046
        %v2060 = vsel %vm1371, %v2046, %v2048
        %v2061 = vsel %vm1371, %v2048, %v2050
        %v2062 = vsel %vm1371, %v2050, %v2052
        %v2063 = vsel %vm1371, %v2052, %v2054
        %v2064 = vsel %vm1371, %v2054, %v2056
        %2073 = vst [vmem:[#allocation5 + $0x280] sm:$0xf0] %v2057
        %2074 = vst [vmem:[#allocation5 + $0x288] sm:$0xf0] %v2058
        %2075 = vst [vmem:[#allocation5 + $0x290] sm:$0xf0] %v2059
        %2076 = vst [vmem:[#allocation5 + $0x298] sm:$0xf0] %v2060
        %2077 = vst [vmem:[#allocation5 + $0x2a0] sm:$0xf0] %v2061
        %2078 = vst [vmem:[#allocation5 + $0x2a8] sm:$0xf0] %v2062
        %2079 = vst [vmem:[#allocation5 + $0x2b0] sm:$0xf0] %v2063
        %2080 = vst [vmem:[#allocation5 + $0x2b8] sm:$0xf0] %v2064
        %2081 = vst [vmem:[#allocation5 + $0x2c0] sm:$0x3] %v2057
        %2082 = vst [vmem:[#allocation5 + $0x2c8] sm:$0x3] %v2058
        %2083 = vst [vmem:[#allocation5 + $0x2d0] sm:$0x3] %v2059
        %2084 = vst [vmem:[#allocation5 + $0x2d8] sm:$0x3] %v2060
        %2085 = vst [vmem:[#allocation5 + $0x2e0] sm:$0x3] %v2061
        %2086 = vst [vmem:[#allocation5 + $0x2e8] sm:$0x3] %v2062
        %2087 = vst [vmem:[#allocation5 + $0x2f0] sm:$0x3] %v2063
        %2088 = vst [vmem:[#allocation5 + $0x2f8] sm:$0x3] %v2064
        %v2089 = vld [vmem:[#allocation4 + $0x8] sm:$0x3f]
        %v2090 = vld [vmem:[#allocation4 + $0x10] sm:$0x3f]
        %v2091 = vld [vmem:[#allocation4 + $0x18] sm:$0x3f]
        %v2092 = vld [vmem:[#allocation4 + $0x20] sm:$0x3f]
        %v2093 = vld [vmem:[#allocation4 + $0x28] sm:$0x3f]
        %v2094 = vld [vmem:[#allocation4 + $0x30] sm:$0x3f]
        %v2095 = vld [vmem:[#allocation4 + $0x38] sm:$0x3f]
        %v2096 = vld [vmem:[#allocation4 + $0x40] sm:$0x3f]
        %v2097 = vld [vmem:[#allocation4 + $0x48] sm:$0x3f]
        %v2107 = vrot.slane %v2089, 6
        %v2108 = vrot.slane %v2090, 6
        %v2109 = vrot.slane %v2091, 6
        %v2110 = vrot.slane %v2092, 6
        %v2111 = vrot.slane %v2093, 6
        %v2112 = vrot.slane %v2094, 6
        %v2113 = vrot.slane %v2095, 6
        %v2114 = vrot.slane %v2096, 6
        %v2115 = vrot.slane %v2097, 6
        %2116 = vrot.lane.b32.xlu0 %v2107, 64
        %v2117 = vpop.permute.xlu0 %2116
        %2118 = vrot.lane.b32.xlu0 %v2108, 64
        %v2119 = vpop.permute.xlu0 %2118
        %2120 = vrot.lane.b32.xlu0 %v2109, 64
        %v2121 = vpop.permute.xlu0 %2120
        %2122 = vrot.lane.b32.xlu0 %v2110, 64
        %v2123 = vpop.permute.xlu0 %2122
        %2124 = vrot.lane.b32.xlu0 %v2111, 64
        %v2125 = vpop.permute.xlu0 %2124
        %2126 = vrot.lane.b32.xlu0 %v2112, 64
        %v2127 = vpop.permute.xlu0 %2126
        %2128 = vrot.lane.b32.xlu0 %v2113, 64
        %v2129 = vpop.permute.xlu0 %2128
        %2130 = vrot.lane.b32.xlu0 %v2114, 64
        %v2131 = vpop.permute.xlu0 %2130
        %2132 = vrot.lane.b32.xlu0 %v2115, 64
        %v2133 = vpop.permute.xlu0 %2132
        %v2134 = vsel %vm540, %v2117, %v2119
        %v2135 = vsel %vm540, %v2119, %v2121
        %v2136 = vsel %vm540, %v2121, %v2123
        %v2137 = vsel %vm540, %v2123, %v2125
        %v2138 = vsel %vm540, %v2125, %v2127
        %v2139 = vsel %vm540, %v2127, %v2129
        %v2140 = vsel %vm540, %v2129, %v2131
        %v2141 = vsel %vm540, %v2131, %v2133
        %2150 = vst [vmem:[#allocation5 + $0x2c0] sm:$0xfc] %v2134
        %2151 = vst [vmem:[#allocation5 + $0x2c8] sm:$0xfc] %v2135
        %2152 = vst [vmem:[#allocation5 + $0x2d0] sm:$0xfc] %v2136
        %2153 = vst [vmem:[#allocation5 + $0x2d8] sm:$0xfc] %v2137
        %2154 = vst [vmem:[#allocation5 + $0x2e0] sm:$0xfc] %v2138
        %2155 = vst [vmem:[#allocation5 + $0x2e8] sm:$0xfc] %v2139
        %2156 = vst [vmem:[#allocation5 + $0x2f0] sm:$0xfc] %v2140
        %2157 = vst [vmem:[#allocation5 + $0x2f8] sm:$0xfc] %v2141
        %v2158 = vld [vmem:[#allocation4 + $0x8] sm:$0x3f]
        %v2159 = vld [vmem:[#allocation4 + $0x10] sm:$0x3f]
        %v2160 = vld [vmem:[#allocation4 + $0x18] sm:$0x3f]
        %v2161 = vld [vmem:[#allocation4 + $0x20] sm:$0x3f]
        %v2162 = vld [vmem:[#allocation4 + $0x28] sm:$0x3f]
        %v2163 = vld [vmem:[#allocation4 + $0x30] sm:$0x3f]
        %v2164 = vld [vmem:[#allocation4 + $0x38] sm:$0x3f]
        %v2165 = vld [vmem:[#allocation4 + $0x40] sm:$0x3f]
        %v2166 = vld [vmem:[#allocation4 + $0x48] sm:$0x3f]
        %2176 = vrot.lane.b32.xlu0 %v2158, 62
        %v2177 = vpop.permute.xlu0 %2176
        %2178 = vrot.lane.b32.xlu0 %v2159, 62
        %v2179 = vpop.permute.xlu0 %2178
        %2180 = vrot.lane.b32.xlu0 %v2160, 62
        %v2181 = vpop.permute.xlu0 %2180
        %2182 = vrot.lane.b32.xlu0 %v2161, 62
        %v2183 = vpop.permute.xlu0 %2182
        %2184 = vrot.lane.b32.xlu0 %v2162, 62
        %v2185 = vpop.permute.xlu0 %2184
        %2186 = vrot.lane.b32.xlu0 %v2163, 62
        %v2187 = vpop.permute.xlu0 %2186
        %2188 = vrot.lane.b32.xlu0 %v2164, 62
        %v2189 = vpop.permute.xlu0 %2188
        %2190 = vrot.lane.b32.xlu0 %v2165, 62
        %v2191 = vpop.permute.xlu0 %2190
        %2192 = vrot.lane.b32.xlu0 %v2166, 62
        %v2193 = vpop.permute.xlu0 %2192
        %v2194 = vsel %vm566, %v2177, %v2179
        %v2195 = vsel %vm566, %v2179, %v2181
        %v2196 = vsel %vm566, %v2181, %v2183
        %v2197 = vsel %vm566, %v2183, %v2185
        %v2198 = vsel %vm566, %v2185, %v2187
        %v2199 = vsel %vm566, %v2187, %v2189
        %v2200 = vsel %vm566, %v2189, %v2191
        %v2201 = vsel %vm566, %v2191, %v2193
        %2210 = vst [vmem:[#allocation5 + $0x300] sm:$0x3f] %v2194
        %2211 = vst [vmem:[#allocation5 + $0x308] sm:$0x3f] %v2195
        %2212 = vst [vmem:[#allocation5 + $0x310] sm:$0x3f] %v2196
        %2213 = vst [vmem:[#allocation5 + $0x318] sm:$0x3f] %v2197
        %2214 = vst [vmem:[#allocation5 + $0x320] sm:$0x3f] %v2198
        %2215 = vst [vmem:[#allocation5 + $0x328] sm:$0x3f] %v2199
        %2216 = vst [vmem:[#allocation5 + $0x330] sm:$0x3f] %v2200
        %2217 = vst [vmem:[#allocation5 + $0x338] sm:$0x3f] %v2201
        %v2218 = vld [vmem:[#allocation4 + $0x8] sm:$0x3f]
        %v2219 = vld [vmem:[#allocation4 + $0x10] sm:$0x3f]
        %v2220 = vld [vmem:[#allocation4 + $0x18] sm:$0x3f]
        %v2221 = vld [vmem:[#allocation4 + $0x20] sm:$0x3f]
        %v2222 = vld [vmem:[#allocation4 + $0x28] sm:$0x3f]
        %v2223 = vld [vmem:[#allocation4 + $0x30] sm:$0x3f]
        %v2224 = vld [vmem:[#allocation4 + $0x38] sm:$0x3f]
        %v2225 = vld [vmem:[#allocation4 + $0x40] sm:$0x3f]
        %v2226 = vld [vmem:[#allocation4 + $0x48] sm:$0x3f]
        %v2236 = vrot.slane %v2218, 2
        %v2237 = vrot.slane %v2219, 2
        %v2238 = vrot.slane %v2220, 2
        %v2239 = vrot.slane %v2221, 2
        %v2240 = vrot.slane %v2222, 2
        %v2241 = vrot.slane %v2223, 2
        %v2242 = vrot.slane %v2224, 2
        %v2243 = vrot.slane %v2225, 2
        %v2244 = vrot.slane %v2226, 2
        %2245 = vrot.lane.b32.xlu0 %v2236, 60
        %v2246 = vpop.permute.xlu0 %2245
        %2247 = vrot.lane.b32.xlu0 %v2237, 60
        %v2248 = vpop.permute.xlu0 %2247
        %2249 = vrot.lane.b32.xlu0 %v2238, 60
        %v2250 = vpop.permute.xlu0 %2249
        %2251 = vrot.lane.b32.xlu0 %v2239, 60
        %v2252 = vpop.permute.xlu0 %2251
        %2253 = vrot.lane.b32.xlu0 %v2240, 60
        %v2254 = vpop.permute.xlu0 %2253
        %2255 = vrot.lane.b32.xlu0 %v2241, 60
        %v2256 = vpop.permute.xlu0 %2255
        %2257 = vrot.lane.b32.xlu0 %v2242, 60
        %v2258 = vpop.permute.xlu0 %2257
        %2259 = vrot.lane.b32.xlu0 %v2243, 60
        %v2260 = vpop.permute.xlu0 %2259
        %2261 = vrot.lane.b32.xlu0 %v2244, 60
        %v2262 = vpop.permute.xlu0 %2261
        %v2263 = vsel %vm592, %v2246, %v2248
        %v2264 = vsel %vm592, %v2248, %v2250
        %v2265 = vsel %vm592, %v2250, %v2252
        %v2266 = vsel %vm592, %v2252, %v2254
        %v2267 = vsel %vm592, %v2254, %v2256
        %v2268 = vsel %vm592, %v2256, %v2258
        %v2269 = vsel %vm592, %v2258, %v2260
        %v2270 = vsel %vm592, %v2260, %v2262
        %2279 = vst [vmem:[#allocation5 + $0x300] sm:$0xc0] %v2263
        %2280 = vst [vmem:[#allocation5 + $0x308] sm:$0xc0] %v2264
        %2281 = vst [vmem:[#allocation5 + $0x310] sm:$0xc0] %v2265
        %2282 = vst [vmem:[#allocation5 + $0x318] sm:$0xc0] %v2266
        %2283 = vst [vmem:[#allocation5 + $0x320] sm:$0xc0] %v2267
        %2284 = vst [vmem:[#allocation5 + $0x328] sm:$0xc0] %v2268
        %2285 = vst [vmem:[#allocation5 + $0x330] sm:$0xc0] %v2269
        %2286 = vst [vmem:[#allocation5 + $0x338] sm:$0xc0] %v2270
        %2287 = vst [vmem:[#allocation5 + $0x340] sm:$0xf] %v2263
        %2288 = vst [vmem:[#allocation5 + $0x348] sm:$0xf] %v2264
        %2289 = vst [vmem:[#allocation5 + $0x350] sm:$0xf] %v2265
        %2290 = vst [vmem:[#allocation5 + $0x358] sm:$0xf] %v2266
        %2291 = vst [vmem:[#allocation5 + $0x360] sm:$0xf] %v2267
        %2292 = vst [vmem:[#allocation5 + $0x368] sm:$0xf] %v2268
        %2293 = vst [vmem:[#allocation5 + $0x370] sm:$0xf] %v2269
        %2294 = vst [vmem:[#allocation5 + $0x378] sm:$0xf] %v2270
        %v2295 = vld [vmem:[#allocation4 + $0x8] sm:$0x3f]
        %v2296 = vld [vmem:[#allocation4 + $0x10] sm:$0x3f]
        %v2297 = vld [vmem:[#allocation4 + $0x18] sm:$0x3f]
        %v2298 = vld [vmem:[#allocation4 + $0x20] sm:$0x3f]
        %v2299 = vld [vmem:[#allocation4 + $0x28] sm:$0x3f]
        %v2300 = vld [vmem:[#allocation4 + $0x30] sm:$0x3f]
        %v2301 = vld [vmem:[#allocation4 + $0x38] sm:$0x3f]
        %v2302 = vld [vmem:[#allocation4 + $0x40] sm:$0x3f]
        %v2303 = vld [vmem:[#allocation4 + $0x48] sm:$0x3f]
        %v2313 = vrot.slane %v2295, 4
        %v2314 = vrot.slane %v2296, 4
        %v2315 = vrot.slane %v2297, 4
        %v2316 = vrot.slane %v2298, 4
        %v2317 = vrot.slane %v2299, 4
        %v2318 = vrot.slane %v2300, 4
        %v2319 = vrot.slane %v2301, 4
        %v2320 = vrot.slane %v2302, 4
        %v2321 = vrot.slane %v2303, 4
        %2322 = vrot.lane.b32.xlu0 %v2313, 58
        %v2323 = vpop.permute.xlu0 %2322
        %2324 = vrot.lane.b32.xlu0 %v2314, 58
        %v2325 = vpop.permute.xlu0 %2324
        %2326 = vrot.lane.b32.xlu0 %v2315, 58
        %v2327 = vpop.permute.xlu0 %2326
        %2328 = vrot.lane.b32.xlu0 %v2316, 58
        %v2329 = vpop.permute.xlu0 %2328
        %2330 = vrot.lane.b32.xlu0 %v2317, 58
        %v2331 = vpop.permute.xlu0 %2330
        %2332 = vrot.lane.b32.xlu0 %v2318, 58
        %v2333 = vpop.permute.xlu0 %2332
        %2334 = vrot.lane.b32.xlu0 %v2319, 58
        %v2335 = vpop.permute.xlu0 %2334
        %2336 = vrot.lane.b32.xlu0 %v2320, 58
        %v2337 = vpop.permute.xlu0 %2336
        %2338 = vrot.lane.b32.xlu0 %v2321, 58
        %v2339 = vpop.permute.xlu0 %2338
        %v2340 = vsel %vm1655, %v2323, %v2325
        %v2341 = vsel %vm1655, %v2325, %v2327
        %v2342 = vsel %vm1655, %v2327, %v2329
        %v2343 = vsel %vm1655, %v2329, %v2331
        %v2344 = vsel %vm1655, %v2331, %v2333
        %v2345 = vsel %vm1655, %v2333, %v2335
        %v2346 = vsel %vm1655, %v2335, %v2337
        %v2347 = vsel %vm1655, %v2337, %v2339
        %2356 = vst [vmem:[#allocation5 + $0x340] sm:$0xf0] %v2340
        %2357 = vst [vmem:[#allocation5 + $0x348] sm:$0xf0] %v2341
        %2358 = vst [vmem:[#allocation5 + $0x350] sm:$0xf0] %v2342
        %2359 = vst [vmem:[#allocation5 + $0x358] sm:$0xf0] %v2343
        %2360 = vst [vmem:[#allocation5 + $0x360] sm:$0xf0] %v2344
        %2361 = vst [vmem:[#allocation5 + $0x368] sm:$0xf0] %v2345
        %2362 = vst [vmem:[#allocation5 + $0x370] sm:$0xf0] %v2346
        %2363 = vst [vmem:[#allocation5 + $0x378] sm:$0xf0] %v2347
        %2364 = vst [vmem:[#allocation5 + $0x380] sm:$0x3] %v2340
        %2365 = vst [vmem:[#allocation5 + $0x388] sm:$0x3] %v2341
        %2366 = vst [vmem:[#allocation5 + $0x390] sm:$0x3] %v2342
        %2367 = vst [vmem:[#allocation5 + $0x398] sm:$0x3] %v2343
        %2368 = vst [vmem:[#allocation5 + $0x3a0] sm:$0x3] %v2344
        %2369 = vst [vmem:[#allocation5 + $0x3a8] sm:$0x3] %v2345
        %2370 = vst [vmem:[#allocation5 + $0x3b0] sm:$0x3] %v2346
        %2371 = vst [vmem:[#allocation5 + $0x3b8] sm:$0x3] %v2347
        %v2372 = vld [vmem:[#allocation4 + $0x8] sm:$0x3f]
        %v2373 = vld [vmem:[#allocation4 + $0x10] sm:$0x3f]
        %v2374 = vld [vmem:[#allocation4 + $0x18] sm:$0x3f]
        %v2375 = vld [vmem:[#allocation4 + $0x20] sm:$0x3f]
        %v2376 = vld [vmem:[#allocation4 + $0x28] sm:$0x3f]
        %v2377 = vld [vmem:[#allocation4 + $0x30] sm:$0x3f]
        %v2378 = vld [vmem:[#allocation4 + $0x38] sm:$0x3f]
        %v2379 = vld [vmem:[#allocation4 + $0x40] sm:$0x3f]
        %v2380 = vld [vmem:[#allocation4 + $0x48] sm:$0x3f]
        %v2390 = vrot.slane %v2372, 6
        %v2391 = vrot.slane %v2373, 6
        %v2392 = vrot.slane %v2374, 6
        %v2393 = vrot.slane %v2375, 6
        %v2394 = vrot.slane %v2376, 6
        %v2395 = vrot.slane %v2377, 6
        %v2396 = vrot.slane %v2378, 6
        %v2397 = vrot.slane %v2379, 6
        %v2398 = vrot.slane %v2380, 6
        %2399 = vrot.lane.b32.xlu0 %v2390, 56
        %v2400 = vpop.permute.xlu0 %2399
        %2401 = vrot.lane.b32.xlu0 %v2391, 56
        %v2402 = vpop.permute.xlu0 %2401
        %2403 = vrot.lane.b32.xlu0 %v2392, 56
        %v2404 = vpop.permute.xlu0 %2403
        %2405 = vrot.lane.b32.xlu0 %v2393, 56
        %v2406 = vpop.permute.xlu0 %2405
        %2407 = vrot.lane.b32.xlu0 %v2394, 56
        %v2408 = vpop.permute.xlu0 %2407
        %2409 = vrot.lane.b32.xlu0 %v2395, 56
        %v2410 = vpop.permute.xlu0 %2409
        %2411 = vrot.lane.b32.xlu0 %v2396, 56
        %v2412 = vpop.permute.xlu0 %2411
        %2413 = vrot.lane.b32.xlu0 %v2397, 56
        %v2414 = vpop.permute.xlu0 %2413
        %2415 = vrot.lane.b32.xlu0 %v2398, 56
        %v2416 = vpop.permute.xlu0 %2415
        %v2417 = vsel %vm1725, %v2400, %v2402
        %v2418 = vsel %vm1725, %v2402, %v2404
        %v2419 = vsel %vm1725, %v2404, %v2406
        %v2420 = vsel %vm1725, %v2406, %v2408
        %v2421 = vsel %vm1725, %v2408, %v2410
        %v2422 = vsel %vm1725, %v2410, %v2412
        %v2423 = vsel %vm1725, %v2412, %v2414
        %v2424 = vsel %vm1725, %v2414, %v2416
        %2433 = vst [vmem:[#allocation5 + $0x380] sm:$0xfc] %v2417
        %2434 = vst [vmem:[#allocation5 + $0x388] sm:$0xfc] %v2418
        %2435 = vst [vmem:[#allocation5 + $0x390] sm:$0xfc] %v2419
        %2436 = vst [vmem:[#allocation5 + $0x398] sm:$0xfc] %v2420
        %2437 = vst [vmem:[#allocation5 + $0x3a0] sm:$0xfc] %v2421
        %2438 = vst [vmem:[#allocation5 + $0x3a8] sm:$0xfc] %v2422
        %2439 = vst [vmem:[#allocation5 + $0x3b0] sm:$0xfc] %v2423
        %2440 = vst [vmem:[#allocation5 + $0x3b8] sm:$0xfc] %v2424
        %v2441 = vld [vmem:[#allocation4 + $0x10] sm:$0x3f]
        %v2442 = vld [vmem:[#allocation4 + $0x18] sm:$0x3f]
        %v2443 = vld [vmem:[#allocation4 + $0x20] sm:$0x3f]
        %v2444 = vld [vmem:[#allocation4 + $0x28] sm:$0x3f]
        %v2445 = vld [vmem:[#allocation4 + $0x30] sm:$0x3f]
        %v2446 = vld [vmem:[#allocation4 + $0x38] sm:$0x3f]
        %v2447 = vld [vmem:[#allocation4 + $0x40] sm:$0x3f]
        %v2448 = vld [vmem:[#allocation4 + $0x48] sm:$0x3f]
        %2449 = vst [vmem:[#allocation5 + $0x3c0] sm:$0x3f] %v2441
        %2450 = vst [vmem:[#allocation5 + $0x3c8] sm:$0x3f] %v2442
        %2451 = vst [vmem:[#allocation5 + $0x3d0] sm:$0x3f] %v2443
        %2452 = vst [vmem:[#allocation5 + $0x3d8] sm:$0x3f] %v2444
        %2453 = vst [vmem:[#allocation5 + $0x3e0] sm:$0x3f] %v2445
        %2454 = vst [vmem:[#allocation5 + $0x3e8] sm:$0x3f] %v2446
        %2455 = vst [vmem:[#allocation5 + $0x3f0] sm:$0x3f] %v2447
        %2456 = vst [vmem:[#allocation5 + $0x3f8] sm:$0x3f] %v2448
        %v2457 = vld [vmem:[#allocation4 + $0x10] sm:$0x3f]
        %v2458 = vld [vmem:[#allocation4 + $0x18] sm:$0x3f]
        %v2459 = vld [vmem:[#allocation4 + $0x20] sm:$0x3f]
        %v2460 = vld [vmem:[#allocation4 + $0x28] sm:$0x3f]
        %v2461 = vld [vmem:[#allocation4 + $0x30] sm:$0x3f]
        %v2462 = vld [vmem:[#allocation4 + $0x38] sm:$0x3f]
        %v2463 = vld [vmem:[#allocation4 + $0x40] sm:$0x3f]
        %v2464 = vld [vmem:[#allocation4 + $0x48] sm:$0x3f]
        %v2465 = vld [vmem:[#allocation4 + $0x50] sm:$0x3f]
        %v2475 = vrot.slane %v2457, 2
        %v2476 = vrot.slane %v2458, 2
        %v2477 = vrot.slane %v2459, 2
        %v2478 = vrot.slane %v2460, 2
        %v2479 = vrot.slane %v2461, 2
        %v2480 = vrot.slane %v2462, 2
        %v2481 = vrot.slane %v2463, 2
        %v2482 = vrot.slane %v2464, 2
        %v2483 = vrot.slane %v2465, 2
        %2484 = vrot.lane.b32.xlu0 %v2475, 126
        %v2485 = vpop.permute.xlu0 %2484
        %2486 = vrot.lane.b32.xlu0 %v2476, 126
        %v2487 = vpop.permute.xlu0 %2486
        %2488 = vrot.lane.b32.xlu0 %v2477, 126
        %v2489 = vpop.permute.xlu0 %2488
        %2490 = vrot.lane.b32.xlu0 %v2478, 126
        %v2491 = vpop.permute.xlu0 %2490
        %2492 = vrot.lane.b32.xlu0 %v2479, 126
        %v2493 = vpop.permute.xlu0 %2492
        %2494 = vrot.lane.b32.xlu0 %v2480, 126
        %v2495 = vpop.permute.xlu0 %2494
        %2496 = vrot.lane.b32.xlu0 %v2481, 126
        %v2497 = vpop.permute.xlu0 %2496
        %2498 = vrot.lane.b32.xlu0 %v2482, 126
        %v2499 = vpop.permute.xlu0 %2498
        %2500 = vrot.lane.b32.xlu0 %v2483, 126
        %v2501 = vpop.permute.xlu0 %2500
        %v2502 = vsel %vm436, %v2485, %v2487
        %v2503 = vsel %vm436, %v2487, %v2489
        %v2504 = vsel %vm436, %v2489, %v2491
        %v2505 = vsel %vm436, %v2491, %v2493
        %v2506 = vsel %vm436, %v2493, %v2495
        %v2507 = vsel %vm436, %v2495, %v2497
        %v2508 = vsel %vm436, %v2497, %v2499
        %v2509 = vsel %vm436, %v2499, %v2501
        %2518 = vst [vmem:[#allocation5 + $0x3c0] sm:$0xc0] %v2502
        %2519 = vst [vmem:[#allocation5 + $0x3c8] sm:$0xc0] %v2503
        %2520 = vst [vmem:[#allocation5 + $0x3d0] sm:$0xc0] %v2504
        %2521 = vst [vmem:[#allocation5 + $0x3d8] sm:$0xc0] %v2505
        %2522 = vst [vmem:[#allocation5 + $0x3e0] sm:$0xc0] %v2506
        %2523 = vst [vmem:[#allocation5 + $0x3e8] sm:$0xc0] %v2507
        %2524 = vst [vmem:[#allocation5 + $0x3f0] sm:$0xc0] %v2508
        %2525 = vst [vmem:[#allocation5 + $0x3f8] sm:$0xc0] %v2509
        %2526 = vst [vmem:[#allocation5 + $0x400] sm:$0xf] %v2502
        %2527 = vst [vmem:[#allocation5 + $0x408] sm:$0xf] %v2503
        %2528 = vst [vmem:[#allocation5 + $0x410] sm:$0xf] %v2504
        %2529 = vst [vmem:[#allocation5 + $0x418] sm:$0xf] %v2505
        %2530 = vst [vmem:[#allocation5 + $0x420] sm:$0xf] %v2506
        %2531 = vst [vmem:[#allocation5 + $0x428] sm:$0xf] %v2507
        %2532 = vst [vmem:[#allocation5 + $0x430] sm:$0xf] %v2508
        %2533 = vst [vmem:[#allocation5 + $0x438] sm:$0xf] %v2509
        %v2534 = vld [vmem:[#allocation4 + $0x10] sm:$0x3f]
        %v2535 = vld [vmem:[#allocation4 + $0x18] sm:$0x3f]
        %v2536 = vld [vmem:[#allocation4 + $0x20] sm:$0x3f]
        %v2537 = vld [vmem:[#allocation4 + $0x28] sm:$0x3f]
        %v2538 = vld [vmem:[#allocation4 + $0x30] sm:$0x3f]
        %v2539 = vld [vmem:[#allocation4 + $0x38] sm:$0x3f]
        %v2540 = vld [vmem:[#allocation4 + $0x40] sm:$0x3f]
        %v2541 = vld [vmem:[#allocation4 + $0x48] sm:$0x3f]
        %v2542 = vld [vmem:[#allocation4 + $0x50] sm:$0x3f]
        %v2552 = vrot.slane %v2534, 4
        %v2553 = vrot.slane %v2535, 4
        %v2554 = vrot.slane %v2536, 4
        %v2555 = vrot.slane %v2537, 4
        %v2556 = vrot.slane %v2538, 4
        %v2557 = vrot.slane %v2539, 4
        %v2558 = vrot.slane %v2540, 4
        %v2559 = vrot.slane %v2541, 4
        %v2560 = vrot.slane %v2542, 4
        %2561 = vrot.lane.b32.xlu0 %v2552, 124
        %v2562 = vpop.permute.xlu0 %2561
        %2563 = vrot.lane.b32.xlu0 %v2553, 124
        %v2564 = vpop.permute.xlu0 %2563
        %2565 = vrot.lane.b32.xlu0 %v2554, 124
        %v2566 = vpop.permute.xlu0 %2565
        %2567 = vrot.lane.b32.xlu0 %v2555, 124
        %v2568 = vpop.permute.xlu0 %2567
        %2569 = vrot.lane.b32.xlu0 %v2556, 124
        %v2570 = vpop.permute.xlu0 %2569
        %2571 = vrot.lane.b32.xlu0 %v2557, 124
        %v2572 = vpop.permute.xlu0 %2571
        %2573 = vrot.lane.b32.xlu0 %v2558, 124
        %v2574 = vpop.permute.xlu0 %2573
        %2575 = vrot.lane.b32.xlu0 %v2559, 124
        %v2576 = vpop.permute.xlu0 %2575
        %2577 = vrot.lane.b32.xlu0 %v2560, 124
        %v2578 = vpop.permute.xlu0 %2577
        %v2579 = vsel %vm462, %v2562, %v2564
        %v2580 = vsel %vm462, %v2564, %v2566
        %v2581 = vsel %vm462, %v2566, %v2568
        %v2582 = vsel %vm462, %v2568, %v2570
        %v2583 = vsel %vm462, %v2570, %v2572
        %v2584 = vsel %vm462, %v2572, %v2574
        %v2585 = vsel %vm462, %v2574, %v2576
        %v2586 = vsel %vm462, %v2576, %v2578
        %2595 = vst [vmem:[#allocation5 + $0x400] sm:$0xf0] %v2579
        %2596 = vst [vmem:[#allocation5 + $0x408] sm:$0xf0] %v2580
        %2597 = vst [vmem:[#allocation5 + $0x410] sm:$0xf0] %v2581
        %2598 = vst [vmem:[#allocation5 + $0x418] sm:$0xf0] %v2582
        %2599 = vst [vmem:[#allocation5 + $0x420] sm:$0xf0] %v2583
        %2600 = vst [vmem:[#allocation5 + $0x428] sm:$0xf0] %v2584
        %2601 = vst [vmem:[#allocation5 + $0x430] sm:$0xf0] %v2585
        %2602 = vst [vmem:[#allocation5 + $0x438] sm:$0xf0] %v2586
        %2603 = vst [vmem:[#allocation5 + $0x440] sm:$0x3] %v2579
        %2604 = vst [vmem:[#allocation5 + $0x448] sm:$0x3] %v2580
        %2605 = vst [vmem:[#allocation5 + $0x450] sm:$0x3] %v2581
        %2606 = vst [vmem:[#allocation5 + $0x458] sm:$0x3] %v2582
        %2607 = vst [vmem:[#allocation5 + $0x460] sm:$0x3] %v2583
        %2608 = vst [vmem:[#allocation5 + $0x468] sm:$0x3] %v2584
        %2609 = vst [vmem:[#allocation5 + $0x470] sm:$0x3] %v2585
        %2610 = vst [vmem:[#allocation5 + $0x478] sm:$0x3] %v2586
        %v2611 = vld [vmem:[#allocation4 + $0x10] sm:$0x3f]
        %v2612 = vld [vmem:[#allocation4 + $0x18] sm:$0x3f]
        %v2613 = vld [vmem:[#allocation4 + $0x20] sm:$0x3f]
        %v2614 = vld [vmem:[#allocation4 + $0x28] sm:$0x3f]
        %v2615 = vld [vmem:[#allocation4 + $0x30] sm:$0x3f]
        %v2616 = vld [vmem:[#allocation4 + $0x38] sm:$0x3f]
        %v2617 = vld [vmem:[#allocation4 + $0x40] sm:$0x3f]
        %v2618 = vld [vmem:[#allocation4 + $0x48] sm:$0x3f]
        %v2619 = vld [vmem:[#allocation4 + $0x50] sm:$0x3f]
        %v2629 = vrot.slane %v2611, 6
        %v2630 = vrot.slane %v2612, 6
        %v2631 = vrot.slane %v2613, 6
        %v2632 = vrot.slane %v2614, 6
        %v2633 = vrot.slane %v2615, 6
        %v2634 = vrot.slane %v2616, 6
        %v2635 = vrot.slane %v2617, 6
        %v2636 = vrot.slane %v2618, 6
        %v2637 = vrot.slane %v2619, 6
        %2638 = vrot.lane.b32.xlu0 %v2629, 122
        %v2639 = vpop.permute.xlu0 %2638
        %2640 = vrot.lane.b32.xlu0 %v2630, 122
        %v2641 = vpop.permute.xlu0 %2640
        %2642 = vrot.lane.b32.xlu0 %v2631, 122
        %v2643 = vpop.permute.xlu0 %2642
        %2644 = vrot.lane.b32.xlu0 %v2632, 122
        %v2645 = vpop.permute.xlu0 %2644
        %2646 = vrot.lane.b32.xlu0 %v2633, 122
        %v2647 = vpop.permute.xlu0 %2646
        %2648 = vrot.lane.b32.xlu0 %v2634, 122
        %v2649 = vpop.permute.xlu0 %2648
        %2650 = vrot.lane.b32.xlu0 %v2635, 122
        %v2651 = vpop.permute.xlu0 %2650
        %2652 = vrot.lane.b32.xlu0 %v2636, 122
        %v2653 = vpop.permute.xlu0 %2652
        %2654 = vrot.lane.b32.xlu0 %v2637, 122
        %v2655 = vpop.permute.xlu0 %2654
        %v2656 = vsel %vm1310, %v2639, %v2641
        %v2657 = vsel %vm1310, %v2641, %v2643
        %v2658 = vsel %vm1310, %v2643, %v2645
        %v2659 = vsel %vm1310, %v2645, %v2647
        %v2660 = vsel %vm1310, %v2647, %v2649
        %v2661 = vsel %vm1310, %v2649, %v2651
        %v2662 = vsel %vm1310, %v2651, %v2653
        %v2663 = vsel %vm1310, %v2653, %v2655
        %2672 = vst [vmem:[#allocation5 + $0x440] sm:$0xfc] %v2656
        %2673 = vst [vmem:[#allocation5 + $0x448] sm:$0xfc] %v2657
        %2674 = vst [vmem:[#allocation5 + $0x450] sm:$0xfc] %v2658
        %2675 = vst [vmem:[#allocation5 + $0x458] sm:$0xfc] %v2659
        %2676 = vst [vmem:[#allocation5 + $0x460] sm:$0xfc] %v2660
        %2677 = vst [vmem:[#allocation5 + $0x468] sm:$0xfc] %v2661
        %2678 = vst [vmem:[#allocation5 + $0x470] sm:$0xfc] %v2662
        %2679 = vst [vmem:[#allocation5 + $0x478] sm:$0xfc] %v2663
        %v2680 = vld [vmem:[#allocation4 + $0x10] sm:$0x3f]
        %v2681 = vld [vmem:[#allocation4 + $0x18] sm:$0x3f]
        %v2682 = vld [vmem:[#allocation4 + $0x20] sm:$0x3f]
        %v2683 = vld [vmem:[#allocation4 + $0x28] sm:$0x3f]
        %v2684 = vld [vmem:[#allocation4 + $0x30] sm:$0x3f]
        %v2685 = vld [vmem:[#allocation4 + $0x38] sm:$0x3f]
        %v2686 = vld [vmem:[#allocation4 + $0x40] sm:$0x3f]
        %v2687 = vld [vmem:[#allocation4 + $0x48] sm:$0x3f]
        %v2688 = vld [vmem:[#allocation4 + $0x50] sm:$0x3f]
        %2698 = vrot.lane.b32.xlu0 %v2680, 120
        %v2699 = vpop.permute.xlu0 %2698
        %2700 = vrot.lane.b32.xlu0 %v2681, 120
        %v2701 = vpop.permute.xlu0 %2700
        %2702 = vrot.lane.b32.xlu0 %v2682, 120
        %v2703 = vpop.permute.xlu0 %2702
        %2704 = vrot.lane.b32.xlu0 %v2683, 120
        %v2705 = vpop.permute.xlu0 %2704
        %2706 = vrot.lane.b32.xlu0 %v2684, 120
        %v2707 = vpop.permute.xlu0 %2706
        %2708 = vrot.lane.b32.xlu0 %v2685, 120
        %v2709 = vpop.permute.xlu0 %2708
        %2710 = vrot.lane.b32.xlu0 %v2686, 120
        %v2711 = vpop.permute.xlu0 %2710
        %2712 = vrot.lane.b32.xlu0 %v2687, 120
        %v2713 = vpop.permute.xlu0 %2712
        %2714 = vrot.lane.b32.xlu0 %v2688, 120
        %v2715 = vpop.permute.xlu0 %2714
        %v2716 = vsel %vm1371, %v2699, %v2701
        %v2717 = vsel %vm1371, %v2701, %v2703
        %v2718 = vsel %vm1371, %v2703, %v2705
        %v2719 = vsel %vm1371, %v2705, %v2707
        %v2720 = vsel %vm1371, %v2707, %v2709
        %v2721 = vsel %vm1371, %v2709, %v2711
        %v2722 = vsel %vm1371, %v2711, %v2713
        %v2723 = vsel %vm1371, %v2713, %v2715
        %2732 = vst [vmem:[#allocation5 + $0x480] sm:$0x3f] %v2716
        %2733 = vst [vmem:[#allocation5 + $0x488] sm:$0x3f] %v2717
        %2734 = vst [vmem:[#allocation5 + $0x490] sm:$0x3f] %v2718
        %2735 = vst [vmem:[#allocation5 + $0x498] sm:$0x3f] %v2719
        %2736 = vst [vmem:[#allocation5 + $0x4a0] sm:$0x3f] %v2720
        %2737 = vst [vmem:[#allocation5 + $0x4a8] sm:$0x3f] %v2721
        %2738 = vst [vmem:[#allocation5 + $0x4b0] sm:$0x3f] %v2722
        %2739 = vst [vmem:[#allocation5 + $0x4b8] sm:$0x3f] %v2723
        %v2740 = vld [vmem:[%s3] sm:$0xff]
        %v2741 = vld [vmem:[%s3 + $0x8] sm:$0xff]
        %v2742 = vld [vmem:[#allocation5] sm:$0xff]
        %v2743 = vld [vmem:[#allocation5 + $0x8] sm:$0xff]
        %v2744 = vld [vmem:[#allocation5 + $0x10] sm:$0xff]
        %v2745 = vld [vmem:[#allocation5 + $0x18] sm:$0xff]
        %v2746 = vld [vmem:[#allocation5 + $0x20] sm:$0xff]
        %v2747 = vld [vmem:[#allocation5 + $0x28] sm:$0xff]
        %v2748 = vld [vmem:[#allocation5 + $0x30] sm:$0xff]
        %v2749 = vld [vmem:[#allocation5 + $0x38] sm:$0xff]
        %v2750 = vld [vmem:[#allocation5 + $0x40] sm:$0xff]
        %v2751 = vld [vmem:[#allocation5 + $0x48] sm:$0xff]
        %v2752 = vld [vmem:[#allocation5 + $0x50] sm:$0xff]
        %v2753 = vld [vmem:[#allocation5 + $0x58] sm:$0xff]
        %v2754 = vld [vmem:[#allocation5 + $0x60] sm:$0xff]
        %v2755 = vld [vmem:[#allocation5 + $0x68] sm:$0xff]
        %v2756 = vld [vmem:[#allocation5 + $0x70] sm:$0xff]
        %v2757 = vld [vmem:[#allocation5 + $0x78] sm:$0xff]
        %v2758 = vld [vmem:[#allocation5 + $0x80] sm:$0xff]
        %v2759 = vld [vmem:[#allocation5 + $0x88] sm:$0xff]
        %v2760 = vld [vmem:[#allocation5 + $0x90] sm:$0xff]
        %v2761 = vld [vmem:[#allocation5 + $0x98] sm:$0xff]
        %v2762 = vld [vmem:[#allocation5 + $0xa0] sm:$0xff]
        %v2763 = vld [vmem:[#allocation5 + $0xa8] sm:$0xff]
        %v2764 = vld [vmem:[#allocation5 + $0xb0] sm:$0xff]
        %v2765 = vld [vmem:[#allocation5 + $0xb8] sm:$0xff]
        %v2766 = vld [vmem:[#allocation5 + $0xc0] sm:$0xff]
        %v2767 = vld [vmem:[#allocation5 + $0xc8] sm:$0xff]
        %v2768 = vld [vmem:[#allocation5 + $0xd0] sm:$0xff]
        %v2769 = vld [vmem:[#allocation5 + $0xd8] sm:$0xff]
        %v2770 = vld [vmem:[#allocation5 + $0xe0] sm:$0xff]
        %v2771 = vld [vmem:[#allocation5 + $0xe8] sm:$0xff]
        %v2772 = vld [vmem:[#allocation5 + $0xf0] sm:$0xff]
        %v2773 = vld [vmem:[#allocation5 + $0xf8] sm:$0xff]
        %v2774 = vld [vmem:[#allocation5 + $0x100] sm:$0xff]
        %v2775 = vld [vmem:[#allocation5 + $0x108] sm:$0xff]
        %v2776 = vld [vmem:[#allocation5 + $0x110] sm:$0xff]
        %v2777 = vld [vmem:[#allocation5 + $0x118] sm:$0xff]
        %v2778 = vld [vmem:[#allocation5 + $0x120] sm:$0xff]
        %v2779 = vld [vmem:[#allocation5 + $0x128] sm:$0xff]
        %v2780 = vld [vmem:[#allocation5 + $0x130] sm:$0xff]
        %v2781 = vld [vmem:[#allocation5 + $0x138] sm:$0xff]
        %v2782 = vld [vmem:[#allocation5 + $0x140] sm:$0xff]
        %v2783 = vld [vmem:[#allocation5 + $0x148] sm:$0xff]
        %v2784 = vld [vmem:[#allocation5 + $0x150] sm:$0xff]
        %v2785 = vld [vmem:[#allocation5 + $0x158] sm:$0xff]
        %v2786 = vld [vmem:[#allocation5 + $0x160] sm:$0xff]
        %v2787 = vld [vmem:[#allocation5 + $0x168] sm:$0xff]
        %v2788 = vld [vmem:[#allocation5 + $0x170] sm:$0xff]
        %v2789 = vld [vmem:[#allocation5 + $0x178] sm:$0xff]
        %v2790 = vld [vmem:[#allocation5 + $0x180] sm:$0xff]
        %v2791 = vld [vmem:[#allocation5 + $0x188] sm:$0xff]
        %v2792 = vld [vmem:[#allocation5 + $0x190] sm:$0xff]
        %v2793 = vld [vmem:[#allocation5 + $0x198] sm:$0xff]
        %v2794 = vld [vmem:[#allocation5 + $0x1a0] sm:$0xff]
        %v2795 = vld [vmem:[#allocation5 + $0x1a8] sm:$0xff]
        %v2796 = vld [vmem:[#allocation5 + $0x1b0] sm:$0xff]
        %v2797 = vld [vmem:[#allocation5 + $0x1b8] sm:$0xff]
        %v2798 = vld [vmem:[#allocation5 + $0x1c0] sm:$0xff]
        %v2799 = vld [vmem:[#allocation5 + $0x1c8] sm:$0xff]
        %v2800 = vld [vmem:[#allocation5 + $0x1d0] sm:$0xff]
        %v2801 = vld [vmem:[#allocation5 + $0x1d8] sm:$0xff]
        %v2802 = vld [vmem:[#allocation5 + $0x1e0] sm:$0xff]
        %v2803 = vld [vmem:[#allocation5 + $0x1e8] sm:$0xff]
        %v2804 = vld [vmem:[#allocation5 + $0x1f0] sm:$0xff]
        %v2805 = vld [vmem:[#allocation5 + $0x1f8] sm:$0xff]
        %v2806 = vld [vmem:[#allocation5 + $0x200] sm:$0xff]
        %v2807 = vld [vmem:[#allocation5 + $0x208] sm:$0xff]
        %v2808 = vld [vmem:[#allocation5 + $0x210] sm:$0xff]
        %v2809 = vld [vmem:[#allocation5 + $0x218] sm:$0xff]
        %v2810 = vld [vmem:[#allocation5 + $0x220] sm:$0xff]
        %v2811 = vld [vmem:[#allocation5 + $0x228] sm:$0xff]
        %v2812 = vld [vmem:[#allocation5 + $0x230] sm:$0xff]
        %v2813 = vld [vmem:[#allocation5 + $0x238] sm:$0xff]
        %v2814 = vld [vmem:[#allocation5 + $0x240] sm:$0xff]
        %v2815 = vld [vmem:[#allocation5 + $0x248] sm:$0xff]
        %v2816 = vld [vmem:[#allocation5 + $0x250] sm:$0xff]
        %v2817 = vld [vmem:[#allocation5 + $0x258] sm:$0xff]
        %v2818 = vld [vmem:[#allocation5 + $0x260] sm:$0xff]
        %v2819 = vld [vmem:[#allocation5 + $0x268] sm:$0xff]
        %v2820 = vld [vmem:[#allocation5 + $0x270] sm:$0xff]
        %v2821 = vld [vmem:[#allocation5 + $0x278] sm:$0xff]
        %v2822 = vld [vmem:[#allocation5 + $0x280] sm:$0xff]
        %v2823 = vld [vmem:[#allocation5 + $0x288] sm:$0xff]
        %v2824 = vld [vmem:[#allocation5 + $0x290] sm:$0xff]
        %v2825 = vld [vmem:[#allocation5 + $0x298] sm:$0xff]
        %v2826 = vld [vmem:[#allocation5 + $0x2a0] sm:$0xff]
        %v2827 = vld [vmem:[#allocation5 + $0x2a8] sm:$0xff]
        %v2828 = vld [vmem:[#allocation5 + $0x2b0] sm:$0xff]
        %v2829 = vld [vmem:[#allocation5 + $0x2b8] sm:$0xff]
        %v2830 = vld [vmem:[#allocation5 + $0x2c0] sm:$0xff]
        %v2831 = vld [vmem:[#allocation5 + $0x2c8] sm:$0xff]
        %v2832 = vld [vmem:[#allocation5 + $0x2d0] sm:$0xff]
        %v2833 = vld [vmem:[#allocation5 + $0x2d8] sm:$0xff]
        %v2834 = vld [vmem:[#allocation5 + $0x2e0] sm:$0xff]
        %v2835 = vld [vmem:[#allocation5 + $0x2e8] sm:$0xff]
        %v2836 = vld [vmem:[#allocation5 + $0x2f0] sm:$0xff]
        %v2837 = vld [vmem:[#allocation5 + $0x2f8] sm:$0xff]
        %v2838 = vld [vmem:[#allocation5 + $0x300] sm:$0xff]
        %v2839 = vld [vmem:[#allocation5 + $0x308] sm:$0xff]
        %v2840 = vld [vmem:[#allocation5 + $0x310] sm:$0xff]
        %v2841 = vld [vmem:[#allocation5 + $0x318] sm:$0xff]
        %v2842 = vld [vmem:[#allocation5 + $0x320] sm:$0xff]
        %v2843 = vld [vmem:[#allocation5 + $0x328] sm:$0xff]
        %v2844 = vld [vmem:[#allocation5 + $0x330] sm:$0xff]
        %v2845 = vld [vmem:[#allocation5 + $0x338] sm:$0xff]
        %v2846 = vld [vmem:[#allocation5 + $0x340] sm:$0xff]
        %v2847 = vld [vmem:[#allocation5 + $0x348] sm:$0xff]
        %v2848 = vld [vmem:[#allocation5 + $0x350] sm:$0xff]
        %v2849 = vld [vmem:[#allocation5 + $0x358] sm:$0xff]
        %v2850 = vld [vmem:[#allocation5 + $0x360] sm:$0xff]
        %v2851 = vld [vmem:[#allocation5 + $0x368] sm:$0xff]
        %v2852 = vld [vmem:[#allocation5 + $0x370] sm:$0xff]
        %v2853 = vld [vmem:[#allocation5 + $0x378] sm:$0xff]
        %v2854 = vld [vmem:[#allocation5 + $0x380] sm:$0xff]
        %v2855 = vld [vmem:[#allocation5 + $0x388] sm:$0xff]
        %v2856 = vld [vmem:[#allocation5 + $0x390] sm:$0xff]
        %v2857 = vld [vmem:[#allocation5 + $0x398] sm:$0xff]
        %v2858 = vld [vmem:[#allocation5 + $0x3a0] sm:$0xff]
        %v2859 = vld [vmem:[#allocation5 + $0x3a8] sm:$0xff]
        %v2860 = vld [vmem:[#allocation5 + $0x3b0] sm:$0xff]
        %v2861 = vld [vmem:[#allocation5 + $0x3b8] sm:$0xff]
        %v2862 = vld [vmem:[#allocation5 + $0x3c0] sm:$0xff]
        %v2863 = vld [vmem:[#allocation5 + $0x3c8] sm:$0xff]
        %v2864 = vld [vmem:[#allocation5 + $0x3d0] sm:$0xff]
        %v2865 = vld [vmem:[#allocation5 + $0x3d8] sm:$0xff]
        %v2866 = vld [vmem:[#allocation5 + $0x3e0] sm:$0xff]
        %v2867 = vld [vmem:[#allocation5 + $0x3e8] sm:$0xff]
        %v2868 = vld [vmem:[#allocation5 + $0x3f0] sm:$0xff]
        %v2869 = vld [vmem:[#allocation5 + $0x3f8] sm:$0xff]
        %v2870 = vld [vmem:[#allocation5 + $0x400] sm:$0xff]
        %v2871 = vld [vmem:[#allocation5 + $0x408] sm:$0xff]
        %v2872 = vld [vmem:[#allocation5 + $0x410] sm:$0xff]
        %v2873 = vld [vmem:[#allocation5 + $0x418] sm:$0xff]
        %v2874 = vld [vmem:[#allocation5 + $0x420] sm:$0xff]
        %v2875 = vld [vmem:[#allocation5 + $0x428] sm:$0xff]
        %v2876 = vld [vmem:[#allocation5 + $0x430] sm:$0xff]
        %v2877 = vld [vmem:[#allocation5 + $0x438] sm:$0xff]
        %v2878 = vld [vmem:[#allocation5 + $0x440] sm:$0xff]
        %v2879 = vld [vmem:[#allocation5 + $0x448] sm:$0xff]
        %v2880 = vld [vmem:[#allocation5 + $0x450] sm:$0xff]
        %v2881 = vld [vmem:[#allocation5 + $0x458] sm:$0xff]
        %v2882 = vld [vmem:[#allocation5 + $0x460] sm:$0xff]
        %v2883 = vld [vmem:[#allocation5 + $0x468] sm:$0xff]
        %v2884 = vld [vmem:[#allocation5 + $0x470] sm:$0xff]
        %v2885 = vld [vmem:[#allocation5 + $0x478] sm:$0xff]
        %v2886 = vld [vmem:[#allocation5 + $0x480] sm:$0x3f]
        %v2887 = vld [vmem:[#allocation5 + $0x488] sm:$0x3f]
        %v2888 = vld [vmem:[#allocation5 + $0x490] sm:$0x3f]
        %v2889 = vld [vmem:[#allocation5 + $0x498] sm:$0x3f]
        %v2890 = vld [vmem:[#allocation5 + $0x4a0] sm:$0x3f]
        %v2891 = vld [vmem:[#allocation5 + $0x4a8] sm:$0x3f]
        %v2892 = vld [vmem:[#allocation5 + $0x4b0] sm:$0x3f]
        %v2893 = vld [vmem:[#allocation5 + $0x4b8] sm:$0x3f]
        %v2894 = vpack.c.bf16 %v2750, %v2742
        %v2895 = vpack.c.bf16 %v2751, %v2743
        %v2896 = vpack.c.bf16 %v2752, %v2744
        %v2897 = vpack.c.bf16 %v2753, %v2745
        %v2898 = vpack.c.bf16 %v2754, %v2746
        %v2899 = vpack.c.bf16 %v2755, %v2747
        %v2900 = vpack.c.bf16 %v2756, %v2748
        %v2901 = vpack.c.bf16 %v2757, %v2749
        %v2902 = vpack.c.bf16 %v2766, %v2758
        %v2903 = vpack.c.bf16 %v2767, %v2759
        %v2904 = vpack.c.bf16 %v2768, %v2760
        %v2905 = vpack.c.bf16 %v2769, %v2761
        %v2906 = vpack.c.bf16 %v2770, %v2762
        %v2907 = vpack.c.bf16 %v2771, %v2763
        %v2908 = vpack.c.bf16 %v2772, %v2764
        %v2909 = vpack.c.bf16 %v2773, %v2765
        %v2910 = vpack.c.bf16 %v2782, %v2774
        %v2911 = vpack.c.bf16 %v2783, %v2775
        %v2912 = vpack.c.bf16 %v2784, %v2776
        %v2913 = vpack.c.bf16 %v2785, %v2777
        %v2914 = vpack.c.bf16 %v2786, %v2778
        %v2915 = vpack.c.bf16 %v2787, %v2779
        %v2916 = vpack.c.bf16 %v2788, %v2780
        %v2917 = vpack.c.bf16 %v2789, %v2781
        %v2918 = vpack.c.bf16 %v2798, %v2790
        %v2919 = vpack.c.bf16 %v2799, %v2791
        %v2920 = vpack.c.bf16 %v2800, %v2792
        %v2921 = vpack.c.bf16 %v2801, %v2793
        %v2922 = vpack.c.bf16 %v2802, %v2794
        %v2923 = vpack.c.bf16 %v2803, %v2795
        %v2924 = vpack.c.bf16 %v2804, %v2796
        %v2925 = vpack.c.bf16 %v2805, %v2797
        %v2926 = vpack.c.bf16 %v2814, %v2806
        %v2927 = vpack.c.bf16 %v2815, %v2807
        %v2928 = vpack.c.bf16 %v2816, %v2808
        %v2929 = vpack.c.bf16 %v2817, %v2809
        %v2930 = vpack.c.bf16 %v2818, %v2810
        %v2931 = vpack.c.bf16 %v2819, %v2811
        %v2932 = vpack.c.bf16 %v2820, %v2812
        %v2933 = vpack.c.bf16 %v2821, %v2813
        %v2934 = vpack.c.bf16 %v2830, %v2822
        %v2935 = vpack.c.bf16 %v2831, %v2823
        %v2936 = vpack.c.bf16 %v2832, %v2824
        %v2937 = vpack.c.bf16 %v2833, %v2825
        %v2938 = vpack.c.bf16 %v2834, %v2826
        %v2939 = vpack.c.bf16 %v2835, %v2827
        %v2940 = vpack.c.bf16 %v2836, %v2828
        %v2941 = vpack.c.bf16 %v2837, %v2829
        %v2942 = vpack.c.bf16 %v2846, %v2838
        %v2943 = vpack.c.bf16 %v2847, %v2839
        %v2944 = vpack.c.bf16 %v2848, %v2840
        %v2945 = vpack.c.bf16 %v2849, %v2841
        %v2946 = vpack.c.bf16 %v2850, %v2842
        %v2947 = vpack.c.bf16 %v2851, %v2843
        %v2948 = vpack.c.bf16 %v2852, %v2844
        %v2949 = vpack.c.bf16 %v2853, %v2845
        %v2950 = vpack.c.bf16 %v2862, %v2854
        %v2951 = vpack.c.bf16 %v2863, %v2855
        %v2952 = vpack.c.bf16 %v2864, %v2856
        %v2953 = vpack.c.bf16 %v2865, %v2857
        %v2954 = vpack.c.bf16 %v2866, %v2858
        %v2955 = vpack.c.bf16 %v2867, %v2859
        %v2956 = vpack.c.bf16 %v2868, %v2860
        %v2957 = vpack.c.bf16 %v2869, %v2861
        %v2958 = vpack.c.bf16 %v2878, %v2870
        %v2959 = vpack.c.bf16 %v2879, %v2871
        %v2960 = vpack.c.bf16 %v2880, %v2872
        %v2961 = vpack.c.bf16 %v2881, %v2873
        %v2962 = vpack.c.bf16 %v2882, %v2874
        %v2963 = vpack.c.bf16 %v2883, %v2875
        %v2964 = vpack.c.bf16 %v2884, %v2876
        %v2965 = vpack.c.bf16 %v2885, %v2877
        %v2966 = vpack.c.bf16 %v2886, %v2886
        %v2967 = vpack.c.bf16 %v2887, %v2887
        %v2968 = vpack.c.bf16 %v2888, %v2888
        %v2969 = vpack.c.bf16 %v2889, %v2889
        %v2970 = vpack.c.bf16 %v2890, %v2890
        %v2971 = vpack.c.bf16 %v2891, %v2891
        %v2972 = vpack.c.bf16 %v2892, %v2892
        %v2973 = vpack.c.bf16 %v2893, %v2893
        %v2974 = vld [vmem:[%s4] sm:$0xff]
        %v2975 = vld [vmem:[%s4 + $0x8] sm:$0xff]
        %2977 = vset.pattern.permute.xlu0 0
        %2978 = vperm.xlu0 %2977, %v2974
        %v2979 = vpop.permute.xlu0 %2978
        %2982 = vset.pattern.permute.xlu0 0
        %2983 = vperm.xlu0 %2982, %v2975
        %v2984 = vpop.permute.xlu0 %2983
        %v2988 = vunpack.c.l.b16 %v2740
        %v2989 = vunpack.c.h.b16 %v2740
        %v2990 = vunpack.c.l.b16 %v2741
        %v2991 = vunpack.c.h.b16 %v2741
        %v2992 = vpack.c.b16 %v2990, %v2988
        %v2993 = vpack.c.b16 %v2991, %v2989
        %vm2995 = vcmask 179200
        %v2997 = vsel %vm2995, %v2993, 0
        %vm2999 = vcmask 1042432
        %v3001 = vsel %vm2999, %v2966, 0
        %v3004 = vsel %vm2999, %v2967, 0
        %v3007 = vsel %vm2999, %v2968, 0
        %v3010 = vsel %vm2999, %v2969, 0
        %v3013 = vsel %vm2999, %v2970, 0
        %v3016 = vsel %vm2999, %v2971, 0
        %v3019 = vsel %vm2999, %v2972, 0
        %v3022 = vsel %vm2999, %v2973, 0
        %3024 = vmatprep.subr.bf16.mxu0 %v2951
        %3025 = vmatpush1.bf16.msra.mxu0 %v2950
        %3026 = vmatprep.subr.bf16.mxu0 %v2943
        %3027 = vmatpush1.bf16.msra.mxu0 %v2942
        %3028 = vmatprep.subr.bf16.mxu0 %v2935
        %3029 = vmatpush1.bf16.msra.mxu0 %v2934
        %3030 = vmatprep.subr.bf16.mxu0 %v2927
        %3031 = vmatpush1.bf16.msra.mxu0 %v2926
        %3032 = vmatprep.subr.bf16.mxu0 %v2919
        %3033 = vmatpush1.bf16.msra.mxu0 %v2918
        %3034 = vmatprep.subr.bf16.mxu0 %v2911
        %3035 = vmatpush1.bf16.msra.mxu0 %v2910
        %3036 = vmatprep.subr.bf16.mxu0 %v2903
        %3037 = vmatpush1.bf16.msra.mxu0 %v2902
        %3038 = vmatprep.subr.bf16.mxu0 %v2895
        %3039 = vmatpush1.bf16.msra.mxu0 %v2894
        %3040 = vmatprep.subr.bf16.mxu0 0
        %3041 = vmatpush2.bf16.msra.mxu0 0
        %3042 = vmatprep.subr.bf16.mxu0 0
        %3043 = vmatpush2.bf16.msra.mxu0 0
        %3044 = vmatprep.subr.bf16.mxu0 0
        %3045 = vmatpush2.bf16.msra.mxu0 0
        %3046 = vmatprep.subr.bf16.mxu0 0
        %3047 = vmatpush2.bf16.msra.mxu0 0
        %3048 = vmatprep.subr.bf16.mxu0 0
        %3049 = vmatpush2.bf16.msra.mxu0 0
        %3050 = vmatprep.subr.bf16.mxu0 0
        %3051 = vmatpush2.bf16.msra.mxu0 0
        %3052 = vmatprep.subr.bf16.mxu0 %v3004
        %3053 = vmatpush2.bf16.msra.mxu0 %v3001
        %3054 = vmatprep.subr.bf16.mxu0 %v2959
        %3055 = vmatpush2.bf16.msra.mxu0 %v2958
        %3056 = vmatprep.mubr.bf16.mxu0 %v2997
        %3057 = vmatmul.mubr.bf16.gmra.mxu0 %v2992
        %v3058 = vpop.f32.mrf.mxu0
        %v3059 = vadd.f32 %v2979, %v3058
        %v3060 = vpop.f32.mrf.mxu0
        %v3061 = vadd.f32 %v2979, %v3060
        %v3062 = vpop.f32.mrf.mxu0
        %v3063 = vadd.f32 %v2984, %v3062
        %v3064 = vpop.f32.mrf.mxu0
        %v3065 = vadd.f32 %v2984, %v3064
        %3066 = vdwg.mxu0
        %3067 = vmatprep.subr.bf16.mxu0 %v2953
        %3068 = vmatpush1.bf16.msra.mxu0 %v2952
        %3069 = vmatprep.subr.bf16.mxu0 %v2945
        %3070 = vmatpush1.bf16.msra.mxu0 %v2944
        %3071 = vmatprep.subr.bf16.mxu0 %v2937
        %3072 = vmatpush1.bf16.msra.mxu0 %v2936
        %3073 = vmatprep.subr.bf16.mxu0 %v2929
        %3074 = vmatpush1.bf16.msra.mxu0 %v2928
        %3075 = vmatprep.subr.bf16.mxu0 %v2921
        %3076 = vmatpush1.bf16.msra.mxu0 %v2920
        %3077 = vmatprep.subr.bf16.mxu0 %v2913
        %3078 = vmatpush1.bf16.msra.mxu0 %v2912
        %3079 = vmatprep.subr.bf16.mxu0 %v2905
        %3080 = vmatpush1.bf16.msra.mxu0 %v2904
        %3081 = vmatprep.subr.bf16.mxu0 %v2897
        %3082 = vmatpush1.bf16.msra.mxu0 %v2896
        %3083 = vmatprep.subr.bf16.mxu0 0
        %3084 = vmatpush2.bf16.msra.mxu0 0
        %3085 = vmatprep.subr.bf16.mxu0 0
        %3086 = vmatpush2.bf16.msra.mxu0 0
        %3087 = vmatprep.subr.bf16.mxu0 0
        %3088 = vmatpush2.bf16.msra.mxu0 0
        %3089 = vmatprep.subr.bf16.mxu0 0
        %3090 = vmatpush2.bf16.msra.mxu0 0
        %3091 = vmatprep.subr.bf16.mxu0 0
        %3092 = vmatpush2.bf16.msra.mxu0 0
        %3093 = vmatprep.subr.bf16.mxu0 0
        %3094 = vmatpush2.bf16.msra.mxu0 0
        %3095 = vmatprep.subr.bf16.mxu0 %v3010
        %3096 = vmatpush2.bf16.msra.mxu0 %v3007
        %3097 = vmatprep.subr.bf16.mxu0 %v2961
        %3098 = vmatpush2.bf16.msra.mxu0 %v2960
        %3099 = vmatprep.mubr.bf16.mxu0 %v2997
        %3100 = vmatmul.mubr.bf16.gmra.mxu0 %v2992
        %v3101 = vpop.f32.mrf.mxu0
        %v3102 = vadd.f32 %v2979, %v3101
        %v3103 = vpop.f32.mrf.mxu0
        %v3104 = vadd.f32 %v2979, %v3103
        %v3105 = vpop.f32.mrf.mxu0
        %v3106 = vadd.f32 %v2984, %v3105
        %v3107 = vpop.f32.mrf.mxu0
        %v3108 = vadd.f32 %v2984, %v3107
        %3109 = vdwg.mxu0
        %3110 = vmatprep.subr.bf16.mxu0 %v2955
        %3111 = vmatpush1.bf16.msra.mxu0 %v2954
        %3112 = vmatprep.subr.bf16.mxu0 %v2947
        %3113 = vmatpush1.bf16.msra.mxu0 %v2946
        %3114 = vmatprep.subr.bf16.mxu0 %v2939
        %3115 = vmatpush1.bf16.msra.mxu0 %v2938
        %3116 = vmatprep.subr.bf16.mxu0 %v2931
        %3117 = vmatpush1.bf16.msra.mxu0 %v2930
        %3118 = vmatprep.subr.bf16.mxu0 %v2923
        %3119 = vmatpush1.bf16.msra.mxu0 %v2922
        %3120 = vmatprep.subr.bf16.mxu0 %v2915
        %3121 = vmatpush1.bf16.msra.mxu0 %v2914
        %3122 = vmatprep.subr.bf16.mxu0 %v2907
        %3123 = vmatpush1.bf16.msra.mxu0 %v2906
        %3124 = vmatprep.subr.bf16.mxu0 %v2899
        %3125 = vmatpush1.bf16.msra.mxu0 %v2898
        %3126 = vmatprep.subr.bf16.mxu0 0
        %3127 = vmatpush2.bf16.msra.mxu0 0
        %3128 = vmatprep.subr.bf16.mxu0 0
        %3129 = vmatpush2.bf16.msra.mxu0 0
        %3130 = vmatprep.subr.bf16.mxu0 0
        %3131 = vmatpush2.bf16.msra.mxu0 0
        %3132 = vmatprep.subr.bf16.mxu0 0
        %3133 = vmatpush2.bf16.msra.mxu0 0
        %3134 = vmatprep.subr.bf16.mxu0 0
        %3135 = vmatpush2.bf16.msra.mxu0 0
        %3136 = vmatprep.subr.bf16.mxu0 0
        %3137 = vmatpush2.bf16.msra.mxu0 0
        %3138 = vmatprep.subr.bf16.mxu0 %v3016
        %3139 = vmatpush2.bf16.msra.mxu0 %v3013
        %3140 = vmatprep.subr.bf16.mxu0 %v2963
        %3141 = vmatpush2.bf16.msra.mxu0 %v2962
        %3142 = vmatprep.mubr.bf16.mxu0 %v2997
        %3143 = vmatmul.mubr.bf16.gmra.mxu0 %v2992
        %v3144 = vpop.f32.mrf.mxu0
        %v3145 = vadd.f32 %v2979, %v3144
        %v3146 = vpop.f32.mrf.mxu0
        %v3147 = vadd.f32 %v2979, %v3146
        %v3148 = vpop.f32.mrf.mxu0
        %v3149 = vadd.f32 %v2984, %v3148
        %v3150 = vpop.f32.mrf.mxu0
        %v3151 = vadd.f32 %v2984, %v3150
        %3152 = vdwg.mxu0
        %3153 = vmatprep.subr.bf16.mxu0 %v2957
        %3154 = vmatpush1.bf16.msra.mxu0 %v2956
        %3155 = vmatprep.subr.bf16.mxu0 %v2949
        %3156 = vmatpush1.bf16.msra.mxu0 %v2948
        %3157 = vmatprep.subr.bf16.mxu0 %v2941
        %3158 = vmatpush1.bf16.msra.mxu0 %v2940
        %3159 = vmatprep.subr.bf16.mxu0 %v2933
        %3160 = vmatpush1.bf16.msra.mxu0 %v2932
        %3161 = vmatprep.subr.bf16.mxu0 %v2925
        %3162 = vmatpush1.bf16.msra.mxu0 %v2924
        %3163 = vmatprep.subr.bf16.mxu0 %v2917
        %3164 = vmatpush1.bf16.msra.mxu0 %v2916
        %3165 = vmatprep.subr.bf16.mxu0 %v2909
        %3166 = vmatpush1.bf16.msra.mxu0 %v2908
        %3167 = vmatprep.subr.bf16.mxu0 %v2901
        %3168 = vmatpush1.bf16.msra.mxu0 %v2900
        %3169 = vmatprep.subr.bf16.mxu0 0
        %3170 = vmatpush2.bf16.msra.mxu0 0
        %3171 = vmatprep.subr.bf16.mxu0 0
        %3172 = vmatpush2.bf16.msra.mxu0 0
        %3173 = vmatprep.subr.bf16.mxu0 0
        %3174 = vmatpush2.bf16.msra.mxu0 0
        %3175 = vmatprep.subr.bf16.mxu0 0
        %3176 = vmatpush2.bf16.msra.mxu0 0
        %3177 = vmatprep.subr.bf16.mxu0 0
        %3178 = vmatpush2.bf16.msra.mxu0 0
        %3179 = vmatprep.subr.bf16.mxu0 0
        %3180 = vmatpush2.bf16.msra.mxu0 0
        %3181 = vmatprep.subr.bf16.mxu0 %v3022
        %3182 = vmatpush2.bf16.msra.mxu0 %v3019
        %3183 = vmatprep.subr.bf16.mxu0 %v2965
        %3184 = vmatpush2.bf16.msra.mxu0 %v2964
        %3185 = vmatprep.mubr.bf16.mxu0 %v2997
        %3186 = vmatmul.mubr.bf16.gmra.mxu0 %v2992
        %v3187 = vpop.f32.mrf.mxu0
        %v3188 = vadd.f32 %v2979, %v3187
        %v3189 = vpop.f32.mrf.mxu0
        %v3190 = vadd.f32 %v2979, %v3189
        %v3191 = vpop.f32.mrf.mxu0
        %v3192 = vadd.f32 %v2984, %v3191
        %v3193 = vpop.f32.mrf.mxu0
        %v3194 = vadd.f32 %v2984, %v3193
        %3195 = vdwg.mxu0
        %v3196 = vmax.f32 %v3059, 0.0
        %v3197 = vmax.f32 %v3061, 0.0
        %v3198 = vmax.f32 %v3102, 0.0
        %v3199 = vmax.f32 %v3104, 0.0
        %v3200 = vmax.f32 %v3145, 0.0
        %v3201 = vmax.f32 %v3147, 0.0
        %v3202 = vmax.f32 %v3188, 0.0
        %v3203 = vmax.f32 %v3190, 0.0
        %v3204 = vmax.f32 %v3063, 0.0
        %v3205 = vmax.f32 %v3065, 0.0
        %v3206 = vmax.f32 %v3106, 0.0
        %v3207 = vmax.f32 %v3108, 0.0
        %v3208 = vmax.f32 %v3149, 0.0
        %v3209 = vmax.f32 %v3151, 0.0
        %v3210 = vmax.f32 %v3192, 0.0
        %v3211 = vmax.f32 %v3194, 0.0
        %3212 = vst [vmem:[#allocation6] sm:$0xff] %v3196
        %3213 = vst [vmem:[#allocation6 + $0x8] sm:$0xff] %v3197
        %3214 = vst [vmem:[#allocation6 + $0x10] sm:$0xff] %v3198
        %3215 = vst [vmem:[#allocation6 + $0x18] sm:$0xff] %v3199
        %3216 = vst [vmem:[#allocation6 + $0x20] sm:$0xff] %v3200
        %3217 = vst [vmem:[#allocation6 + $0x28] sm:$0xff] %v3201
        %3218 = vst [vmem:[#allocation6 + $0x30] sm:$0xff] %v3202
        %3219 = vst [vmem:[#allocation6 + $0x38] sm:$0xff] %v3203
        %3220 = vst [vmem:[#allocation6 + $0x48] sm:$0xff] %v3204
        %3221 = vst [vmem:[#allocation6 + $0x50] sm:$0xff] %v3205
        %3222 = vst [vmem:[#allocation6 + $0x58] sm:$0xff] %v3206
        %3223 = vst [vmem:[#allocation6 + $0x60] sm:$0xff] %v3207
        %3224 = vst [vmem:[#allocation6 + $0x68] sm:$0xff] %v3208
        %3225 = vst [vmem:[#allocation6 + $0x70] sm:$0xff] %v3209
        %3226 = vst [vmem:[#allocation6 + $0x78] sm:$0xff] %v3210
        %3227 = vst [vmem:[#allocation6 + $0x80] sm:$0xff] %v3211
        %3228 = vst [vmem:[#allocation6 + $0x40] sm:$0xff] 0.0
        %3229 = vst [vmem:[#allocation6 + $0x88] sm:$0xff] 0.0
        %v3230 = vld [vmem:[#allocation6] sm:$0xff]
        %v3231 = vld [vmem:[#allocation6 + $0x8] sm:$0xff]
        %v3232 = vld [vmem:[#allocation6 + $0x10] sm:$0xff]
        %v3233 = vld [vmem:[#allocation6 + $0x18] sm:$0xff]
        %v3234 = vld [vmem:[#allocation6 + $0x20] sm:$0xff]
        %v3235 = vld [vmem:[#allocation6 + $0x28] sm:$0xff]
        %v3236 = vld [vmem:[#allocation6 + $0x30] sm:$0xff]
        %v3237 = vld [vmem:[#allocation6 + $0x38] sm:$0xff]
        %v3238 = vld [vmem:[#allocation6 + $0x48] sm:$0xff]
        %v3239 = vld [vmem:[#allocation6 + $0x50] sm:$0xff]
        %v3240 = vld [vmem:[#allocation6 + $0x58] sm:$0xff]
        %v3241 = vld [vmem:[#allocation6 + $0x60] sm:$0xff]
        %v3242 = vld [vmem:[#allocation6 + $0x68] sm:$0xff]
        %v3243 = vld [vmem:[#allocation6 + $0x70] sm:$0xff]
        %v3244 = vld [vmem:[#allocation6 + $0x78] sm:$0xff]
        %v3245 = vld [vmem:[#allocation6 + $0x80] sm:$0xff]
        %v3246 = vld [vmem:[#allocation6] sm:$0xff]
        %v3247 = vld [vmem:[#allocation6 + $0x8] sm:$0xff]
        %v3248 = vld [vmem:[#allocation6 + $0x10] sm:$0xff]
        %v3249 = vld [vmem:[#allocation6 + $0x18] sm:$0xff]
        %v3250 = vld [vmem:[#allocation6 + $0x20] sm:$0xff]
        %v3251 = vld [vmem:[#allocation6 + $0x28] sm:$0xff]
        %v3252 = vld [vmem:[#allocation6 + $0x30] sm:$0xff]
        %v3253 = vld [vmem:[#allocation6 + $0x38] sm:$0xff]
        %v3254 = vld [vmem:[#allocation6 + $0x40] sm:$0xff]
        %v3255 = vld [vmem:[#allocation6 + $0x48] sm:$0xff]
        %v3256 = vld [vmem:[#allocation6 + $0x50] sm:$0xff]
        %v3257 = vld [vmem:[#allocation6 + $0x58] sm:$0xff]
        %v3258 = vld [vmem:[#allocation6 + $0x60] sm:$0xff]
        %v3259 = vld [vmem:[#allocation6 + $0x68] sm:$0xff]
        %v3260 = vld [vmem:[#allocation6 + $0x70] sm:$0xff]
        %v3261 = vld [vmem:[#allocation6 + $0x78] sm:$0xff]
        %v3262 = vld [vmem:[#allocation6 + $0x80] sm:$0xff]
        %v3263 = vld [vmem:[#allocation6 + $0x88] sm:$0xff]
        %3282 = vrot.lane.b32.xlu0 %v3246, 126
        %v3283 = vpop.permute.xlu0 %3282
        %3284 = vrot.lane.b32.xlu0 %v3247, 126
        %v3285 = vpop.permute.xlu0 %3284
        %3286 = vrot.lane.b32.xlu0 %v3248, 126
        %v3287 = vpop.permute.xlu0 %3286
        %3288 = vrot.lane.b32.xlu0 %v3249, 126
        %v3289 = vpop.permute.xlu0 %3288
        %3290 = vrot.lane.b32.xlu0 %v3250, 126
        %v3291 = vpop.permute.xlu0 %3290
        %3292 = vrot.lane.b32.xlu0 %v3251, 126
        %v3293 = vpop.permute.xlu0 %3292
        %3294 = vrot.lane.b32.xlu0 %v3252, 126
        %v3295 = vpop.permute.xlu0 %3294
        %3296 = vrot.lane.b32.xlu0 %v3253, 126
        %v3297 = vpop.permute.xlu0 %3296
        %3298 = vrot.lane.b32.xlu0 %v3254, 126
        %v3299 = vpop.permute.xlu0 %3298
        %3300 = vrot.lane.b32.xlu0 %v3255, 126
        %v3301 = vpop.permute.xlu0 %3300
        %3302 = vrot.lane.b32.xlu0 %v3256, 126
        %v3303 = vpop.permute.xlu0 %3302
        %3304 = vrot.lane.b32.xlu0 %v3257, 126
        %v3305 = vpop.permute.xlu0 %3304
        %3306 = vrot.lane.b32.xlu0 %v3258, 126
        %v3307 = vpop.permute.xlu0 %3306
        %3308 = vrot.lane.b32.xlu0 %v3259, 126
        %v3309 = vpop.permute.xlu0 %3308
        %3310 = vrot.lane.b32.xlu0 %v3260, 126
        %v3311 = vpop.permute.xlu0 %3310
        %3312 = vrot.lane.b32.xlu0 %v3261, 126
        %v3313 = vpop.permute.xlu0 %3312
        %3314 = vrot.lane.b32.xlu0 %v3262, 126
        %v3315 = vpop.permute.xlu0 %3314
        %3316 = vrot.lane.b32.xlu0 %v3263, 126
        %v3317 = vpop.permute.xlu0 %3316
        %v3318 = vsel %vm436, %v3283, %v3285
        %v3319 = vsel %vm436, %v3285, %v3287
        %v3320 = vsel %vm436, %v3287, %v3289
        %v3321 = vsel %vm436, %v3289, %v3291
        %v3322 = vsel %vm436, %v3291, %v3293
        %v3323 = vsel %vm436, %v3293, %v3295
        %v3324 = vsel %vm436, %v3295, %v3297
        %v3325 = vsel %vm436, %v3297, %v3299
        %v3326 = vsel %vm436, %v3301, %v3303
        %v3327 = vsel %vm436, %v3303, %v3305
        %v3328 = vsel %vm436, %v3305, %v3307
        %v3329 = vsel %vm436, %v3307, %v3309
        %v3330 = vsel %vm436, %v3309, %v3311
        %v3331 = vsel %vm436, %v3311, %v3313
        %v3332 = vsel %vm436, %v3313, %v3315
        %v3333 = vsel %vm436, %v3315, %v3317
        %v3350 = vmax.f32 %v3230, %v3318
        %v3351 = vmax.f32 %v3231, %v3319
        %v3352 = vmax.f32 %v3232, %v3320
        %v3353 = vmax.f32 %v3233, %v3321
        %v3354 = vmax.f32 %v3234, %v3322
        %v3355 = vmax.f32 %v3235, %v3323
        %v3356 = vmax.f32 %v3236, %v3324
        %v3357 = vmax.f32 %v3237, %v3325
        %v3358 = vmax.f32 %v3238, %v3326
        %v3359 = vmax.f32 %v3239, %v3327
        %v3360 = vmax.f32 %v3240, %v3328
        %v3361 = vmax.f32 %v3241, %v3329
        %v3362 = vmax.f32 %v3242, %v3330
        %v3363 = vmax.f32 %v3243, %v3331
        %v3364 = vmax.f32 %v3244, %v3332
        %v3365 = vmax.f32 %v3245, %v3333
        %v3368 = vmax.f32 %v3246, %v3318
        %v3369 = vmax.f32 %v3247, %v3319
        %v3370 = vmax.f32 %v3248, %v3320
        %v3371 = vmax.f32 %v3249, %v3321
        %v3372 = vmax.f32 %v3250, %v3322
        %v3373 = vmax.f32 %v3251, %v3323
        %v3374 = vmax.f32 %v3252, %v3324
        %v3375 = vmax.f32 %v3253, %v3325
        %v3376 = vmax.f32 %v3254, %v3299
        %v3377 = vmax.f32 %v3255, %v3326
        %v3378 = vmax.f32 %v3256, %v3327
        %v3379 = vmax.f32 %v3257, %v3328
        %v3380 = vmax.f32 %v3258, %v3329
        %v3381 = vmax.f32 %v3259, %v3330
        %v3382 = vmax.f32 %v3260, %v3331
        %v3383 = vmax.f32 %v3261, %v3332
        %v3384 = vmax.f32 %v3262, %v3333
        %v3385 = vmax.f32 %v3263, %v3317
        %3404 = vrot.lane.b32.xlu0 %v3368, 64
        %v3405 = vpop.permute.xlu0 %3404
        %3406 = vrot.lane.b32.xlu0 %v3369, 64
        %v3407 = vpop.permute.xlu0 %3406
        %3408 = vrot.lane.b32.xlu0 %v3370, 64
        %v3409 = vpop.permute.xlu0 %3408
        %3410 = vrot.lane.b32.xlu0 %v3371, 64
        %v3411 = vpop.permute.xlu0 %3410
        %3412 = vrot.lane.b32.xlu0 %v3372, 64
        %v3413 = vpop.permute.xlu0 %3412
        %3414 = vrot.lane.b32.xlu0 %v3373, 64
        %v3415 = vpop.permute.xlu0 %3414
        %3416 = vrot.lane.b32.xlu0 %v3374, 64
        %v3417 = vpop.permute.xlu0 %3416
        %3418 = vrot.lane.b32.xlu0 %v3375, 64
        %v3419 = vpop.permute.xlu0 %3418
        %3420 = vrot.lane.b32.xlu0 %v3376, 64
        %v3421 = vpop.permute.xlu0 %3420
        %3422 = vrot.lane.b32.xlu0 %v3377, 64
        %v3423 = vpop.permute.xlu0 %3422
        %3424 = vrot.lane.b32.xlu0 %v3378, 64
        %v3425 = vpop.permute.xlu0 %3424
        %3426 = vrot.lane.b32.xlu0 %v3379, 64
        %v3427 = vpop.permute.xlu0 %3426
        %3428 = vrot.lane.b32.xlu0 %v3380, 64
        %v3429 = vpop.permute.xlu0 %3428
        %3430 = vrot.lane.b32.xlu0 %v3381, 64
        %v3431 = vpop.permute.xlu0 %3430
        %3432 = vrot.lane.b32.xlu0 %v3382, 64
        %v3433 = vpop.permute.xlu0 %3432
        %3434 = vrot.lane.b32.xlu0 %v3383, 64
        %v3435 = vpop.permute.xlu0 %3434
        %3436 = vrot.lane.b32.xlu0 %v3384, 64
        %v3437 = vpop.permute.xlu0 %3436
        %3438 = vrot.lane.b32.xlu0 %v3385, 64
        %v3439 = vpop.permute.xlu0 %3438
        %v3440 = vsel %vm540, %v3405, %v3407
        %v3441 = vsel %vm540, %v3407, %v3409
        %v3442 = vsel %vm540, %v3409, %v3411
        %v3443 = vsel %vm540, %v3411, %v3413
        %v3444 = vsel %vm540, %v3413, %v3415
        %v3445 = vsel %vm540, %v3415, %v3417
        %v3446 = vsel %vm540, %v3417, %v3419
        %v3447 = vsel %vm540, %v3419, %v3421
        %v3448 = vsel %vm540, %v3423, %v3425
        %v3449 = vsel %vm540, %v3425, %v3427
        %v3450 = vsel %vm540, %v3427, %v3429
        %v3451 = vsel %vm540, %v3429, %v3431
        %v3452 = vsel %vm540, %v3431, %v3433
        %v3453 = vsel %vm540, %v3433, %v3435
        %v3454 = vsel %vm540, %v3435, %v3437
        %v3455 = vsel %vm540, %v3437, %v3439
        %v3472 = vmax.f32 %v3350, %v3440
        %v3473 = vmax.f32 %v3351, %v3441
        %v3474 = vmax.f32 %v3352, %v3442
        %v3475 = vmax.f32 %v3353, %v3443
        %v3476 = vmax.f32 %v3354, %v3444
        %v3477 = vmax.f32 %v3355, %v3445
        %v3478 = vmax.f32 %v3356, %v3446
        %v3479 = vmax.f32 %v3357, %v3447
        %v3480 = vmax.f32 %v3358, %v3448
        %v3481 = vmax.f32 %v3359, %v3449
        %v3482 = vmax.f32 %v3360, %v3450
        %v3483 = vmax.f32 %v3361, %v3451
        %v3484 = vmax.f32 %v3362, %v3452
        %v3485 = vmax.f32 %v3363, %v3453
        %v3486 = vmax.f32 %v3364, %v3454
        %v3487 = vmax.f32 %v3365, %v3455
        %v3488 = vpack.c.bf16 %v3480, %v3472
        %v3489 = vpack.c.bf16 %v3481, %v3473
        %v3490 = vpack.c.bf16 %v3482, %v3474
        %v3491 = vpack.c.bf16 %v3483, %v3475
        %v3492 = vpack.c.bf16 %v3484, %v3476
        %v3493 = vpack.c.bf16 %v3485, %v3477
        %v3494 = vpack.c.bf16 %v3486, %v3478
        %v3495 = vpack.c.bf16 %v3487, %v3479
        %v3496 = vld [vmem:[%s5] sm:$0xf]
        %v3497 = vld [vmem:[%s5 + $0x4] sm:$0xf]
        %v3498 = vld [vmem:[%s5 + $0x8] sm:$0xf]
        %v3499 = vld [vmem:[%s5 + $0xc] sm:$0xf]
        %v3500 = vld [vmem:[%s5 + $0x10] sm:$0xf]
        %v3501 = vld [vmem:[%s5 + $0x14] sm:$0xf]
        %v3502 = vld [vmem:[%s5 + $0x18] sm:$0xf]
        %v3503 = vld [vmem:[%s5 + $0x1c] sm:$0xf]
        %v3504 = vld [vmem:[%s5 + $0x20] sm:$0xf]
        %v3505 = vld [vmem:[%s5 + $0x24] sm:$0xf]
        %v3506 = vld [vmem:[%s5 + $0x28] sm:$0xf]
        %v3507 = vld [vmem:[%s5 + $0x2c] sm:$0xf]
        %v3508 = vld [vmem:[%s5 + $0x30] sm:$0xf]
        %v3509 = vld [vmem:[%s5 + $0x34] sm:$0xf]
        %v3510 = vld [vmem:[%s5 + $0x38] sm:$0xf]
        %v3511 = vld [vmem:[%s5 + $0x3c] sm:$0xf]
        %v3512 = vld [vmem:[%s5 + $0x40] sm:$0xf]
        %v3513 = vld [vmem:[%s5 + $0x44] sm:$0xf]
        %v3514 = vld [vmem:[%s5 + $0x48] sm:$0xf]
        %v3515 = vld [vmem:[%s5 + $0x4c] sm:$0xf]
        %v3516 = vld [vmem:[%s5 + $0x50] sm:$0xf]
        %v3517 = vld [vmem:[%s5 + $0x54] sm:$0xf]
        %v3518 = vld [vmem:[%s5 + $0x58] sm:$0xf]
        %v3519 = vld [vmem:[%s5 + $0x5c] sm:$0xf]
        %v3520 = vld [vmem:[%s5 + $0x60] sm:$0xf]
        %v3521 = vld [vmem:[%s5 + $0x64] sm:$0xf]
        %v3522 = vld [vmem:[%s5 + $0x68] sm:$0xf]
        %v3523 = vld [vmem:[%s5 + $0x6c] sm:$0xf]
        %v3524 = vld [vmem:[%s5 + $0x70] sm:$0xf]
        %v3525 = vld [vmem:[%s5 + $0x74] sm:$0xf]
        %v3526 = vld [vmem:[%s5 + $0x78] sm:$0xf]
        %v3527 = vld [vmem:[%s5 + $0x7c] sm:$0xf]
        %v3528 = vld [vmem:[%s5 + $0x80] sm:$0xf]
        %v3529 = vld [vmem:[%s5 + $0x84] sm:$0xf]
        %v3530 = vld [vmem:[%s5 + $0x88] sm:$0xf]
        %v3531 = vld [vmem:[%s5 + $0x8c] sm:$0xf]
        %v3532 = vld [vmem:[%s5 + $0x90] sm:$0xf]
        %v3533 = vld [vmem:[%s5 + $0x94] sm:$0xf]
        %v3534 = vld [vmem:[%s5 + $0x98] sm:$0xf]
        %v3535 = vld [vmem:[%s5 + $0x9c] sm:$0xf]
        %v3536 = vld [vmem:[%s5 + $0xa0] sm:$0xf]
        %v3537 = vld [vmem:[%s5 + $0xa4] sm:$0xf]
        %v3538 = vld [vmem:[%s5 + $0xa8] sm:$0xf]
        %v3539 = vld [vmem:[%s5 + $0xac] sm:$0xf]
        %v3540 = vld [vmem:[%s5 + $0xb0] sm:$0xf]
        %v3541 = vld [vmem:[%s5 + $0xb4] sm:$0xf]
        %v3542 = vld [vmem:[%s5 + $0xb8] sm:$0xf]
        %v3543 = vld [vmem:[%s5 + $0xbc] sm:$0xf]
        %v3544 = vld [vmem:[%s5 + $0xc0] sm:$0xf]
        %v3545 = vld [vmem:[%s5 + $0xc4] sm:$0xf]
        %v3546 = vld [vmem:[%s5 + $0xc8] sm:$0xf]
        %v3547 = vld [vmem:[%s5 + $0xcc] sm:$0xf]
        %v3548 = vld [vmem:[%s5 + $0xd0] sm:$0xf]
        %v3549 = vld [vmem:[%s5 + $0xd4] sm:$0xf]
        %v3550 = vld [vmem:[%s5 + $0xd8] sm:$0xf]
        %v3551 = vld [vmem:[%s5 + $0xdc] sm:$0xf]
        %v3552 = vld [vmem:[%s5 + $0xe0] sm:$0xf]
        %v3553 = vld [vmem:[%s5 + $0xe4] sm:$0xf]
        %v3554 = vld [vmem:[%s5 + $0xe8] sm:$0xf]
        %v3555 = vld [vmem:[%s5 + $0xec] sm:$0xf]
        %v3556 = vld [vmem:[%s5 + $0xf0] sm:$0xf]
        %v3557 = vld [vmem:[%s5 + $0xf4] sm:$0xf]
        %v3558 = vld [vmem:[%s5 + $0xf8] sm:$0xf]
        %v3559 = vld [vmem:[%s5 + $0xfc] sm:$0xf]
        %v3560 = vld [vmem:[%s5 + $0x100] sm:$0xf]
        %v3561 = vld [vmem:[%s5 + $0x104] sm:$0xf]
        %v3562 = vld [vmem:[%s5 + $0x108] sm:$0xf]
        %v3563 = vld [vmem:[%s5 + $0x10c] sm:$0xf]
        %v3564 = vld [vmem:[%s5 + $0x110] sm:$0xf]
        %v3565 = vld [vmem:[%s5 + $0x114] sm:$0xf]
        %v3566 = vld [vmem:[%s5 + $0x118] sm:$0xf]
        %v3567 = vld [vmem:[%s5 + $0x11c] sm:$0xf]
        %v3568 = vld [vmem:[%s5 + $0x120] sm:$0xf]
        %v3569 = vld [vmem:[%s5 + $0x124] sm:$0xf]
        %v3570 = vld [vmem:[%s5 + $0x128] sm:$0xf]
        %v3571 = vld [vmem:[%s5 + $0x12c] sm:$0xf]
        %v3572 = vld [vmem:[%s5 + $0x130] sm:$0xf]
        %v3573 = vld [vmem:[%s5 + $0x134] sm:$0xf]
        %v3574 = vld [vmem:[%s5 + $0x138] sm:$0xf]
        %v3575 = vld [vmem:[%s5 + $0x13c] sm:$0xf]
        %v3576 = vld [vmem:[%s5 + $0x140] sm:$0xf]
        %v3577 = vld [vmem:[%s5 + $0x144] sm:$0xf]
        %v3578 = vld [vmem:[%s5 + $0x148] sm:$0xf]
        %v3579 = vld [vmem:[%s5 + $0x14c] sm:$0xf]
        %v3580 = vld [vmem:[%s5 + $0x150] sm:$0xf]
        %v3581 = vld [vmem:[%s5 + $0x154] sm:$0xf]
        %v3582 = vld [vmem:[%s5 + $0x158] sm:$0xf]
        %v3583 = vld [vmem:[%s5 + $0x15c] sm:$0xf]
        %v3584 = vld [vmem:[%s5 + $0x160] sm:$0xf]
        %v3585 = vld [vmem:[%s5 + $0x164] sm:$0xf]
        %v3586 = vld [vmem:[%s5 + $0x168] sm:$0xf]
        %v3587 = vld [vmem:[%s5 + $0x16c] sm:$0xf]
        %v3588 = vld [vmem:[%s5 + $0x170] sm:$0xf]
        %v3589 = vld [vmem:[%s5 + $0x174] sm:$0xf]
        %v3590 = vld [vmem:[%s5 + $0x178] sm:$0xf]
        %v3591 = vld [vmem:[%s5 + $0x17c] sm:$0xf]
        %v3592 = vld [vmem:[%s5 + $0x180] sm:$0xf]
        %v3593 = vld [vmem:[%s5 + $0x184] sm:$0xf]
        %v3594 = vld [vmem:[%s5 + $0x188] sm:$0xf]
        %v3595 = vld [vmem:[%s5 + $0x18c] sm:$0xf]
        %v3596 = vld [vmem:[%s5 + $0x190] sm:$0xf]
        %v3597 = vld [vmem:[%s5 + $0x194] sm:$0xf]
        %v3598 = vld [vmem:[%s5 + $0x198] sm:$0xf]
        %v3599 = vld [vmem:[%s5 + $0x19c] sm:$0xf]
        %v3600 = vld [vmem:[%s5 + $0x1a0] sm:$0xf]
        %v3601 = vld [vmem:[%s5 + $0x1a4] sm:$0xf]
        %v3602 = vld [vmem:[%s5 + $0x1a8] sm:$0xf]
        %v3603 = vld [vmem:[%s5 + $0x1ac] sm:$0xf]
        %v3604 = vld [vmem:[%s5 + $0x1b0] sm:$0xf]
        %v3605 = vld [vmem:[%s5 + $0x1b4] sm:$0xf]
        %v3606 = vld [vmem:[%s5 + $0x1b8] sm:$0xf]
        %v3607 = vld [vmem:[%s5 + $0x1bc] sm:$0xf]
        %v3608 = vld [vmem:[%s5 + $0x1c0] sm:$0xf]
        %v3609 = vld [vmem:[%s5 + $0x1c4] sm:$0xf]
        %v3610 = vld [vmem:[%s5 + $0x1c8] sm:$0xf]
        %v3611 = vld [vmem:[%s5 + $0x1cc] sm:$0xf]
        %v3612 = vld [vmem:[%s5 + $0x1d0] sm:$0xf]
        %v3613 = vld [vmem:[%s5 + $0x1d4] sm:$0xf]
        %v3614 = vld [vmem:[%s5 + $0x1d8] sm:$0xf]
        %v3615 = vld [vmem:[%s5 + $0x1dc] sm:$0xf]
        %v3616 = vld [vmem:[%s5 + $0x1e0] sm:$0xf]
        %v3617 = vld [vmem:[%s5 + $0x1e4] sm:$0xf]
        %v3618 = vld [vmem:[%s5 + $0x1e8] sm:$0xf]
        %v3619 = vld [vmem:[%s5 + $0x1ec] sm:$0xf]
        %v3620 = vld [vmem:[%s5 + $0x1f0] sm:$0xf]
        %v3621 = vld [vmem:[%s5 + $0x1f4] sm:$0xf]
        %v3622 = vld [vmem:[%s5 + $0x1f8] sm:$0xf]
        %v3623 = vld [vmem:[%s5 + $0x1fc] sm:$0xf]
        %v3752 = vunpack.c.l.b16 %v3496
        %v3753 = vunpack.c.l.b16 %v3497
        %v3754 = vunpack.c.l.b16 %v3498
        %v3755 = vunpack.c.l.b16 %v3499
        %v3756 = vunpack.c.l.b16 %v3500
        %v3757 = vunpack.c.l.b16 %v3501
        %v3758 = vunpack.c.l.b16 %v3502
        %v3759 = vunpack.c.l.b16 %v3503
        %v3760 = vunpack.c.l.b16 %v3504
        %v3761 = vunpack.c.l.b16 %v3505
        %v3762 = vunpack.c.l.b16 %v3506
        %v3763 = vunpack.c.l.b16 %v3507
        %v3764 = vunpack.c.l.b16 %v3508
        %v3765 = vunpack.c.l.b16 %v3509
        %v3766 = vunpack.c.l.b16 %v3510
        %v3767 = vunpack.c.l.b16 %v3511
        %v3768 = vunpack.c.l.b16 %v3512
        %v3769 = vunpack.c.l.b16 %v3513
        %v3770 = vunpack.c.l.b16 %v3514
        %v3771 = vunpack.c.l.b16 %v3515
        %v3772 = vunpack.c.l.b16 %v3516
        %v3773 = vunpack.c.l.b16 %v3517
        %v3774 = vunpack.c.l.b16 %v3518
        %v3775 = vunpack.c.l.b16 %v3519
        %v3776 = vunpack.c.l.b16 %v3520
        %v3777 = vunpack.c.l.b16 %v3521
        %v3778 = vunpack.c.l.b16 %v3522
        %v3779 = vunpack.c.l.b16 %v3523
        %v3780 = vunpack.c.l.b16 %v3524
        %v3781 = vunpack.c.l.b16 %v3525
        %v3782 = vunpack.c.l.b16 %v3526
        %v3783 = vunpack.c.l.b16 %v3527
        %v3784 = vunpack.c.l.b16 %v3528
        %v3785 = vunpack.c.l.b16 %v3529
        %v3786 = vunpack.c.l.b16 %v3530
        %v3787 = vunpack.c.l.b16 %v3531
        %v3788 = vunpack.c.l.b16 %v3532
        %v3789 = vunpack.c.l.b16 %v3533
        %v3790 = vunpack.c.l.b16 %v3534
        %v3791 = vunpack.c.l.b16 %v3535
        %v3792 = vunpack.c.l.b16 %v3536
        %v3793 = vunpack.c.l.b16 %v3537
        %v3794 = vunpack.c.l.b16 %v3538
        %v3795 = vunpack.c.l.b16 %v3539
        %v3796 = vunpack.c.l.b16 %v3540
        %v3797 = vunpack.c.l.b16 %v3541
        %v3798 = vunpack.c.l.b16 %v3542
        %v3799 = vunpack.c.l.b16 %v3543
        %v3800 = vunpack.c.l.b16 %v3544
        %v3801 = vunpack.c.l.b16 %v3545
        %v3802 = vunpack.c.l.b16 %v3546
        %v3803 = vunpack.c.l.b16 %v3547
        %v3804 = vunpack.c.l.b16 %v3548
        %v3805 = vunpack.c.l.b16 %v3549
        %v3806 = vunpack.c.l.b16 %v3550
        %v3807 = vunpack.c.l.b16 %v3551
        %v3808 = vunpack.c.l.b16 %v3552
        %v3809 = vunpack.c.l.b16 %v3553
        %v3810 = vunpack.c.l.b16 %v3554
        %v3811 = vunpack.c.l.b16 %v3555
        %v3812 = vunpack.c.l.b16 %v3556
        %v3813 = vunpack.c.l.b16 %v3557
        %v3814 = vunpack.c.l.b16 %v3558
        %v3815 = vunpack.c.l.b16 %v3559
        %v3816 = vunpack.c.l.b16 %v3560
        %v3817 = vunpack.c.l.b16 %v3561
        %v3818 = vunpack.c.l.b16 %v3562
        %v3819 = vunpack.c.l.b16 %v3563
        %v3820 = vunpack.c.l.b16 %v3564
        %v3821 = vunpack.c.l.b16 %v3565
        %v3822 = vunpack.c.l.b16 %v3566
        %v3823 = vunpack.c.l.b16 %v3567
        %v3824 = vunpack.c.l.b16 %v3568
        %v3825 = vunpack.c.l.b16 %v3569
        %v3826 = vunpack.c.l.b16 %v3570
        %v3827 = vunpack.c.l.b16 %v3571
        %v3828 = vunpack.c.l.b16 %v3572
        %v3829 = vunpack.c.l.b16 %v3573
        %v3830 = vunpack.c.l.b16 %v3574
        %v3831 = vunpack.c.l.b16 %v3575
        %v3832 = vunpack.c.l.b16 %v3576
        %v3833 = vunpack.c.l.b16 %v3577
        %v3834 = vunpack.c.l.b16 %v3578
        %v3835 = vunpack.c.l.b16 %v3579
        %v3836 = vunpack.c.l.b16 %v3580
        %v3837 = vunpack.c.l.b16 %v3581
        %v3838 = vunpack.c.l.b16 %v3582
        %v3839 = vunpack.c.l.b16 %v3583
        %v3840 = vunpack.c.l.b16 %v3584
        %v3841 = vunpack.c.l.b16 %v3585
        %v3842 = vunpack.c.l.b16 %v3586
        %v3843 = vunpack.c.l.b16 %v3587
        %v3844 = vunpack.c.l.b16 %v3588
        %v3845 = vunpack.c.l.b16 %v3589
        %v3846 = vunpack.c.l.b16 %v3590
        %v3847 = vunpack.c.l.b16 %v3591
        %v3848 = vunpack.c.l.b16 %v3592
        %v3849 = vunpack.c.l.b16 %v3593
        %v3850 = vunpack.c.l.b16 %v3594
        %v3851 = vunpack.c.l.b16 %v3595
        %v3852 = vunpack.c.l.b16 %v3596
        %v3853 = vunpack.c.l.b16 %v3597
        %v3854 = vunpack.c.l.b16 %v3598
        %v3855 = vunpack.c.l.b16 %v3599
        %v3856 = vunpack.c.l.b16 %v3600
        %v3857 = vunpack.c.l.b16 %v3601
        %v3858 = vunpack.c.l.b16 %v3602
        %v3859 = vunpack.c.l.b16 %v3603
        %v3860 = vunpack.c.l.b16 %v3604
        %v3861 = vunpack.c.l.b16 %v3605
        %v3862 = vunpack.c.l.b16 %v3606
        %v3863 = vunpack.c.l.b16 %v3607
        %v3864 = vunpack.c.l.b16 %v3608
        %v3865 = vunpack.c.l.b16 %v3609
        %v3866 = vunpack.c.l.b16 %v3610
        %v3867 = vunpack.c.l.b16 %v3611
        %v3868 = vunpack.c.l.b16 %v3612
        %v3869 = vunpack.c.l.b16 %v3613
        %v3870 = vunpack.c.l.b16 %v3614
        %v3871 = vunpack.c.l.b16 %v3615
        %v3872 = vunpack.c.l.b16 %v3616
        %v3873 = vunpack.c.l.b16 %v3617
        %v3874 = vunpack.c.l.b16 %v3618
        %v3875 = vunpack.c.l.b16 %v3619
        %v3876 = vunpack.c.l.b16 %v3620
        %v3877 = vunpack.c.l.b16 %v3621
        %v3878 = vunpack.c.l.b16 %v3622
        %v3879 = vunpack.c.l.b16 %v3623
        %v3880 = vpack.c.b16 %v3753, %v3752
        %v3881 = vpack.c.b16 %v3755, %v3754
        %v3882 = vpack.c.b16 %v3757, %v3756
        %v3883 = vpack.c.b16 %v3759, %v3758
        %v3884 = vpack.c.b16 %v3761, %v3760
        %v3885 = vpack.c.b16 %v3763, %v3762
        %v3886 = vpack.c.b16 %v3765, %v3764
        %v3887 = vpack.c.b16 %v3767, %v3766
        %v3888 = vpack.c.b16 %v3769, %v3768
        %v3889 = vpack.c.b16 %v3771, %v3770
        %v3890 = vpack.c.b16 %v3773, %v3772
        %v3891 = vpack.c.b16 %v3775, %v3774
        %v3892 = vpack.c.b16 %v3777, %v3776
        %v3893 = vpack.c.b16 %v3779, %v3778
        %v3894 = vpack.c.b16 %v3781, %v3780
        %v3895 = vpack.c.b16 %v3783, %v3782
        %v3896 = vpack.c.b16 %v3785, %v3784
        %v3897 = vpack.c.b16 %v3787, %v3786
        %v3898 = vpack.c.b16 %v3789, %v3788
        %v3899 = vpack.c.b16 %v3791, %v3790
        %v3900 = vpack.c.b16 %v3793, %v3792
        %v3901 = vpack.c.b16 %v3795, %v3794
        %v3902 = vpack.c.b16 %v3797, %v3796
        %v3903 = vpack.c.b16 %v3799, %v3798
        %v3904 = vpack.c.b16 %v3801, %v3800
        %v3905 = vpack.c.b16 %v3803, %v3802
        %v3906 = vpack.c.b16 %v3805, %v3804
        %v3907 = vpack.c.b16 %v3807, %v3806
        %v3908 = vpack.c.b16 %v3809, %v3808
        %v3909 = vpack.c.b16 %v3811, %v3810
        %v3910 = vpack.c.b16 %v3813, %v3812
        %v3911 = vpack.c.b16 %v3815, %v3814
        %v3912 = vpack.c.b16 %v3817, %v3816
        %v3913 = vpack.c.b16 %v3819, %v3818
        %v3914 = vpack.c.b16 %v3821, %v3820
        %v3915 = vpack.c.b16 %v3823, %v3822
        %v3916 = vpack.c.b16 %v3825, %v3824
        %v3917 = vpack.c.b16 %v3827, %v3826
        %v3918 = vpack.c.b16 %v3829, %v3828
        %v3919 = vpack.c.b16 %v3831, %v3830
        %v3920 = vpack.c.b16 %v3833, %v3832
        %v3921 = vpack.c.b16 %v3835, %v3834
        %v3922 = vpack.c.b16 %v3837, %v3836
        %v3923 = vpack.c.b16 %v3839, %v3838
        %v3924 = vpack.c.b16 %v3841, %v3840
        %v3925 = vpack.c.b16 %v3843, %v3842
        %v3926 = vpack.c.b16 %v3845, %v3844
        %v3927 = vpack.c.b16 %v3847, %v3846
        %v3928 = vpack.c.b16 %v3849, %v3848
        %v3929 = vpack.c.b16 %v3851, %v3850
        %v3930 = vpack.c.b16 %v3853, %v3852
        %v3931 = vpack.c.b16 %v3855, %v3854
        %v3932 = vpack.c.b16 %v3857, %v3856
        %v3933 = vpack.c.b16 %v3859, %v3858
        %v3934 = vpack.c.b16 %v3861, %v3860
        %v3935 = vpack.c.b16 %v3863, %v3862
        %v3936 = vpack.c.b16 %v3865, %v3864
        %v3937 = vpack.c.b16 %v3867, %v3866
        %v3938 = vpack.c.b16 %v3869, %v3868
        %v3939 = vpack.c.b16 %v3871, %v3870
        %v3940 = vpack.c.b16 %v3873, %v3872
        %v3941 = vpack.c.b16 %v3875, %v3874
        %v3942 = vpack.c.b16 %v3877, %v3876
        %v3943 = vpack.c.b16 %v3879, %v3878
        %4008 = vmatprep.subr.bf16.mxu0 0
        %4009 = vmatpush1.bf16.msra.mxu0 %v3887
        %4010 = vmatprep.subr.bf16.mxu0 0
        %4011 = vmatpush1.bf16.msra.mxu0 %v3886
        %4012 = vmatprep.subr.bf16.mxu0 0
        %4013 = vmatpush1.bf16.msra.mxu0 %v3885
        %4014 = vmatprep.subr.bf16.mxu0 0
        %4015 = vmatpush1.bf16.msra.mxu0 %v3884
        %4016 = vmatprep.subr.bf16.mxu0 0
        %4017 = vmatpush1.bf16.msra.mxu0 %v3883
        %4018 = vmatprep.subr.bf16.mxu0 0
        %4019 = vmatpush1.bf16.msra.mxu0 %v3882
        %4020 = vmatprep.subr.bf16.mxu0 0
        %4021 = vmatpush1.bf16.msra.mxu0 %v3881
        %4022 = vmatprep.subr.bf16.mxu0 0
        %4023 = vmatpush1.bf16.msra.mxu0 %v3880
        %4024 = vmatprep.subr.bf16.mxu0 0
        %4025 = vmatpush2.bf16.msra.mxu0 %v3895
        %4026 = vmatprep.subr.bf16.mxu0 0
        %4027 = vmatpush2.bf16.msra.mxu0 %v3894
        %4028 = vmatprep.subr.bf16.mxu0 0
        %4029 = vmatpush2.bf16.msra.mxu0 %v3893
        %4030 = vmatprep.subr.bf16.mxu0 0
        %4031 = vmatpush2.bf16.msra.mxu0 %v3892
        %4032 = vmatprep.subr.bf16.mxu0 0
        %4033 = vmatpush2.bf16.msra.mxu0 %v3891
        %4034 = vmatprep.subr.bf16.mxu0 0
        %4035 = vmatpush2.bf16.msra.mxu0 %v3890
        %4036 = vmatprep.subr.bf16.mxu0 0
        %4037 = vmatpush2.bf16.msra.mxu0 %v3889
        %4038 = vmatprep.subr.bf16.mxu0 0
        %4039 = vmatpush2.bf16.msra.mxu0 %v3888
        %4040 = vmatprep.mubr.bf16.mxu0 %v3489
        %4041 = vmatmul.mubr.bf16.gmra.mxu0 %v3488
        %v4042 = vpop.f32.mrf.mxu0
        %v4043 = vadd.f32 0.0, %v4042
        %v4044 = vpop.f32.mrf.mxu0
        %v4045 = vpop.f32.mrf.mxu0
        %v4046 = vadd.f32 0.0, %v4045
        %v4047 = vpop.f32.mrf.mxu0
        %4048 = vdwg.mxu0
        %4049 = vmatprep.subr.bf16.mxu0 0
        %4050 = vmatpush1.bf16.msra.mxu0 %v3903
        %4051 = vmatprep.subr.bf16.mxu0 0
        %4052 = vmatpush1.bf16.msra.mxu0 %v3902
        %4053 = vmatprep.subr.bf16.mxu0 0
        %4054 = vmatpush1.bf16.msra.mxu0 %v3901
        %4055 = vmatprep.subr.bf16.mxu0 0
        %4056 = vmatpush1.bf16.msra.mxu0 %v3900
        %4057 = vmatprep.subr.bf16.mxu0 0
        %4058 = vmatpush1.bf16.msra.mxu0 %v3899
        %4059 = vmatprep.subr.bf16.mxu0 0
        %4060 = vmatpush1.bf16.msra.mxu0 %v3898
        %4061 = vmatprep.subr.bf16.mxu0 0
        %4062 = vmatpush1.bf16.msra.mxu0 %v3897
        %4063 = vmatprep.subr.bf16.mxu0 0
        %4064 = vmatpush1.bf16.msra.mxu0 %v3896
        %4065 = vmatprep.subr.bf16.mxu0 0
        %4066 = vmatpush2.bf16.msra.mxu0 %v3911
        %4067 = vmatprep.subr.bf16.mxu0 0
        %4068 = vmatpush2.bf16.msra.mxu0 %v3910
        %4069 = vmatprep.subr.bf16.mxu0 0
        %4070 = vmatpush2.bf16.msra.mxu0 %v3909
        %4071 = vmatprep.subr.bf16.mxu0 0
        %4072 = vmatpush2.bf16.msra.mxu0 %v3908
        %4073 = vmatprep.subr.bf16.mxu0 0
        %4074 = vmatpush2.bf16.msra.mxu0 %v3907
        %4075 = vmatprep.subr.bf16.mxu0 0
        %4076 = vmatpush2.bf16.msra.mxu0 %v3906
        %4077 = vmatprep.subr.bf16.mxu0 0
        %4078 = vmatpush2.bf16.msra.mxu0 %v3905
        %4079 = vmatprep.subr.bf16.mxu0 0
        %4080 = vmatpush2.bf16.msra.mxu0 %v3904
        %4081 = vmatprep.mubr.bf16.mxu0 %v3491
        %4082 = vmatmul.mubr.bf16.gmra.mxu0 %v3490
        %v4083 = vpop.f32.mrf.mxu0
        %v4084 = vadd.f32 %v4043, %v4083
        %v4085 = vpop.f32.mrf.mxu0
        %v4086 = vpop.f32.mrf.mxu0
        %v4087 = vadd.f32 %v4046, %v4086
        %v4088 = vpop.f32.mrf.mxu0
        %4089 = vdwg.mxu0
        %4090 = vmatprep.subr.bf16.mxu0 0
        %4091 = vmatpush1.bf16.msra.mxu0 %v3919
        %4092 = vmatprep.subr.bf16.mxu0 0
        %4093 = vmatpush1.bf16.msra.mxu0 %v3918
        %4094 = vmatprep.subr.bf16.mxu0 0
        %4095 = vmatpush1.bf16.msra.mxu0 %v3917
        %4096 = vmatprep.subr.bf16.mxu0 0
        %4097 = vmatpush1.bf16.msra.mxu0 %v3916
        %4098 = vmatprep.subr.bf16.mxu0 0
        %4099 = vmatpush1.bf16.msra.mxu0 %v3915
        %4100 = vmatprep.subr.bf16.mxu0 0
        %4101 = vmatpush1.bf16.msra.mxu0 %v3914
        %4102 = vmatprep.subr.bf16.mxu0 0
        %4103 = vmatpush1.bf16.msra.mxu0 %v3913
        %4104 = vmatprep.subr.bf16.mxu0 0
        %4105 = vmatpush1.bf16.msra.mxu0 %v3912
        %4106 = vmatprep.subr.bf16.mxu0 0
        %4107 = vmatpush2.bf16.msra.mxu0 %v3927
        %4108 = vmatprep.subr.bf16.mxu0 0
        %4109 = vmatpush2.bf16.msra.mxu0 %v3926
        %4110 = vmatprep.subr.bf16.mxu0 0
        %4111 = vmatpush2.bf16.msra.mxu0 %v3925
        %4112 = vmatprep.subr.bf16.mxu0 0
        %4113 = vmatpush2.bf16.msra.mxu0 %v3924
        %4114 = vmatprep.subr.bf16.mxu0 0
        %4115 = vmatpush2.bf16.msra.mxu0 %v3923
        %4116 = vmatprep.subr.bf16.mxu0 0
        %4117 = vmatpush2.bf16.msra.mxu0 %v3922
        %4118 = vmatprep.subr.bf16.mxu0 0
        %4119 = vmatpush2.bf16.msra.mxu0 %v3921
        %4120 = vmatprep.subr.bf16.mxu0 0
        %4121 = vmatpush2.bf16.msra.mxu0 %v3920
        %4122 = vmatprep.mubr.bf16.mxu0 %v3493
        %4123 = vmatmul.mubr.bf16.gmra.mxu0 %v3492
        %v4124 = vpop.f32.mrf.mxu0
        %v4125 = vadd.f32 %v4084, %v4124
        %v4126 = vpop.f32.mrf.mxu0
        %v4127 = vpop.f32.mrf.mxu0
        %v4128 = vadd.f32 %v4087, %v4127
        %v4129 = vpop.f32.mrf.mxu0
        %4130 = vdwg.mxu0
        %4131 = vmatprep.subr.bf16.mxu0 0
        %4132 = vmatpush1.bf16.msra.mxu0 %v3935
        %4133 = vmatprep.subr.bf16.mxu0 0
        %4134 = vmatpush1.bf16.msra.mxu0 %v3934
        %4135 = vmatprep.subr.bf16.mxu0 0
        %4136 = vmatpush1.bf16.msra.mxu0 %v3933
        %4137 = vmatprep.subr.bf16.mxu0 0
        %4138 = vmatpush1.bf16.msra.mxu0 %v3932
        %4139 = vmatprep.subr.bf16.mxu0 0
        %4140 = vmatpush1.bf16.msra.mxu0 %v3931
        %4141 = vmatprep.subr.bf16.mxu0 0
        %4142 = vmatpush1.bf16.msra.mxu0 %v3930
        %4143 = vmatprep.subr.bf16.mxu0 0
        %4144 = vmatpush1.bf16.msra.mxu0 %v3929
        %4145 = vmatprep.subr.bf16.mxu0 0
        %4146 = vmatpush1.bf16.msra.mxu0 %v3928
        %4147 = vmatprep.subr.bf16.mxu0 0
        %4148 = vmatpush2.bf16.msra.mxu0 %v3943
        %4149 = vmatprep.subr.bf16.mxu0 0
        %4150 = vmatpush2.bf16.msra.mxu0 %v3942
        %4151 = vmatprep.subr.bf16.mxu0 0
        %4152 = vmatpush2.bf16.msra.mxu0 %v3941
        %4153 = vmatprep.subr.bf16.mxu0 0
        %4154 = vmatpush2.bf16.msra.mxu0 %v3940
        %4155 = vmatprep.subr.bf16.mxu0 0
        %4156 = vmatpush2.bf16.msra.mxu0 %v3939
        %4157 = vmatprep.subr.bf16.mxu0 0
        %4158 = vmatpush2.bf16.msra.mxu0 %v3938
        %4159 = vmatprep.subr.bf16.mxu0 0
        %4160 = vmatpush2.bf16.msra.mxu0 %v3937
        %4161 = vmatprep.subr.bf16.mxu0 0
        %4162 = vmatpush2.bf16.msra.mxu0 %v3936
        %4163 = vmatprep.mubr.bf16.mxu0 %v3495
        %4164 = vmatmul.mubr.bf16.gmra.mxu0 %v3494
        %v4165 = vpop.f32.mrf.mxu0
        %v4166 = vadd.f32 %v4125, %v4165
        %v4167 = vpop.f32.mrf.mxu0
        %v4168 = vpop.f32.mrf.mxu0
        %v4169 = vadd.f32 %v4128, %v4168
        %v4170 = vpop.f32.mrf.mxu0
        %4171 = vdwg.mxu0
        %v4172 = vpack.c.bf16 %v4169, %v4166
        %v4173 = vld [vmem:[%s7] sm:$0x1]
        %v4174 = vld [vmem:[%s6] sm:$0xf]
        %v4175 = vld [vmem:[%s6 + $0x4] sm:$0xf]
        %v4176 = vld [vmem:[%s6 + $0x8] sm:$0xf]
        %v4177 = vld [vmem:[%s6 + $0xc] sm:$0x1]
        %v4182 = vunpack.c.l.b16 %v4174
        %v4183 = vunpack.c.l.b16 %v4175
        %v4184 = vunpack.c.l.b16 %v4176
        %v4185 = vunpack.c.l.b16 %v4177
        %v4186 = vpack.c.b16 %v4183, %v4182
        %v4187 = vpack.c.b16 %v4185, %v4184
        %v4190 = vsel %vm758, %v4172, 0
        %v4193 = vand.u32 %v4187, %v765
        %4195 = vmatprep.subr.bf16.mxu0 0
        %4196 = vmatpush1.bf16.msra.mxu0 0
        %4197 = vmatprep.subr.bf16.mxu0 0
        %4198 = vmatpush1.bf16.msra.mxu0 0
        %4199 = vmatprep.subr.bf16.mxu0 0
        %4200 = vmatpush1.bf16.msra.mxu0 0
        %4201 = vmatprep.subr.bf16.mxu0 0
        %4202 = vmatpush1.bf16.msra.mxu0 0
        %4203 = vmatprep.subr.bf16.mxu0 0
        %4204 = vmatpush1.bf16.msra.mxu0 0
        %4205 = vmatprep.subr.bf16.mxu0 0
        %4206 = vmatpush1.bf16.msra.mxu0 0
        %4207 = vmatprep.subr.bf16.mxu0 0
        %4208 = vmatpush1.bf16.msra.mxu0 %v4193
        %4209 = vmatprep.subr.bf16.mxu0 0
        %4210 = vmatpush1.bf16.msra.mxu0 %v4186
        %4211 = vmatprep.subr.bf16.mxu0 0
        %4212 = vmatpush2.bf16.msra.mxu0 0
        %4213 = vmatprep.subr.bf16.mxu0 0
        %4214 = vmatpush2.bf16.msra.mxu0 0
        %4215 = vmatprep.subr.bf16.mxu0 0
        %4216 = vmatpush2.bf16.msra.mxu0 0
        %4217 = vmatprep.subr.bf16.mxu0 0
        %4218 = vmatpush2.bf16.msra.mxu0 0
        %4219 = vmatprep.subr.bf16.mxu0 0
        %4220 = vmatpush2.bf16.msra.mxu0 0
        %4221 = vmatprep.subr.bf16.mxu0 0
        %4222 = vmatpush2.bf16.msra.mxu0 0
        %4223 = vmatprep.subr.bf16.mxu0 0
        %4224 = vmatpush2.bf16.msra.mxu0 0
        %4225 = vmatprep.subr.bf16.mxu0 0
        %4226 = vmatpush2.bf16.msra.mxu0 0
        %4227 = vmatprep.mubr.bf16.mxu0 0
        %4228 = vmatmul.mubr.bf16.gmra.mxu0 %v4190
        %v4229 = vpop.f32.mrf.mxu0
        %v4230 = vadd.f32 0.0, %v4229
        %v4231 = vpop.f32.mrf.mxu0
        %v4232 = vpop.f32.mrf.mxu0
        %v4233 = vpop.f32.mrf.mxu0
        %4234 = vdwg.mxu0
        %v4235 = vadd.f32 %v4173, %v4230
        %s4236 = scalar_lea.vmem %s6, 16
        %v4237 = vld [vmem:[%s4236] sm:$0xf]
        %v4238 = vld [vmem:[%s4236 + $0x4] sm:$0xf]
        %v4239 = vld [vmem:[%s4236 + $0x8] sm:$0xf]
        %v4240 = vld [vmem:[%s4236 + $0xc] sm:$0x1]
        %v4241 = vshrl.u32 %v4172, 16
        %v4247 = vunpack.c.l.b16 %v4237
        %v4248 = vunpack.c.l.b16 %v4238
        %v4249 = vunpack.c.l.b16 %v4239
        %v4250 = vunpack.c.l.b16 %v4240
        %v4251 = vpack.c.b16 %v4248, %v4247
        %v4252 = vpack.c.b16 %v4250, %v4249
        %v4255 = vsel %vm758, %v4241, 0
        %v4258 = vand.u32 %v4252, %v765
        %4260 = vmatprep.subr.bf16.mxu0 0
        %4261 = vmatpush1.bf16.msra.mxu0 0
        %4262 = vmatprep.subr.bf16.mxu0 0
        %4263 = vmatpush1.bf16.msra.mxu0 0
        %4264 = vmatprep.subr.bf16.mxu0 0
        %4265 = vmatpush1.bf16.msra.mxu0 0
        %4266 = vmatprep.subr.bf16.mxu0 0
        %4267 = vmatpush1.bf16.msra.mxu0 0
        %4268 = vmatprep.subr.bf16.mxu0 0
        %4269 = vmatpush1.bf16.msra.mxu0 0
        %4270 = vmatprep.subr.bf16.mxu0 0
        %4271 = vmatpush1.bf16.msra.mxu0 0
        %4272 = vmatprep.subr.bf16.mxu0 0
        %4273 = vmatpush1.bf16.msra.mxu0 %v4258
        %4274 = vmatprep.subr.bf16.mxu0 0
        %4275 = vmatpush1.bf16.msra.mxu0 %v4251
        %4276 = vmatprep.subr.bf16.mxu0 0
        %4277 = vmatpush2.bf16.msra.mxu0 0
        %4278 = vmatprep.subr.bf16.mxu0 0
        %4279 = vmatpush2.bf16.msra.mxu0 0
        %4280 = vmatprep.subr.bf16.mxu0 0
        %4281 = vmatpush2.bf16.msra.mxu0 0
        %4282 = vmatprep.subr.bf16.mxu0 0
        %4283 = vmatpush2.bf16.msra.mxu0 0
        %4284 = vmatprep.subr.bf16.mxu0 0
        %4285 = vmatpush2.bf16.msra.mxu0 0
        %4286 = vmatprep.subr.bf16.mxu0 0
        %4287 = vmatpush2.bf16.msra.mxu0 0
        %4288 = vmatprep.subr.bf16.mxu0 0
        %4289 = vmatpush2.bf16.msra.mxu0 0
        %4290 = vmatprep.subr.bf16.mxu0 0
        %4291 = vmatpush2.bf16.msra.mxu0 0
        %4292 = vmatprep.mubr.bf16.mxu0 0
        %4293 = vmatmul.mubr.bf16.gmra.mxu0 %v4255
        %v4294 = vpop.f32.mrf.mxu0
        %v4295 = vadd.f32 0.0, %v4294
        %v4296 = vpop.f32.mrf.mxu0
        %v4297 = vpop.f32.mrf.mxu0
        %v4298 = vpop.f32.mrf.mxu0
        %4299 = vdwg.mxu0
        %v4300 = vadd.f32 %v4235, %v4295
        %s4301 = scalar_lea.vmem %s6, 32
        %v4302 = vld [vmem:[%s4301] sm:$0xf]
        %v4303 = vld [vmem:[%s4301 + $0x4] sm:$0xf]
        %v4304 = vld [vmem:[%s4301 + $0x8] sm:$0xf]
        %v4305 = vld [vmem:[%s4301 + $0xc] sm:$0x1]
        %v4307 = vrot.slane %v4172, 1
        %v4312 = vunpack.c.l.b16 %v4302
        %v4313 = vunpack.c.l.b16 %v4303
        %v4314 = vunpack.c.l.b16 %v4304
        %v4315 = vunpack.c.l.b16 %v4305
        %v4316 = vpack.c.b16 %v4313, %v4312
        %v4317 = vpack.c.b16 %v4315, %v4314
        %v4320 = vsel %vm758, %v4307, 0
        %v4323 = vand.u32 %v4317, %v765
        %4325 = vmatprep.subr.bf16.mxu0 0
        %4326 = vmatpush1.bf16.msra.mxu0 0
        %4327 = vmatprep.subr.bf16.mxu0 0
        %4328 = vmatpush1.bf16.msra.mxu0 0
        %4329 = vmatprep.subr.bf16.mxu0 0
        %4330 = vmatpush1.bf16.msra.mxu0 0
        %4331 = vmatprep.subr.bf16.mxu0 0
        %4332 = vmatpush1.bf16.msra.mxu0 0
        %4333 = vmatprep.subr.bf16.mxu0 0
        %4334 = vmatpush1.bf16.msra.mxu0 0
        %4335 = vmatprep.subr.bf16.mxu0 0
        %4336 = vmatpush1.bf16.msra.mxu0 0
        %4337 = vmatprep.subr.bf16.mxu0 0
        %4338 = vmatpush1.bf16.msra.mxu0 %v4323
        %4339 = vmatprep.subr.bf16.mxu0 0
        %4340 = vmatpush1.bf16.msra.mxu0 %v4316
        %4341 = vmatprep.subr.bf16.mxu0 0
        %4342 = vmatpush2.bf16.msra.mxu0 0
        %4343 = vmatprep.subr.bf16.mxu0 0
        %4344 = vmatpush2.bf16.msra.mxu0 0
        %4345 = vmatprep.subr.bf16.mxu0 0
        %4346 = vmatpush2.bf16.msra.mxu0 0
        %4347 = vmatprep.subr.bf16.mxu0 0
        %4348 = vmatpush2.bf16.msra.mxu0 0
        %4349 = vmatprep.subr.bf16.mxu0 0
        %4350 = vmatpush2.bf16.msra.mxu0 0
        %4351 = vmatprep.subr.bf16.mxu0 0
        %4352 = vmatpush2.bf16.msra.mxu0 0
        %4353 = vmatprep.subr.bf16.mxu0 0
        %4354 = vmatpush2.bf16.msra.mxu0 0
        %4355 = vmatprep.subr.bf16.mxu0 0
        %4356 = vmatpush2.bf16.msra.mxu0 0
        %4357 = vmatprep.mubr.bf16.mxu0 0
        %4358 = vmatmul.mubr.bf16.gmra.mxu0 %v4320
        %v4359 = vpop.f32.mrf.mxu0
        %v4360 = vadd.f32 0.0, %v4359
        %v4361 = vpop.f32.mrf.mxu0
        %v4362 = vpop.f32.mrf.mxu0
        %v4363 = vpop.f32.mrf.mxu0
        %4364 = vdwg.mxu0
        %v4365 = vadd.f32 %v4300, %v4360
        %s4366 = scalar_lea.vmem %s6, 48
        %v4367 = vld [vmem:[%s4366] sm:$0xf]
        %v4368 = vld [vmem:[%s4366 + $0x4] sm:$0xf]
        %v4369 = vld [vmem:[%s4366 + $0x8] sm:$0xf]
        %v4370 = vld [vmem:[%s4366 + $0xc] sm:$0x1]
        %v4371 = vrot.slane %v4241, 1
        %v4376 = vunpack.c.l.b16 %v4367
        %v4377 = vunpack.c.l.b16 %v4368
        %v4378 = vunpack.c.l.b16 %v4369
        %v4379 = vunpack.c.l.b16 %v4370
        %v4380 = vpack.c.b16 %v4377, %v4376
        %v4381 = vpack.c.b16 %v4379, %v4378
        %v4384 = vsel %vm758, %v4371, 0
        %v4387 = vand.u32 %v4381, %v765
        %4389 = vmatprep.subr.bf16.mxu0 0
        %4390 = vmatpush1.bf16.msra.mxu0 0
        %4391 = vmatprep.subr.bf16.mxu0 0
        %4392 = vmatpush1.bf16.msra.mxu0 0
        %4393 = vmatprep.subr.bf16.mxu0 0
        %4394 = vmatpush1.bf16.msra.mxu0 0
        %4395 = vmatprep.subr.bf16.mxu0 0
        %4396 = vmatpush1.bf16.msra.mxu0 0
        %4397 = vmatprep.subr.bf16.mxu0 0
        %4398 = vmatpush1.bf16.msra.mxu0 0
        %4399 = vmatprep.subr.bf16.mxu0 0
        %4400 = vmatpush1.bf16.msra.mxu0 0
        %4401 = vmatprep.subr.bf16.mxu0 0
        %4402 = vmatpush1.bf16.msra.mxu0 %v4387
        %4403 = vmatprep.subr.bf16.mxu0 0
        %4404 = vmatpush1.bf16.msra.mxu0 %v4380
        %4405 = vmatprep.subr.bf16.mxu0 0
        %4406 = vmatpush2.bf16.msra.mxu0 0
        %4407 = vmatprep.subr.bf16.mxu0 0
        %4408 = vmatpush2.bf16.msra.mxu0 0
        %4409 = vmatprep.subr.bf16.mxu0 0
        %4410 = vmatpush2.bf16.msra.mxu0 0
        %4411 = vmatprep.subr.bf16.mxu0 0
        %4412 = vmatpush2.bf16.msra.mxu0 0
        %4413 = vmatprep.subr.bf16.mxu0 0
        %4414 = vmatpush2.bf16.msra.mxu0 0
        %4415 = vmatprep.subr.bf16.mxu0 0
        %4416 = vmatpush2.bf16.msra.mxu0 0
        %4417 = vmatprep.subr.bf16.mxu0 0
        %4418 = vmatpush2.bf16.msra.mxu0 0
        %4419 = vmatprep.subr.bf16.mxu0 0
        %4420 = vmatpush2.bf16.msra.mxu0 0
        %4421 = vmatprep.mubr.bf16.mxu0 0
        %4422 = vmatmul.mubr.bf16.gmra.mxu0 %v4384
        %v4423 = vpop.f32.mrf.mxu0
        %v4424 = vadd.f32 0.0, %v4423
        %v4425 = vpop.f32.mrf.mxu0
        %v4426 = vpop.f32.mrf.mxu0
        %v4427 = vpop.f32.mrf.mxu0
        %4428 = vdwg.mxu0
        %v4429 = vadd.f32 %v4365, %v4424
        %s4430 = scalar_lea.vmem %s6, 64
        %v4431 = vld [vmem:[%s4430] sm:$0xf]
        %v4432 = vld [vmem:[%s4430 + $0x4] sm:$0xf]
        %v4433 = vld [vmem:[%s4430 + $0x8] sm:$0xf]
        %v4434 = vld [vmem:[%s4430 + $0xc] sm:$0x1]
        %v4435 = vrot.slane %v4172, 2
        %v4440 = vunpack.c.l.b16 %v4431
        %v4441 = vunpack.c.l.b16 %v4432
        %v4442 = vunpack.c.l.b16 %v4433
        %v4443 = vunpack.c.l.b16 %v4434
        %v4444 = vpack.c.b16 %v4441, %v4440
        %v4445 = vpack.c.b16 %v4443, %v4442
        %v4448 = vsel %vm758, %v4435, 0
        %v4451 = vand.u32 %v4445, %v765
        %4453 = vmatprep.subr.bf16.mxu0 0
        %4454 = vmatpush1.bf16.msra.mxu0 0
        %4455 = vmatprep.subr.bf16.mxu0 0
        %4456 = vmatpush1.bf16.msra.mxu0 0
        %4457 = vmatprep.subr.bf16.mxu0 0
        %4458 = vmatpush1.bf16.msra.mxu0 0
        %4459 = vmatprep.subr.bf16.mxu0 0
        %4460 = vmatpush1.bf16.msra.mxu0 0
        %4461 = vmatprep.subr.bf16.mxu0 0
        %4462 = vmatpush1.bf16.msra.mxu0 0
        %4463 = vmatprep.subr.bf16.mxu0 0
        %4464 = vmatpush1.bf16.msra.mxu0 0
        %4465 = vmatprep.subr.bf16.mxu0 0
        %4466 = vmatpush1.bf16.msra.mxu0 %v4451
        %4467 = vmatprep.subr.bf16.mxu0 0
        %4468 = vmatpush1.bf16.msra.mxu0 %v4444
        %4469 = vmatprep.subr.bf16.mxu0 0
        %4470 = vmatpush2.bf16.msra.mxu0 0
        %4471 = vmatprep.subr.bf16.mxu0 0
        %4472 = vmatpush2.bf16.msra.mxu0 0
        %4473 = vmatprep.subr.bf16.mxu0 0
        %4474 = vmatpush2.bf16.msra.mxu0 0
        %4475 = vmatprep.subr.bf16.mxu0 0
        %4476 = vmatpush2.bf16.msra.mxu0 0
        %4477 = vmatprep.subr.bf16.mxu0 0
        %4478 = vmatpush2.bf16.msra.mxu0 0
        %4479 = vmatprep.subr.bf16.mxu0 0
        %4480 = vmatpush2.bf16.msra.mxu0 0
        %4481 = vmatprep.subr.bf16.mxu0 0
        %4482 = vmatpush2.bf16.msra.mxu0 0
        %4483 = vmatprep.subr.bf16.mxu0 0
        %4484 = vmatpush2.bf16.msra.mxu0 0
        %4485 = vmatprep.mubr.bf16.mxu0 0
        %4486 = vmatmul.mubr.bf16.gmra.mxu0 %v4448
        %v4487 = vpop.f32.mrf.mxu0
        %v4488 = vadd.f32 0.0, %v4487
        %v4489 = vpop.f32.mrf.mxu0
        %v4490 = vpop.f32.mrf.mxu0
        %v4491 = vpop.f32.mrf.mxu0
        %4492 = vdwg.mxu0
        %v4493 = vadd.f32 %v4429, %v4488
        %s4494 = scalar_lea.vmem %s6, 80
        %v4495 = vld [vmem:[%s4494] sm:$0xf]
        %v4496 = vld [vmem:[%s4494 + $0x4] sm:$0xf]
        %v4497 = vld [vmem:[%s4494 + $0x8] sm:$0xf]
        %v4498 = vld [vmem:[%s4494 + $0xc] sm:$0x1]
        %v4499 = vrot.slane %v4241, 2
        %v4504 = vunpack.c.l.b16 %v4495
        %v4505 = vunpack.c.l.b16 %v4496
        %v4506 = vunpack.c.l.b16 %v4497
        %v4507 = vunpack.c.l.b16 %v4498
        %v4508 = vpack.c.b16 %v4505, %v4504
        %v4509 = vpack.c.b16 %v4507, %v4506
        %v4512 = vsel %vm758, %v4499, 0
        %v4515 = vand.u32 %v4509, %v765
        %4517 = vmatprep.subr.bf16.mxu0 0
        %4518 = vmatpush1.bf16.msra.mxu0 0
        %4519 = vmatprep.subr.bf16.mxu0 0
        %4520 = vmatpush1.bf16.msra.mxu0 0
        %4521 = vmatprep.subr.bf16.mxu0 0
        %4522 = vmatpush1.bf16.msra.mxu0 0
        %4523 = vmatprep.subr.bf16.mxu0 0
        %4524 = vmatpush1.bf16.msra.mxu0 0
        %4525 = vmatprep.subr.bf16.mxu0 0
        %4526 = vmatpush1.bf16.msra.mxu0 0
        %4527 = vmatprep.subr.bf16.mxu0 0
        %4528 = vmatpush1.bf16.msra.mxu0 0
        %4529 = vmatprep.subr.bf16.mxu0 0
        %4530 = vmatpush1.bf16.msra.mxu0 %v4515
        %4531 = vmatprep.subr.bf16.mxu0 0
        %4532 = vmatpush1.bf16.msra.mxu0 %v4508
        %4533 = vmatprep.subr.bf16.mxu0 0
        %4534 = vmatpush2.bf16.msra.mxu0 0
        %4535 = vmatprep.subr.bf16.mxu0 0
        %4536 = vmatpush2.bf16.msra.mxu0 0
        %4537 = vmatprep.subr.bf16.mxu0 0
        %4538 = vmatpush2.bf16.msra.mxu0 0
        %4539 = vmatprep.subr.bf16.mxu0 0
        %4540 = vmatpush2.bf16.msra.mxu0 0
        %4541 = vmatprep.subr.bf16.mxu0 0
        %4542 = vmatpush2.bf16.msra.mxu0 0
        %4543 = vmatprep.subr.bf16.mxu0 0
        %4544 = vmatpush2.bf16.msra.mxu0 0
        %4545 = vmatprep.subr.bf16.mxu0 0
        %4546 = vmatpush2.bf16.msra.mxu0 0
        %4547 = vmatprep.subr.bf16.mxu0 0
        %4548 = vmatpush2.bf16.msra.mxu0 0
        %4549 = vmatprep.mubr.bf16.mxu0 0
        %4550 = vmatmul.mubr.bf16.gmra.mxu0 %v4512
        %v4551 = vpop.f32.mrf.mxu0
        %v4552 = vadd.f32 0.0, %v4551
        %v4553 = vpop.f32.mrf.mxu0
        %v4554 = vpop.f32.mrf.mxu0
        %v4555 = vpop.f32.mrf.mxu0
        %4556 = vdwg.mxu0
        %v4557 = vadd.f32 %v4493, %v4552
        %s4558 = scalar_lea.vmem %s6, 96
        %v4559 = vld [vmem:[%s4558] sm:$0xf]
        %v4560 = vld [vmem:[%s4558 + $0x4] sm:$0xf]
        %v4561 = vld [vmem:[%s4558 + $0x8] sm:$0xf]
        %v4562 = vld [vmem:[%s4558 + $0xc] sm:$0x1]
        %v4563 = vrot.slane %v4172, 3
        %v4568 = vunpack.c.l.b16 %v4559
        %v4569 = vunpack.c.l.b16 %v4560
        %v4570 = vunpack.c.l.b16 %v4561
        %v4571 = vunpack.c.l.b16 %v4562
        %v4572 = vpack.c.b16 %v4569, %v4568
        %v4573 = vpack.c.b16 %v4571, %v4570
        %v4576 = vsel %vm758, %v4563, 0
        %v4579 = vand.u32 %v4573, %v765
        %4581 = vmatprep.subr.bf16.mxu0 0
        %4582 = vmatpush1.bf16.msra.mxu0 0
        %4583 = vmatprep.subr.bf16.mxu0 0
        %4584 = vmatpush1.bf16.msra.mxu0 0
        %4585 = vmatprep.subr.bf16.mxu0 0
        %4586 = vmatpush1.bf16.msra.mxu0 0
        %4587 = vmatprep.subr.bf16.mxu0 0
        %4588 = vmatpush1.bf16.msra.mxu0 0
        %4589 = vmatprep.subr.bf16.mxu0 0
        %4590 = vmatpush1.bf16.msra.mxu0 0
        %4591 = vmatprep.subr.bf16.mxu0 0
        %4592 = vmatpush1.bf16.msra.mxu0 0
        %4593 = vmatprep.subr.bf16.mxu0 0
        %4594 = vmatpush1.bf16.msra.mxu0 %v4579
        %4595 = vmatprep.subr.bf16.mxu0 0
        %4596 = vmatpush1.bf16.msra.mxu0 %v4572
        %4597 = vmatprep.subr.bf16.mxu0 0
        %4598 = vmatpush2.bf16.msra.mxu0 0
        %4599 = vmatprep.subr.bf16.mxu0 0
        %4600 = vmatpush2.bf16.msra.mxu0 0
        %4601 = vmatprep.subr.bf16.mxu0 0
        %4602 = vmatpush2.bf16.msra.mxu0 0
        %4603 = vmatprep.subr.bf16.mxu0 0
        %4604 = vmatpush2.bf16.msra.mxu0 0
        %4605 = vmatprep.subr.bf16.mxu0 0
        %4606 = vmatpush2.bf16.msra.mxu0 0
        %4607 = vmatprep.subr.bf16.mxu0 0
        %4608 = vmatpush2.bf16.msra.mxu0 0
        %4609 = vmatprep.subr.bf16.mxu0 0
        %4610 = vmatpush2.bf16.msra.mxu0 0
        %4611 = vmatprep.subr.bf16.mxu0 0
        %4612 = vmatpush2.bf16.msra.mxu0 0
        %4613 = vmatprep.mubr.bf16.mxu0 0
        %4614 = vmatmul.mubr.bf16.gmra.mxu0 %v4576
        %v4615 = vpop.f32.mrf.mxu0
        %v4616 = vadd.f32 0.0, %v4615
        %v4617 = vpop.f32.mrf.mxu0
        %v4618 = vpop.f32.mrf.mxu0
        %v4619 = vpop.f32.mrf.mxu0
        %4620 = vdwg.mxu0
        %v4621 = vadd.f32 %v4557, %v4616
        %s4622 = scalar_lea.vmem %s6, 112
        %v4623 = vld [vmem:[%s4622] sm:$0xf]
        %v4624 = vld [vmem:[%s4622 + $0x4] sm:$0xf]
        %v4625 = vld [vmem:[%s4622 + $0x8] sm:$0xf]
        %v4626 = vld [vmem:[%s4622 + $0xc] sm:$0x1]
        %v4627 = vrot.slane %v4241, 3
        %v4632 = vunpack.c.l.b16 %v4623
        %v4633 = vunpack.c.l.b16 %v4624
        %v4634 = vunpack.c.l.b16 %v4625
        %v4635 = vunpack.c.l.b16 %v4626
        %v4636 = vpack.c.b16 %v4633, %v4632
        %v4637 = vpack.c.b16 %v4635, %v4634
        %v4640 = vsel %vm758, %v4627, 0
        %v4643 = vand.u32 %v4637, %v765
        %4645 = vmatprep.subr.bf16.mxu0 0
        %4646 = vmatpush1.bf16.msra.mxu0 0
        %4647 = vmatprep.subr.bf16.mxu0 0
        %4648 = vmatpush1.bf16.msra.mxu0 0
        %4649 = vmatprep.subr.bf16.mxu0 0
        %4650 = vmatpush1.bf16.msra.mxu0 0
        %4651 = vmatprep.subr.bf16.mxu0 0
        %4652 = vmatpush1.bf16.msra.mxu0 0
        %4653 = vmatprep.subr.bf16.mxu0 0
        %4654 = vmatpush1.bf16.msra.mxu0 0
        %4655 = vmatprep.subr.bf16.mxu0 0
        %4656 = vmatpush1.bf16.msra.mxu0 0
        %4657 = vmatprep.subr.bf16.mxu0 0
        %4658 = vmatpush1.bf16.msra.mxu0 %v4643
        %4659 = vmatprep.subr.bf16.mxu0 0
        %4660 = vmatpush1.bf16.msra.mxu0 %v4636
        %4661 = vmatprep.subr.bf16.mxu0 0
        %4662 = vmatpush2.bf16.msra.mxu0 0
        %4663 = vmatprep.subr.bf16.mxu0 0
        %4664 = vmatpush2.bf16.msra.mxu0 0
        %4665 = vmatprep.subr.bf16.mxu0 0
        %4666 = vmatpush2.bf16.msra.mxu0 0
        %4667 = vmatprep.subr.bf16.mxu0 0
        %4668 = vmatpush2.bf16.msra.mxu0 0
        %4669 = vmatprep.subr.bf16.mxu0 0
        %4670 = vmatpush2.bf16.msra.mxu0 0
        %4671 = vmatprep.subr.bf16.mxu0 0
        %4672 = vmatpush2.bf16.msra.mxu0 0
        %4673 = vmatprep.subr.bf16.mxu0 0
        %4674 = vmatpush2.bf16.msra.mxu0 0
        %4675 = vmatprep.subr.bf16.mxu0 0
        %4676 = vmatpush2.bf16.msra.mxu0 0
        %4677 = vmatprep.mubr.bf16.mxu0 0
        %4678 = vmatmul.mubr.bf16.gmra.mxu0 %v4640
        %v4679 = vpop.f32.mrf.mxu0
        %v4680 = vadd.f32 0.0, %v4679
        %v4681 = vpop.f32.mrf.mxu0
        %v4682 = vpop.f32.mrf.mxu0
        %v4683 = vpop.f32.mrf.mxu0
        %4684 = vdwg.mxu0
        %v4685 = vadd.f32 %v4621, %v4680
        %s4686 = scalar_lea.vmem %s6, 128
        %v4687 = vld [vmem:[%s4686] sm:$0xf]
        %v4688 = vld [vmem:[%s4686 + $0x4] sm:$0xf]
        %v4689 = vld [vmem:[%s4686 + $0x8] sm:$0xf]
        %v4690 = vld [vmem:[%s4686 + $0xc] sm:$0x1]
        %v4691 = vrot.slane %v4172, 4
        %v4696 = vunpack.c.l.b16 %v4687
        %v4697 = vunpack.c.l.b16 %v4688
        %v4698 = vunpack.c.l.b16 %v4689
        %v4699 = vunpack.c.l.b16 %v4690
        %v4700 = vpack.c.b16 %v4697, %v4696
        %v4701 = vpack.c.b16 %v4699, %v4698
        %v4704 = vsel %vm758, %v4691, 0
        %v4707 = vand.u32 %v4701, %v765
        %4709 = vmatprep.subr.bf16.mxu0 0
        %4710 = vmatpush1.bf16.msra.mxu0 0
        %4711 = vmatprep.subr.bf16.mxu0 0
        %4712 = vmatpush1.bf16.msra.mxu0 0
        %4713 = vmatprep.subr.bf16.mxu0 0
        %4714 = vmatpush1.bf16.msra.mxu0 0
        %4715 = vmatprep.subr.bf16.mxu0 0
        %4716 = vmatpush1.bf16.msra.mxu0 0
        %4717 = vmatprep.subr.bf16.mxu0 0
        %4718 = vmatpush1.bf16.msra.mxu0 0
        %4719 = vmatprep.subr.bf16.mxu0 0
        %4720 = vmatpush1.bf16.msra.mxu0 0
        %4721 = vmatprep.subr.bf16.mxu0 0
        %4722 = vmatpush1.bf16.msra.mxu0 %v4707
        %4723 = vmatprep.subr.bf16.mxu0 0
        %4724 = vmatpush1.bf16.msra.mxu0 %v4700
        %4725 = vmatprep.subr.bf16.mxu0 0
        %4726 = vmatpush2.bf16.msra.mxu0 0
        %4727 = vmatprep.subr.bf16.mxu0 0
        %4728 = vmatpush2.bf16.msra.mxu0 0
        %4729 = vmatprep.subr.bf16.mxu0 0
        %4730 = vmatpush2.bf16.msra.mxu0 0
        %4731 = vmatprep.subr.bf16.mxu0 0
        %4732 = vmatpush2.bf16.msra.mxu0 0
        %4733 = vmatprep.subr.bf16.mxu0 0
        %4734 = vmatpush2.bf16.msra.mxu0 0
        %4735 = vmatprep.subr.bf16.mxu0 0
        %4736 = vmatpush2.bf16.msra.mxu0 0
        %4737 = vmatprep.subr.bf16.mxu0 0
        %4738 = vmatpush2.bf16.msra.mxu0 0
        %4739 = vmatprep.subr.bf16.mxu0 0
        %4740 = vmatpush2.bf16.msra.mxu0 0
        %4741 = vmatprep.mubr.bf16.mxu0 0
        %4742 = vmatmul.mubr.bf16.gmra.mxu0 %v4704
        %v4743 = vpop.f32.mrf.mxu0
        %v4744 = vadd.f32 0.0, %v4743
        %v4745 = vpop.f32.mrf.mxu0
        %v4746 = vpop.f32.mrf.mxu0
        %v4747 = vpop.f32.mrf.mxu0
        %4748 = vdwg.mxu0
        %v4749 = vadd.f32 %v4685, %v4744
        %s4750 = scalar_lea.vmem %s6, 144
        %v4751 = vld [vmem:[%s4750] sm:$0xf]
        %v4752 = vld [vmem:[%s4750 + $0x4] sm:$0xf]
        %v4753 = vld [vmem:[%s4750 + $0x8] sm:$0xf]
        %v4754 = vld [vmem:[%s4750 + $0xc] sm:$0x1]
        %v4755 = vrot.slane %v4241, 4
        %v4760 = vunpack.c.l.b16 %v4751
        %v4761 = vunpack.c.l.b16 %v4752
        %v4762 = vunpack.c.l.b16 %v4753
        %v4763 = vunpack.c.l.b16 %v4754
        %v4764 = vpack.c.b16 %v4761, %v4760
        %v4765 = vpack.c.b16 %v4763, %v4762
        %v4768 = vsel %vm758, %v4755, 0
        %v4771 = vand.u32 %v4765, %v765
        %4773 = vmatprep.subr.bf16.mxu0 0
        %4774 = vmatpush1.bf16.msra.mxu0 0
        %4775 = vmatprep.subr.bf16.mxu0 0
        %4776 = vmatpush1.bf16.msra.mxu0 0
        %4777 = vmatprep.subr.bf16.mxu0 0
        %4778 = vmatpush1.bf16.msra.mxu0 0
        %4779 = vmatprep.subr.bf16.mxu0 0
        %4780 = vmatpush1.bf16.msra.mxu0 0
        %4781 = vmatprep.subr.bf16.mxu0 0
        %4782 = vmatpush1.bf16.msra.mxu0 0
        %4783 = vmatprep.subr.bf16.mxu0 0
        %4784 = vmatpush1.bf16.msra.mxu0 0
        %4785 = vmatprep.subr.bf16.mxu0 0
        %4786 = vmatpush1.bf16.msra.mxu0 %v4771
        %4787 = vmatprep.subr.bf16.mxu0 0
        %4788 = vmatpush1.bf16.msra.mxu0 %v4764
        %4789 = vmatprep.subr.bf16.mxu0 0
        %4790 = vmatpush2.bf16.msra.mxu0 0
        %4791 = vmatprep.subr.bf16.mxu0 0
        %4792 = vmatpush2.bf16.msra.mxu0 0
        %4793 = vmatprep.subr.bf16.mxu0 0
        %4794 = vmatpush2.bf16.msra.mxu0 0
        %4795 = vmatprep.subr.bf16.mxu0 0
        %4796 = vmatpush2.bf16.msra.mxu0 0
        %4797 = vmatprep.subr.bf16.mxu0 0
        %4798 = vmatpush2.bf16.msra.mxu0 0
        %4799 = vmatprep.subr.bf16.mxu0 0
        %4800 = vmatpush2.bf16.msra.mxu0 0
        %4801 = vmatprep.subr.bf16.mxu0 0
        %4802 = vmatpush2.bf16.msra.mxu0 0
        %4803 = vmatprep.subr.bf16.mxu0 0
        %4804 = vmatpush2.bf16.msra.mxu0 0
        %4805 = vmatprep.mubr.bf16.mxu0 0
        %4806 = vmatmul.mubr.bf16.gmra.mxu0 %v4768
        %v4807 = vpop.f32.mrf.mxu0
        %v4808 = vadd.f32 0.0, %v4807
        %v4809 = vpop.f32.mrf.mxu0
        %v4810 = vpop.f32.mrf.mxu0
        %v4811 = vpop.f32.mrf.mxu0
        %4812 = vdwg.mxu0
        %v4813 = vadd.f32 %v4749, %v4808
        %s4814 = scalar_lea.vmem %s6, 160
        %v4815 = vld [vmem:[%s4814] sm:$0xf]
        %v4816 = vld [vmem:[%s4814 + $0x4] sm:$0xf]
        %v4817 = vld [vmem:[%s4814 + $0x8] sm:$0xf]
        %v4818 = vld [vmem:[%s4814 + $0xc] sm:$0x1]
        %v4819 = vrot.slane %v4172, 5
        %v4824 = vunpack.c.l.b16 %v4815
        %v4825 = vunpack.c.l.b16 %v4816
        %v4826 = vunpack.c.l.b16 %v4817
        %v4827 = vunpack.c.l.b16 %v4818
        %v4828 = vpack.c.b16 %v4825, %v4824
        %v4829 = vpack.c.b16 %v4827, %v4826
        %v4832 = vsel %vm758, %v4819, 0
        %v4835 = vand.u32 %v4829, %v765
        %4837 = vmatprep.subr.bf16.mxu0 0
        %4838 = vmatpush1.bf16.msra.mxu0 0
        %4839 = vmatprep.subr.bf16.mxu0 0
        %4840 = vmatpush1.bf16.msra.mxu0 0
        %4841 = vmatprep.subr.bf16.mxu0 0
        %4842 = vmatpush1.bf16.msra.mxu0 0
        %4843 = vmatprep.subr.bf16.mxu0 0
        %4844 = vmatpush1.bf16.msra.mxu0 0
        %4845 = vmatprep.subr.bf16.mxu0 0
        %4846 = vmatpush1.bf16.msra.mxu0 0
        %4847 = vmatprep.subr.bf16.mxu0 0
        %4848 = vmatpush1.bf16.msra.mxu0 0
        %4849 = vmatprep.subr.bf16.mxu0 0
        %4850 = vmatpush1.bf16.msra.mxu0 %v4835
        %4851 = vmatprep.subr.bf16.mxu0 0
        %4852 = vmatpush1.bf16.msra.mxu0 %v4828
        %4853 = vmatprep.subr.bf16.mxu0 0
        %4854 = vmatpush2.bf16.msra.mxu0 0
        %4855 = vmatprep.subr.bf16.mxu0 0
        %4856 = vmatpush2.bf16.msra.mxu0 0
        %4857 = vmatprep.subr.bf16.mxu0 0
        %4858 = vmatpush2.bf16.msra.mxu0 0
        %4859 = vmatprep.subr.bf16.mxu0 0
        %4860 = vmatpush2.bf16.msra.mxu0 0
        %4861 = vmatprep.subr.bf16.mxu0 0
        %4862 = vmatpush2.bf16.msra.mxu0 0
        %4863 = vmatprep.subr.bf16.mxu0 0
        %4864 = vmatpush2.bf16.msra.mxu0 0
        %4865 = vmatprep.subr.bf16.mxu0 0
        %4866 = vmatpush2.bf16.msra.mxu0 0
        %4867 = vmatprep.subr.bf16.mxu0 0
        %4868 = vmatpush2.bf16.msra.mxu0 0
        %4869 = vmatprep.mubr.bf16.mxu0 0
        %4870 = vmatmul.mubr.bf16.gmra.mxu0 %v4832
        %v4871 = vpop.f32.mrf.mxu0
        %v4872 = vadd.f32 0.0, %v4871
        %v4873 = vpop.f32.mrf.mxu0
        %v4874 = vpop.f32.mrf.mxu0
        %v4875 = vpop.f32.mrf.mxu0
        %4876 = vdwg.mxu0
        %v4877 = vadd.f32 %v4813, %v4872
        %s4878 = scalar_lea.vmem %s6, 176
        %v4879 = vld [vmem:[%s4878] sm:$0xf]
        %v4880 = vld [vmem:[%s4878 + $0x4] sm:$0xf]
        %v4881 = vld [vmem:[%s4878 + $0x8] sm:$0xf]
        %v4882 = vld [vmem:[%s4878 + $0xc] sm:$0x1]
        %v4883 = vrot.slane %v4241, 5
        %v4888 = vunpack.c.l.b16 %v4879
        %v4889 = vunpack.c.l.b16 %v4880
        %v4890 = vunpack.c.l.b16 %v4881
        %v4891 = vunpack.c.l.b16 %v4882
        %v4892 = vpack.c.b16 %v4889, %v4888
        %v4893 = vpack.c.b16 %v4891, %v4890
        %v4896 = vsel %vm758, %v4883, 0
        %v4899 = vand.u32 %v4893, %v765
        %4901 = vmatprep.subr.bf16.mxu0 0
        %4902 = vmatpush1.bf16.msra.mxu0 0
        %4903 = vmatprep.subr.bf16.mxu0 0
        %4904 = vmatpush1.bf16.msra.mxu0 0
        %4905 = vmatprep.subr.bf16.mxu0 0
        %4906 = vmatpush1.bf16.msra.mxu0 0
        %4907 = vmatprep.subr.bf16.mxu0 0
        %4908 = vmatpush1.bf16.msra.mxu0 0
        %4909 = vmatprep.subr.bf16.mxu0 0
        %4910 = vmatpush1.bf16.msra.mxu0 0
        %4911 = vmatprep.subr.bf16.mxu0 0
        %4912 = vmatpush1.bf16.msra.mxu0 0
        %4913 = vmatprep.subr.bf16.mxu0 0
        %4914 = vmatpush1.bf16.msra.mxu0 %v4899
        %4915 = vmatprep.subr.bf16.mxu0 0
        %4916 = vmatpush1.bf16.msra.mxu0 %v4892
        %4917 = vmatprep.subr.bf16.mxu0 0
        %4918 = vmatpush2.bf16.msra.mxu0 0
        %4919 = vmatprep.subr.bf16.mxu0 0
        %4920 = vmatpush2.bf16.msra.mxu0 0
        %4921 = vmatprep.subr.bf16.mxu0 0
        %4922 = vmatpush2.bf16.msra.mxu0 0
        %4923 = vmatprep.subr.bf16.mxu0 0
        %4924 = vmatpush2.bf16.msra.mxu0 0
        %4925 = vmatprep.subr.bf16.mxu0 0
        %4926 = vmatpush2.bf16.msra.mxu0 0
        %4927 = vmatprep.subr.bf16.mxu0 0
        %4928 = vmatpush2.bf16.msra.mxu0 0
        %4929 = vmatprep.subr.bf16.mxu0 0
        %4930 = vmatpush2.bf16.msra.mxu0 0
        %4931 = vmatprep.subr.bf16.mxu0 0
        %4932 = vmatpush2.bf16.msra.mxu0 0
        %4933 = vmatprep.mubr.bf16.mxu0 0
        %4934 = vmatmul.mubr.bf16.gmra.mxu0 %v4896
        %v4935 = vpop.f32.mrf.mxu0
        %v4936 = vadd.f32 0.0, %v4935
        %v4937 = vpop.f32.mrf.mxu0
        %v4938 = vpop.f32.mrf.mxu0
        %v4939 = vpop.f32.mrf.mxu0
        %4940 = vdwg.mxu0
        %v4941 = vadd.f32 %v4877, %v4936
        %s4942 = scalar_lea.vmem %s6, 192
        %v4943 = vld [vmem:[%s4942] sm:$0xf]
        %v4944 = vld [vmem:[%s4942 + $0x4] sm:$0xf]
        %v4945 = vld [vmem:[%s4942 + $0x8] sm:$0xf]
        %v4946 = vld [vmem:[%s4942 + $0xc] sm:$0x1]
        %v4947 = vrot.slane %v4172, 6
        %v4952 = vunpack.c.l.b16 %v4943
        %v4953 = vunpack.c.l.b16 %v4944
        %v4954 = vunpack.c.l.b16 %v4945
        %v4955 = vunpack.c.l.b16 %v4946
        %v4956 = vpack.c.b16 %v4953, %v4952
        %v4957 = vpack.c.b16 %v4955, %v4954
        %v4960 = vsel %vm758, %v4947, 0
        %v4963 = vand.u32 %v4957, %v765
        %4965 = vmatprep.subr.bf16.mxu0 0
        %4966 = vmatpush1.bf16.msra.mxu0 0
        %4967 = vmatprep.subr.bf16.mxu0 0
        %4968 = vmatpush1.bf16.msra.mxu0 0
        %4969 = vmatprep.subr.bf16.mxu0 0
        %4970 = vmatpush1.bf16.msra.mxu0 0
        %4971 = vmatprep.subr.bf16.mxu0 0
        %4972 = vmatpush1.bf16.msra.mxu0 0
        %4973 = vmatprep.subr.bf16.mxu0 0
        %4974 = vmatpush1.bf16.msra.mxu0 0
        %4975 = vmatprep.subr.bf16.mxu0 0
        %4976 = vmatpush1.bf16.msra.mxu0 0
        %4977 = vmatprep.subr.bf16.mxu0 0
        %4978 = vmatpush1.bf16.msra.mxu0 %v4963
        %4979 = vmatprep.subr.bf16.mxu0 0
        %4980 = vmatpush1.bf16.msra.mxu0 %v4956
        %4981 = vmatprep.subr.bf16.mxu0 0
        %4982 = vmatpush2.bf16.msra.mxu0 0
        %4983 = vmatprep.subr.bf16.mxu0 0
        %4984 = vmatpush2.bf16.msra.mxu0 0
        %4985 = vmatprep.subr.bf16.mxu0 0
        %4986 = vmatpush2.bf16.msra.mxu0 0
        %4987 = vmatprep.subr.bf16.mxu0 0
        %4988 = vmatpush2.bf16.msra.mxu0 0
        %4989 = vmatprep.subr.bf16.mxu0 0
        %4990 = vmatpush2.bf16.msra.mxu0 0
        %4991 = vmatprep.subr.bf16.mxu0 0
        %4992 = vmatpush2.bf16.msra.mxu0 0
        %4993 = vmatprep.subr.bf16.mxu0 0
        %4994 = vmatpush2.bf16.msra.mxu0 0
        %4995 = vmatprep.subr.bf16.mxu0 0
        %4996 = vmatpush2.bf16.msra.mxu0 0
        %4997 = vmatprep.mubr.bf16.mxu0 0
        %4998 = vmatmul.mubr.bf16.gmra.mxu0 %v4960
        %v4999 = vpop.f32.mrf.mxu0
        %v5000 = vadd.f32 0.0, %v4999
        %v5001 = vpop.f32.mrf.mxu0
        %v5002 = vpop.f32.mrf.mxu0
        %v5003 = vpop.f32.mrf.mxu0
        %5004 = vdwg.mxu0
        %v5005 = vadd.f32 %v4941, %v5000
        %s5006 = scalar_lea.vmem %s6, 208
        %v5007 = vld [vmem:[%s5006] sm:$0xf]
        %v5008 = vld [vmem:[%s5006 + $0x4] sm:$0xf]
        %v5009 = vld [vmem:[%s5006 + $0x8] sm:$0xf]
        %v5010 = vld [vmem:[%s5006 + $0xc] sm:$0x1]
        %v5011 = vrot.slane %v4241, 6
        %v5016 = vunpack.c.l.b16 %v5007
        %v5017 = vunpack.c.l.b16 %v5008
        %v5018 = vunpack.c.l.b16 %v5009
        %v5019 = vunpack.c.l.b16 %v5010
        %v5020 = vpack.c.b16 %v5017, %v5016
        %v5021 = vpack.c.b16 %v5019, %v5018
        %v5024 = vsel %vm758, %v5011, 0
        %v5027 = vand.u32 %v5021, %v765
        %5029 = vmatprep.subr.bf16.mxu0 0
        %5030 = vmatpush1.bf16.msra.mxu0 0
        %5031 = vmatprep.subr.bf16.mxu0 0
        %5032 = vmatpush1.bf16.msra.mxu0 0
        %5033 = vmatprep.subr.bf16.mxu0 0
        %5034 = vmatpush1.bf16.msra.mxu0 0
        %5035 = vmatprep.subr.bf16.mxu0 0
        %5036 = vmatpush1.bf16.msra.mxu0 0
        %5037 = vmatprep.subr.bf16.mxu0 0
        %5038 = vmatpush1.bf16.msra.mxu0 0
        %5039 = vmatprep.subr.bf16.mxu0 0
        %5040 = vmatpush1.bf16.msra.mxu0 0
        %5041 = vmatprep.subr.bf16.mxu0 0
        %5042 = vmatpush1.bf16.msra.mxu0 %v5027
        %5043 = vmatprep.subr.bf16.mxu0 0
        %5044 = vmatpush1.bf16.msra.mxu0 %v5020
        %5045 = vmatprep.subr.bf16.mxu0 0
        %5046 = vmatpush2.bf16.msra.mxu0 0
        %5047 = vmatprep.subr.bf16.mxu0 0
        %5048 = vmatpush2.bf16.msra.mxu0 0
        %5049 = vmatprep.subr.bf16.mxu0 0
        %5050 = vmatpush2.bf16.msra.mxu0 0
        %5051 = vmatprep.subr.bf16.mxu0 0
        %5052 = vmatpush2.bf16.msra.mxu0 0
        %5053 = vmatprep.subr.bf16.mxu0 0
        %5054 = vmatpush2.bf16.msra.mxu0 0
        %5055 = vmatprep.subr.bf16.mxu0 0
        %5056 = vmatpush2.bf16.msra.mxu0 0
        %5057 = vmatprep.subr.bf16.mxu0 0
        %5058 = vmatpush2.bf16.msra.mxu0 0
        %5059 = vmatprep.subr.bf16.mxu0 0
        %5060 = vmatpush2.bf16.msra.mxu0 0
        %5061 = vmatprep.mubr.bf16.mxu0 0
        %5062 = vmatmul.mubr.bf16.gmra.mxu0 %v5024
        %v5063 = vpop.f32.mrf.mxu0
        %v5064 = vadd.f32 0.0, %v5063
        %v5065 = vpop.f32.mrf.mxu0
        %v5066 = vpop.f32.mrf.mxu0
        %v5067 = vpop.f32.mrf.mxu0
        %5068 = vdwg.mxu0
        %v5069 = vadd.f32 %v5005, %v5064
        %s5070 = scalar_lea.vmem %s6, 224
        %v5071 = vld [vmem:[%s5070] sm:$0xf]
        %v5072 = vld [vmem:[%s5070 + $0x4] sm:$0xf]
        %v5073 = vld [vmem:[%s5070 + $0x8] sm:$0xf]
        %v5074 = vld [vmem:[%s5070 + $0xc] sm:$0x1]
        %v5075 = vrot.slane %v4172, 7
        %v5080 = vunpack.c.l.b16 %v5071
        %v5081 = vunpack.c.l.b16 %v5072
        %v5082 = vunpack.c.l.b16 %v5073
        %v5083 = vunpack.c.l.b16 %v5074
        %v5084 = vpack.c.b16 %v5081, %v5080
        %v5085 = vpack.c.b16 %v5083, %v5082
        %v5088 = vsel %vm758, %v5075, 0
        %v5091 = vand.u32 %v5085, %v765
        %5093 = vmatprep.subr.bf16.mxu0 0
        %5094 = vmatpush1.bf16.msra.mxu0 0
        %5095 = vmatprep.subr.bf16.mxu0 0
        %5096 = vmatpush1.bf16.msra.mxu0 0
        %5097 = vmatprep.subr.bf16.mxu0 0
        %5098 = vmatpush1.bf16.msra.mxu0 0
        %5099 = vmatprep.subr.bf16.mxu0 0
        %5100 = vmatpush1.bf16.msra.mxu0 0
        %5101 = vmatprep.subr.bf16.mxu0 0
        %5102 = vmatpush1.bf16.msra.mxu0 0
        %5103 = vmatprep.subr.bf16.mxu0 0
        %5104 = vmatpush1.bf16.msra.mxu0 0
        %5105 = vmatprep.subr.bf16.mxu0 0
        %5106 = vmatpush1.bf16.msra.mxu0 %v5091
        %5107 = vmatprep.subr.bf16.mxu0 0
        %5108 = vmatpush1.bf16.msra.mxu0 %v5084
        %5109 = vmatprep.subr.bf16.mxu0 0
        %5110 = vmatpush2.bf16.msra.mxu0 0
        %5111 = vmatprep.subr.bf16.mxu0 0
        %5112 = vmatpush2.bf16.msra.mxu0 0
        %5113 = vmatprep.subr.bf16.mxu0 0
        %5114 = vmatpush2.bf16.msra.mxu0 0
        %5115 = vmatprep.subr.bf16.mxu0 0
        %5116 = vmatpush2.bf16.msra.mxu0 0
        %5117 = vmatprep.subr.bf16.mxu0 0
        %5118 = vmatpush2.bf16.msra.mxu0 0
        %5119 = vmatprep.subr.bf16.mxu0 0
        %5120 = vmatpush2.bf16.msra.mxu0 0
        %5121 = vmatprep.subr.bf16.mxu0 0
        %5122 = vmatpush2.bf16.msra.mxu0 0
        %5123 = vmatprep.subr.bf16.mxu0 0
        %5124 = vmatpush2.bf16.msra.mxu0 0
        %5125 = vmatprep.mubr.bf16.mxu0 0
        %5126 = vmatmul.mubr.bf16.gmra.mxu0 %v5088
        %v5127 = vpop.f32.mrf.mxu0
        %v5128 = vadd.f32 0.0, %v5127
        %v5129 = vpop.f32.mrf.mxu0
        %v5130 = vpop.f32.mrf.mxu0
        %v5131 = vpop.f32.mrf.mxu0
        %5132 = vdwg.mxu0
        %v5133 = vadd.f32 %v5069, %v5128
        %s5134 = scalar_lea.vmem %s6, 240
        %v5135 = vld [vmem:[%s5134] sm:$0xf]
        %v5136 = vld [vmem:[%s5134 + $0x4] sm:$0xf]
        %v5137 = vld [vmem:[%s5134 + $0x8] sm:$0xf]
        %v5138 = vld [vmem:[%s5134 + $0xc] sm:$0x1]
        %v5139 = vrot.slane %v4241, 7
        %v5144 = vunpack.c.l.b16 %v5135
        %v5145 = vunpack.c.l.b16 %v5136
        %v5146 = vunpack.c.l.b16 %v5137
        %v5147 = vunpack.c.l.b16 %v5138
        %v5148 = vpack.c.b16 %v5145, %v5144
        %v5149 = vpack.c.b16 %v5147, %v5146
        %v5152 = vsel %vm758, %v5139, 0
        %v5155 = vand.u32 %v5149, %v765
        %5157 = vmatprep.subr.bf16.mxu0 0
        %5158 = vmatpush1.bf16.msra.mxu0 0
        %5159 = vmatprep.subr.bf16.mxu0 0
        %5160 = vmatpush1.bf16.msra.mxu0 0
        %5161 = vmatprep.subr.bf16.mxu0 0
        %5162 = vmatpush1.bf16.msra.mxu0 0
        %5163 = vmatprep.subr.bf16.mxu0 0
        %5164 = vmatpush1.bf16.msra.mxu0 0
        %5165 = vmatprep.subr.bf16.mxu0 0
        %5166 = vmatpush1.bf16.msra.mxu0 0
        %5167 = vmatprep.subr.bf16.mxu0 0
        %5168 = vmatpush1.bf16.msra.mxu0 0
        %5169 = vmatprep.subr.bf16.mxu0 0
        %5170 = vmatpush1.bf16.msra.mxu0 %v5155
        %5171 = vmatprep.subr.bf16.mxu0 0
        %5172 = vmatpush1.bf16.msra.mxu0 %v5148
        %5173 = vmatprep.subr.bf16.mxu0 0
        %5174 = vmatpush2.bf16.msra.mxu0 0
        %5175 = vmatprep.subr.bf16.mxu0 0
        %5176 = vmatpush2.bf16.msra.mxu0 0
        %5177 = vmatprep.subr.bf16.mxu0 0
        %5178 = vmatpush2.bf16.msra.mxu0 0
        %5179 = vmatprep.subr.bf16.mxu0 0
        %5180 = vmatpush2.bf16.msra.mxu0 0
        %5181 = vmatprep.subr.bf16.mxu0 0
        %5182 = vmatpush2.bf16.msra.mxu0 0
        %5183 = vmatprep.subr.bf16.mxu0 0
        %5184 = vmatpush2.bf16.msra.mxu0 0
        %5185 = vmatprep.subr.bf16.mxu0 0
        %5186 = vmatpush2.bf16.msra.mxu0 0
        %5187 = vmatprep.subr.bf16.mxu0 0
        %5188 = vmatpush2.bf16.msra.mxu0 0
        %5189 = vmatprep.mubr.bf16.mxu0 0
        %5190 = vmatmul.mubr.bf16.gmra.mxu0 %v5152
        %v5191 = vpop.f32.mrf.mxu0
        %v5192 = vadd.f32 0.0, %v5191
        %v5193 = vpop.f32.mrf.mxu0
        %v5194 = vpop.f32.mrf.mxu0
        %v5195 = vpop.f32.mrf.mxu0
        %5196 = vdwg.mxu0
        %v5197 = vadd.f32 %v5133, %v5192
        %v5198 = vmax.f32 %v5197, 0.0
        %v5199 = vpack.c.bf16 %v5198, %v5198
        %v5200 = vld [vmem:[%s8] sm:$0xf]
        %v5201 = vld [vmem:[%s8 + $0x4] sm:$0xf]
        %v5202 = vld [vmem:[%s8 + $0x8] sm:$0xf]
        %v5203 = vld [vmem:[%s8 + $0xc] sm:$0xf]
        %v5204 = vld [vmem:[%s8 + $0x10] sm:$0xf]
        %v5205 = vld [vmem:[%s8 + $0x14] sm:$0xf]
        %v5206 = vld [vmem:[%s8 + $0x18] sm:$0xf]
        %v5207 = vld [vmem:[%s8 + $0x1c] sm:$0xf]
        %v5208 = vld [vmem:[%s8 + $0x20] sm:$0xf]
        %v5209 = vld [vmem:[%s8 + $0x24] sm:$0xf]
        %v5210 = vld [vmem:[%s8 + $0x28] sm:$0xf]
        %v5211 = vld [vmem:[%s8 + $0x2c] sm:$0xf]
        %v5212 = vld [vmem:[%s8 + $0x30] sm:$0xf]
        %v5213 = vld [vmem:[%s8 + $0x34] sm:$0xf]
        %v5214 = vld [vmem:[%s8 + $0x38] sm:$0xf]
        %v5215 = vld [vmem:[%s9] sm:$0x1]
        %v5231 = vunpack.c.l.b16 %v5200
        %v5232 = vunpack.c.l.b16 %v5201
        %v5233 = vunpack.c.l.b16 %v5202
        %v5234 = vunpack.c.l.b16 %v5203
        %v5235 = vunpack.c.l.b16 %v5204
        %v5236 = vunpack.c.l.b16 %v5205
        %v5237 = vunpack.c.l.b16 %v5206
        %v5238 = vunpack.c.l.b16 %v5207
        %v5239 = vunpack.c.l.b16 %v5208
        %v5240 = vunpack.c.l.b16 %v5209
        %v5241 = vunpack.c.l.b16 %v5210
        %v5242 = vunpack.c.l.b16 %v5211
        %v5243 = vunpack.c.l.b16 %v5212
        %v5244 = vunpack.c.l.b16 %v5213
        %v5245 = vunpack.c.l.b16 %v5214
        %v5246 = vpack.c.b16 %v5232, %v5231
        %v5247 = vpack.c.b16 %v5234, %v5233
        %v5248 = vpack.c.b16 %v5236, %v5235
        %v5249 = vpack.c.b16 %v5238, %v5237
        %v5250 = vpack.c.b16 %v5240, %v5239
        %v5251 = vpack.c.b16 %v5242, %v5241
        %v5252 = vpack.c.b16 %v5244, %v5243
        %v5253 = vpack.c.b16 %v5245, %v5245
        %v5262 = vsel %vm1371, %v5199, 0
        %v5265 = vsel %vm762, %v5253, 0
        %5267 = vmatprep.subr.bf16.mxu0 0
        %5268 = vmatpush1.bf16.msra.mxu0 %v5265
        %5269 = vmatprep.subr.bf16.mxu0 0
        %5270 = vmatpush1.bf16.msra.mxu0 %v5252
        %5271 = vmatprep.subr.bf16.mxu0 0
        %5272 = vmatpush1.bf16.msra.mxu0 %v5251
        %5273 = vmatprep.subr.bf16.mxu0 0
        %5274 = vmatpush1.bf16.msra.mxu0 %v5250
        %5275 = vmatprep.subr.bf16.mxu0 0
        %5276 = vmatpush1.bf16.msra.mxu0 %v5249
        %5277 = vmatprep.subr.bf16.mxu0 0
        %5278 = vmatpush1.bf16.msra.mxu0 %v5248
        %5279 = vmatprep.subr.bf16.mxu0 0
        %5280 = vmatpush1.bf16.msra.mxu0 %v5247
        %5281 = vmatprep.subr.bf16.mxu0 0
        %5282 = vmatpush1.bf16.msra.mxu0 %v5246
        %5283 = vmatprep.subr.bf16.mxu0 0
        %5284 = vmatpush2.bf16.msra.mxu0 0
        %5285 = vmatprep.subr.bf16.mxu0 0
        %5286 = vmatpush2.bf16.msra.mxu0 0
        %5287 = vmatprep.subr.bf16.mxu0 0
        %5288 = vmatpush2.bf16.msra.mxu0 0
        %5289 = vmatprep.subr.bf16.mxu0 0
        %5290 = vmatpush2.bf16.msra.mxu0 0
        %5291 = vmatprep.subr.bf16.mxu0 0
        %5292 = vmatpush2.bf16.msra.mxu0 0
        %5293 = vmatprep.subr.bf16.mxu0 0
        %5294 = vmatpush2.bf16.msra.mxu0 0
        %5295 = vmatprep.subr.bf16.mxu0 0
        %5296 = vmatpush2.bf16.msra.mxu0 0
        %5297 = vmatprep.subr.bf16.mxu0 0
        %5298 = vmatpush2.bf16.msra.mxu0 0
        %5299 = vmatprep.mubr.bf16.mxu0 0
        %5300 = vmatmul.mubr.bf16.gmra.mxu0 %v5262
        %v5301 = vpop.f32.mrf.mxu0
        %v5302 = vadd.f32 %v5215, %v5301
        %v5303 = vpop.f32.mrf.mxu0
        %v5304 = vpop.f32.mrf.mxu0
        %v5305 = vpop.f32.mrf.mxu0
        %5306 = vdwg.mxu0
        %v5307 = vmax.f32 %v5302, 0.0
        %v5308 = vpack.c.bf16 %v5307, %v5307
        %v5309 = vld [vmem:[%s10] sm:$0xf]
        %v5310 = vld [vmem:[%s10 + $0x4] sm:$0xf]
        %v5311 = vld [vmem:[%s10 + $0x8] sm:$0xf]
        %v5312 = vld [vmem:[%s10 + $0xc] sm:$0xf]
        %v5313 = vld [vmem:[%s10 + $0x10] sm:$0xf]
        %v5314 = vld [vmem:[%s10 + $0x14] sm:$0xf]
        %v5315 = vld [vmem:[%s10 + $0x18] sm:$0xf]
        %v5316 = vld [vmem:[%s10 + $0x1c] sm:$0xf]
        %v5317 = vld [vmem:[%s10 + $0x20] sm:$0xf]
        %v5318 = vld [vmem:[%s10 + $0x24] sm:$0xf]
        %v5319 = vld [vmem:[%s10 + $0x28] sm:$0x3]
        %v5320 = vld [vmem:[%s11] sm:$0x1]
        %v5332 = vunpack.c.l.b16 %v5309
        %v5333 = vunpack.c.l.b16 %v5310
        %v5334 = vunpack.c.l.b16 %v5311
        %v5335 = vunpack.c.l.b16 %v5312
        %v5336 = vunpack.c.l.b16 %v5313
        %v5337 = vunpack.c.l.b16 %v5314
        %v5338 = vunpack.c.l.b16 %v5315
        %v5339 = vunpack.c.l.b16 %v5316
        %v5340 = vunpack.c.l.b16 %v5317
        %v5341 = vunpack.c.l.b16 %v5318
        %v5342 = vunpack.c.l.b16 %v5319
        %v5343 = vpack.c.b16 %v5333, %v5332
        %v5344 = vpack.c.b16 %v5335, %v5334
        %v5345 = vpack.c.b16 %v5337, %v5336
        %v5346 = vpack.c.b16 %v5339, %v5338
        %v5347 = vpack.c.b16 %v5341, %v5340
        %v5348 = vpack.c.b16 %v5342, %v5342
        %vm5354 = vcmask 687104
        %v5356 = vsel %vm5354, %v5308, 0
        %vm5358 = vcmask 1041408
        %v5360 = vsel %vm5358, %v5348, 0
        %5362 = vmatprep.subr.bf16.mxu0 0
        %5363 = vmatpush1.bf16.msra.mxu0 0
        %5364 = vmatprep.subr.bf16.mxu0 0
        %5365 = vmatpush1.bf16.msra.mxu0 0
        %5366 = vmatprep.subr.bf16.mxu0 0
        %5367 = vmatpush1.bf16.msra.mxu0 %v5360
        %5368 = vmatprep.subr.bf16.mxu0 0
        %5369 = vmatpush1.bf16.msra.mxu0 %v5347
        %5370 = vmatprep.subr.bf16.mxu0 0
        %5371 = vmatpush1.bf16.msra.mxu0 %v5346
        %5372 = vmatprep.subr.bf16.mxu0 0
        %5373 = vmatpush1.bf16.msra.mxu0 %v5345
        %5374 = vmatprep.subr.bf16.mxu0 0
        %5375 = vmatpush1.bf16.msra.mxu0 %v5344
        %5376 = vmatprep.subr.bf16.mxu0 0
        %5377 = vmatpush1.bf16.msra.mxu0 %v5343
        %5378 = vmatprep.subr.bf16.mxu0 0
        %5379 = vmatpush2.bf16.msra.mxu0 0
        %5380 = vmatprep.subr.bf16.mxu0 0
        %5381 = vmatpush2.bf16.msra.mxu0 0
        %5382 = vmatprep.subr.bf16.mxu0 0
        %5383 = vmatpush2.bf16.msra.mxu0 0
        %5384 = vmatprep.subr.bf16.mxu0 0
        %5385 = vmatpush2.bf16.msra.mxu0 0
        %5386 = vmatprep.subr.bf16.mxu0 0
        %5387 = vmatpush2.bf16.msra.mxu0 0
        %5388 = vmatprep.subr.bf16.mxu0 0
        %5389 = vmatpush2.bf16.msra.mxu0 0
        %5390 = vmatprep.subr.bf16.mxu0 0
        %5391 = vmatpush2.bf16.msra.mxu0 0
        %5392 = vmatprep.subr.bf16.mxu0 0
        %5393 = vmatpush2.bf16.msra.mxu0 0
        %5394 = vmatprep.mubr.bf16.mxu0 0
        %5395 = vmatmul.mubr.bf16.gmra.mxu0 %v5356
        %v5396 = vpop.f32.mrf.mxu0
        %v5397 = vadd.f32 %v5320, %v5396
        %v5398 = vpop.f32.mrf.mxu0
        %v5399 = vpop.f32.mrf.mxu0
        %v5400 = vpop.f32.mrf.mxu0
        %5401 = vdwg.mxu0
        %vm5402 = vcmask 73728
        %5403 = vst.msk [vmem:[%s403] sm:$0x1] %vm5402, %v5397
        %s5404 = sand.u32 %s291, 1
        %s5405 = scalar_lea.sflag [#allocation8], %s5404
        %s5406 = sand.u32 %s291, 1
        %s5407 = scalar_lea.vmem [#allocation7], %s5406
        // Predicated region
        $region69: #{net_forward.1} parent=67 // pred_check
          %p5408 = pneg %p301
        $region70: #{net_forward.1} parent=67 // pred_check_branch
          %5410 = sbr.rel (%p5408) target = $region72
        $region71: #{net_forward.1} parent=67 // pred_region
          %s5412 = ssub.s32 16, 16
          %5413 = vsyncadd %s5405, %s5412
          %s5414 = smul.addr %s26, 16
          %s5415 = scalar_lea.hbm %s12, %s5414
          %s5417 = sshll.u32 %s5407, 4
          %s5418 = int_to_ptr.vmem [resolvable:$true] %s5417
          %5420 = dma.vmem_to_hbm [thread:$0]  %s5418, 16, %s5415, %s5405
        $region72: #{net_forward.1} parent=67 // pred_fallthru
          _
      $region68: #{net_forward.1} parent=5 // pred_fallthru
        _
      %p5421 = scmp.le.s32.totalorder 2, %s21
      // Predicated region
      $region73: #{net_forward.1} parent=5 // pred_check
        %p5422 = pneg %p5421
      $region74: #{net_forward.1} parent=5 // pred_check_branch
        %5424 = sbr.rel (%p5422) target = $region76
      $region75: #{net_forward.1} parent=5 // pred_region
        %s5425 = ssub.s32 %s21, 2
        // Predicated region
        $region77: #{net_forward.1} parent=75 // pred_check
          %p5426 = pneg %p307
        $region78: #{net_forward.1} parent=75 // pred_check_branch
          %5428 = sbr.rel (%p5426) target = $region80
        $region79: #{net_forward.1} parent=75 // pred_region
          %s5429 = sand.u32 %s292, 1
          %s5430 = scalar_lea.sflag [#allocation8], %s5429
          %s5431 = sand.u32 %s292, 1
          %s5432 = scalar_lea.vmem [#allocation7], %s5431
          %5433 = dma.done %s5430, 16
        $region80: #{net_forward.1} parent=75 // pred_fallthru
          _
      $region76: #{net_forward.1} parent=5 // pred_fallthru
        _
    $region6: #{net_forward.1} parent=1 // loop_footer
      %s25 = sadd.s32 1, %s21
    $region7: #{net_forward.1} parent=1 // loop_footer_branch
      %20 = sbr.rel target = $region3
    $region8: #{net_forward.1} parent=1 // loop_exit
      _
    %5434 = vsyncpa [#allocation8], 1
    %s5435 = scalar_lea.sflag [#allocation8], 1
    %5436 = vsyncpa %s5435, 1

</llo_original>
